<compile_context>
chip_gen: v7x
topology: tpu7x:2x2x1
jax: 0.10.0
libtpu: 0.0.40
codegen_flags: <defaults>
</compile_context>

<pallas_src>
import math
from functools import partial

import numpy as np
import jax
import jax.numpy as jnp
from jax.experimental import pallas as pl
from jax.experimental.pallas import tpu as pltpu


# --------------------------------------------------------------------------- #
# Tiling helper: largest `align`-aligned divisor of `dim` <= target, else the #
# full dim (a block equal to the full dim is always legal w.r.t. (8,128)).    #
# NOTE: for prime-ish dims this falls back to one full-dim block; the tile    #
# caps + explicit vmem_limit_bytes below keep that within budget for the      #
# shapes this module is used with.                                            #
# --------------------------------------------------------------------------- #
def _tile(dim, target, align):
    if dim <= target:
        return dim
    t = (target // align) * align
    while t >= align:
        if dim % t == 0:
            return t
        t -= align
    return dim


def _compiler_params(sem, working_set_bytes):
    # Explicit scoped-VMEM budget: >= every generation's default (16/32 MiB),
    # comfortably below v7x's 64 MiB physical VMEM.
    limit = int(min(max(3 * working_set_bytes + (8 << 20), 32 << 20), 48 << 20))
    return pltpu.CompilerParams(dimension_semantics=sem,
                                vmem_limit_bytes=limit)


# --------------------------------------------------------------------------- #
# Generic tiled linear: y = x @ W + b.  Used for the Q/K/V projections        #
# (merged-head (B, T, D) output, bf16) and for the output projection          #
# (joint contraction over head*dk = D, f32 output).                           #
# --------------------------------------------------------------------------- #
def _linear_kernel(x_ref, w_ref, b_ref, o_ref, acc_ref):
    kk = pl.program_id(3)

    @pl.when(kk == 0)
    def _():
        acc_ref[...] = jnp.zeros(acc_ref.shape, acc_ref.dtype)

    acc_ref[...] += jnp.dot(x_ref[0].astype(jnp.bfloat16), w_ref[...],
                            preferred_element_type=jnp.float32)

    @pl.when(kk == pl.num_programs(3) - 1)
    def _():
        o_ref[0] = (acc_ref[...] + b_ref[...]).astype(o_ref.dtype)


def pallas_linear(x, w, b, *, out_dtype=jnp.bfloat16):
    """x: (B, T, Din), w: (Din, Dout), b: (Dout,) -> (B, T, Dout)."""
    B, T, Din = x.shape
    Dout = w.shape[1]
    tt = _tile(T, 256, 8)
    tn = _tile(Dout, 256, 128)     # lane-dense output tiles (full D when D<=256)
    tk = _tile(Din, 512, 128)
    grid = (B, T // tt, Dout // tn, Din // tk)

    w_b = w.astype(jnp.bfloat16)                      # parameter-only cast
    b2 = b.reshape(1, Dout).astype(jnp.float32)

    ws = (tt * tk * x.dtype.itemsize + tk * tn * 2 + tn * 4
          + tt * tn * jnp.dtype(out_dtype).itemsize + tt * tn * 4)

    return pl.pallas_call(
        _linear_kernel,
        out_shape=jax.ShapeDtypeStruct((B, T, Dout), out_dtype),
        grid=grid,
        in_specs=[
            pl.BlockSpec((1, tt, tk), lambda b_, t, n, k: (b_, t, k)),
            pl.BlockSpec((tk, tn), lambda b_, t, n, k: (k, n)),
            pl.BlockSpec((1, tn), lambda b_, t, n, k: (0, n)),
        ],
        out_specs=pl.BlockSpec((1, tt, tn), lambda b_, t, n, k: (b_, t, n)),
        scratch_shapes=[pltpu.VMEM((tt, tn), jnp.float32)],
        compiler_params=_compiler_params(
            ("parallel", "parallel", "parallel", "arbitrary"), ws),
    )(x, w_b, b2)


# --------------------------------------------------------------------------- #
# Flash attention over the merged (B, T, D) layout.  Heads are split inside   #
# the kernel via static lane slices; online-softmax state is a compact        #
# (tl, H) f32 scratch plus a lane-dense (tl, D) f32 accumulator.  The output  #
# is written directly in the merged (B, L, D) layout (lane-dense store).      #
# --------------------------------------------------------------------------- #
def _flash_attn_kernel(q_ref, k_ref, v_ref, o_ref, lse_ref,
                       m_sc, l_sc, acc_sc, *, n_heads, d_head):
    s_idx = pl.program_id(2)

    @pl.when(s_idx == 0)
    def _():
        m_sc[...] = jnp.full(m_sc.shape, -jnp.inf, dtype=m_sc.dtype)
        l_sc[...] = jnp.zeros(l_sc.shape, l_sc.dtype)
        acc_sc[...] = jnp.zeros(acc_sc.shape, acc_sc.dtype)

    q = q_ref[0]            # (tl, D) bf16, already scaled by 1/sqrt(dk)
    k = k_ref[0]            # (ts, D) bf16
    v = v_ref[0]            # (ts, D) bf16
    m_all = m_sc[...]       # (tl, H) f32
    l_all = l_sc[...]       # (tl, H) f32
    tl = q.shape[0]

    m_new_parts, l_new_parts, alpha_parts, pv_parts = [], [], [], []
    for h in range(n_heads):
        lo, hi = h * d_head, (h + 1) * d_head
        # scores: contract the dk lanes of this head (f32 MXU accumulation)
        s_h = jax.lax.dot_general(q[:, lo:hi], k[:, lo:hi],
                                  (((1,), (1,)), ((), ())),
                                  preferred_element_type=jnp.float32)  # (tl, ts)
        m_prev = m_all[:, h:h + 1]
        m_new = jnp.maximum(m_prev, jnp.max(s_h, axis=-1, keepdims=True))
        alpha = jnp.exp(m_prev - m_new)                                 # (tl, 1) f32
        # exp on bf16 arguments -> bf16 EUP path on v6e/v7x; sums stay f32.
        p = jnp.exp((s_h - m_new).astype(jnp.bfloat16))                 # (tl, ts) bf16
        l_new = alpha * l_all[:, h:h + 1] + jnp.sum(
            p, axis=-1, keepdims=True, dtype=jnp.float32)
        pv = jnp.dot(p, v[:, lo:hi], preferred_element_type=jnp.float32)  # (tl, dk)

        m_new_parts.append(m_new)
        l_new_parts.append(l_new)
        alpha_parts.append(jnp.broadcast_to(alpha, (tl, d_head)))
        pv_parts.append(pv)

    m_sc[...] = jnp.concatenate(m_new_parts, axis=-1)                   # (tl, H)
    l_sc[...] = jnp.concatenate(l_new_parts, axis=-1)                   # (tl, H)
    acc_sc[...] = (jnp.concatenate(alpha_parts, axis=-1) * acc_sc[...]
                   + jnp.concatenate(pv_parts, axis=-1))                # (tl, D)

    @pl.when(s_idx == pl.num_programs(2) - 1)
    def _():
        l_fin = l_sc[...]
        inv_l = pl.reciprocal(l_fin, approx=True)                       # (tl, H)
        inv_full = jnp.concatenate(
            [jnp.broadcast_to(inv_l[:, h:h + 1], (tl, d_head))
             for h in range(n_heads)], axis=-1)                         # (tl, D)
        o_ref[0] = (acc_sc[...] * inv_full).astype(o_ref.dtype)         # lane-dense
        lse_ref[0] = m_sc[...] + jnp.log(l_fin)


def pallas_flash_attention(q, k, v, n_heads):
    """q: (B, L, D), k/v: (B, S, D) bf16 -> (out bf16 (B,L,D), lse f32 (B,L,H))."""
    B, L, D = q.shape
    S = k.shape[1]
    dk = D // n_heads
    tl = _tile(L, 512, 8)      # fewer K/V re-streams
    ts = _tile(S, 256, 8)      # bounds in-kernel (tl, ts) f32 temporaries
    grid = (B, L // tl, S // ts)

    kv_idx = lambda b, ql, s: (b, s, 0)
    if S // ts >= 3:
        # small S tiles expose K/V DMA latency -> deepen the pipeline
        k_spec = pl.BlockSpec((1, ts, D), kv_idx, pipeline_mode=pl.Buffered(3))
        v_spec = pl.BlockSpec((1, ts, D), kv_idx, pipeline_mode=pl.Buffered(3))
    else:
        k_spec = pl.BlockSpec((1, ts, D), kv_idx)
        v_spec = pl.BlockSpec((1, ts, D), kv_idx)

    ws = ((tl * D + 2 * ts * D + tl * D) * 2 + tl * n_heads * 4          # blocks
          + (2 * tl * n_heads + tl * D) * 4                              # scratch
          + 2 * tl * ts * 4 + 2 * tl * D * 4)                            # temporaries

    return pl.pallas_call(
        partial(_flash_attn_kernel, n_heads=n_heads, d_head=dk),
        out_shape=(
            jax.ShapeDtypeStruct((B, L, D), jnp.bfloat16),
            jax.ShapeDtypeStruct((B, L, n_heads), jnp.float32),
        ),
        grid=grid,
        in_specs=[
            pl.BlockSpec((1, tl, D), lambda b, ql, s: (b, ql, 0)),
            k_spec,
            v_spec,
        ],
        out_specs=(
            pl.BlockSpec((1, tl, D), lambda b, ql, s: (b, ql, 0)),
            pl.BlockSpec((1, tl, n_heads), lambda b, ql, s: (b, ql, 0)),
        ),
        scratch_shapes=[
            pltpu.VMEM((tl, n_heads), jnp.float32),   # running max per head
            pltpu.VMEM((tl, n_heads), jnp.float32),   # running sum per head
            pltpu.VMEM((tl, D), jnp.float32),         # lane-dense output accumulator
        ],
        compiler_params=_compiler_params(("parallel", "parallel", "arbitrary"), ws),
    )(q, k, v)


# --------------------------------------------------------------------------- #
# Optional attention-weights kernel (module returns attn): A = exp(s - lse).  #
# bf16 output halves the (pure write-bound) HBM traffic; gated by the caller. #
# --------------------------------------------------------------------------- #
def _attn_weights_kernel(q_ref, k_ref, lse_ref, a_ref, *, n_heads, d_head):
    q = q_ref[0]            # (tl, D) bf16 (pre-scaled)
    k = k_ref[0]            # (ts, D) bf16
    lse = lse_ref[0]        # (tl, H) f32
    for h in range(n_heads):
        lo, hi = h * d_head, (h + 1) * d_head
        s_h = jax.lax.dot_general(q[:, lo:hi], k[:, lo:hi],
                                  (((1,), (1,)), ((), ())),
                                  preferred_element_type=jnp.float32)   # (tl, ts)
        a_ref[0, h] = jnp.exp(s_h - lse[:, h:h + 1]).astype(a_ref.dtype)


def pallas_attention_weights(q, k, lse, n_heads, out_dtype=jnp.bfloat16):
    """q: (B, L, D), k: (B, S, D) bf16, lse: (B, L, H) f32 -> (B, H, L, S)."""
    B, L, D = q.shape
    S = k.shape[1]
    dk = D // n_heads
    tl = _tile(L, 256, 8)
    ts = _tile(S, 512, 128)
    grid = (B, L // tl, S // ts)

    obytes = jnp.dtype(out_dtype).itemsize
    ws = (tl * D * 2 + ts * D * 2 + tl * n_heads * 4
          + n_heads * tl * ts * obytes + tl * ts * 4)
    cost = pl.CostEstimate(
        flops=2 * B * n_heads * L * S * dk,
        transcendentals=B * n_heads * L * S,
        bytes_accessed=(q.size * 2 * (S // ts) + k.size * 2 * (L // tl)
                        + lse.size * 4 + B * n_heads * L * S * obytes),
    )

    return pl.pallas_call(
        partial(_attn_weights_kernel, n_heads=n_heads, d_head=dk),
        out_shape=jax.ShapeDtypeStruct((B, n_heads, L, S), out_dtype),
        grid=grid,
        in_specs=[
            pl.BlockSpec((1, tl, D), lambda b, ql, s: (b, ql, 0)),
            pl.BlockSpec((1, ts, D), lambda b, ql, s: (b, s, 0)),
            pl.BlockSpec((1, tl, n_heads), lambda b, ql, s: (b, ql, 0)),
        ],
        out_specs=pl.BlockSpec((1, n_heads, tl, ts),
                               lambda b, ql, s: (b, 0, ql, s)),
        compiler_params=_compiler_params(("parallel", "parallel", "parallel"), ws),
        cost_estimate=cost,
    )(q, k, lse)


# --------------------------------- Module glue --------------------------------- #
def init_params(key, d_model):
    """Deterministic parameter init (shapes match nn.Linear(d_model, d_model))."""
    ks = jax.random.split(key, 8)
    bound = 1.0 / math.sqrt(d_model)

    def lin(kw, kb):
        # stored as (in, out) so kernels compute x @ W + b
        w = jax.random.uniform(kw, (d_model, d_model), jnp.float32, -bound, bound)
        b = jax.random.uniform(kb, (d_model,), jnp.float32, -bound, bound)
        return w, b

    return {
        "q": lin(ks[0], ks[1]),
        "k": lin(ks[2], ks[3]),
        "v": lin(ks[4], ks[5]),
        "o": lin(ks[6], ks[7]),
    }


def self_attention_forward(params, queries, keys, values, n_heads, return_attn=True):
    B, L, d_model = queries.shape
    S = keys.shape[1]
    H = n_heads
    dk = d_model // H
    scale = 1.0 / math.sqrt(dk)

    wq, bq = params["q"]
    wk, bk = params["k"]
    wv, bv = params["v"]
    wo, bo = params["o"]

    # Fold the 1/sqrt(dk) softmax scale into the query projection (exact, free).
    q = pallas_linear(queries, wq * scale, bq * scale, out_dtype=jnp.bfloat16)  # (B,L,D)
    k = pallas_linear(keys, wk, bk, out_dtype=jnp.bfloat16)                     # (B,S,D)
    v = pallas_linear(values, wv, bv, out_dtype=jnp.bfloat16)                   # (B,S,D)

    out_h, lse = pallas_flash_attention(q, k, v, H)        # (B,L,D) bf16, (B,L,H) f32

    out = pallas_linear(out_h, wo, bo, out_dtype=jnp.float32)  # joint (head,dk) contraction

    attn = None
    if return_attn:
        attn = pallas_attention_weights(q, k, lse, H)      # (B,H,L,S) bf16
    return out, attn


if __name__ == "__main__":
    B, L, S = 2, 8, 8
    d_model, n_heads = 32, 4

    key = jax.random.PRNGKey(0)
    kq, kk, kv, kp = jax.random.split(key, 4)
    queries = jax.random.normal(kq, (B, L, d_model), jnp.float32)
    keys_ = jax.random.normal(kk, (B, S, d_model), jnp.float32)
    values = jax.random.normal(kv, (B, S, d_model), jnp.float32)

    params = init_params(kp, d_model)

    fwd = jax.jit(partial(self_attention_forward, n_heads=n_heads))
    out, attn = fwd(params, queries, keys_, values)
    jax.block_until_ready((out, attn))

    assert out.shape == (B, L, d_model)
    assert attn.shape == (B, n_heads, L, S)

    # Pure-JAX f32 reference (loose tolerance: kernels use bf16 MXU inputs).
    def ref_forward(p, q_in, k_in, v_in):
        H, dk = n_heads, d_model // n_heads
        q = (q_in @ p["q"][0] + p["q"][1]).reshape(B, L, H, dk)
        k = (k_in @ p["k"][0] + p["k"][1]).reshape(B, S, H, dk)
        v = (v_in @ p["v"][0] + p["v"][1]).reshape(B, S, H, dk)
        s = jnp.einsum("blhd,bshd->bhls", q, k) / math.sqrt(dk)
        a = jax.nn.softmax(s, axis=-1)
        o = jnp.einsum("bhls,bshd->blhd", a, v).reshape(B, L, H * dk)
        return o @ p["o"][0] + p["o"][1], a

    ref_out, ref_attn = ref_forward(params, queries, keys_, values)
    np.testing.assert_allclose(np.asarray(out), np.asarray(ref_out),
                               atol=5e-2, rtol=5e-2)
    np.testing.assert_allclose(np.asarray(attn.astype(jnp.float32)),
                               np.asarray(ref_attn), atol=2e-2, rtol=5e-2)

    print("KERNEL_OK")
</pallas_src>

<mosaic_0001>
module attributes {stable_mosaic.version = 11 : i64} {
  func.func @_linear_kernel(%arg0: i32, %arg1: i32, %arg2: i32, %arg3: i32, %arg4: memref<1x8x32xf32, #tpu.memory_space<vmem>>, %arg5: memref<32x32xbf16, #tpu.memory_space<vmem>>, %arg6: memref<1x32xf32, #tpu.memory_space<vmem>>, %arg7: memref<1x8x32xbf16, #tpu.memory_space<vmem>>, %arg8: memref<8x32xf32, #tpu.memory_space<vmem>>) attributes {dimension_semantics = [#tpu.dimension_semantics<parallel>, #tpu.dimension_semantics<parallel>, #tpu.dimension_semantics<parallel>, #tpu.dimension_semantics<arbitrary>], iteration_bounds = array<i64: 2, 1, 1, 1>, scalar_prefetch = 0 : i64, scratch_operands = 1 : i64, tpu.core_type = #tpu.core_type<tc>, window_params = [{transform_indices = @transform_0, window_bounds = array<i64: 1, 8, 32>}, {transform_indices = @transform_1, window_bounds = array<i64: 32, 32>}, {transform_indices = @transform_2, window_bounds = array<i64: 1, 32>}, {transform_indices = @transform_3, window_bounds = array<i64: 1, 8, 32>}]} {
    %c0_i32 = arith.constant 0 : i32
    %0 = arith.cmpi eq, %arg3, %c0_i32 : i32
    %1 = arith.extui %0 : i1 to i32
    %c0_i32_0 = arith.constant 0 : i32
    %2 = arith.cmpi ne, %1, %c0_i32_0 : i32
    scf.if %2 {
      %cst_11 = arith.constant 0.000000e+00 : f32
      %14 = vector.broadcast %cst_11 : f32 to vector<8x32xf32>
      %c0_12 = arith.constant 0 : index
      %c0_13 = arith.constant 0 : index
      %15 = vector.load %arg8[%c0_12, %c0_13] : memref<8x32xf32, #tpu.memory_space<vmem>>, vector<8x32xf32>
      tpu.vector_store %arg8[%c0_12, %c0_13], %14 {strides = array<i32>} : memref<8x32xf32, #tpu.memory_space<vmem>>, vector<8x32xf32>,
    } else {
    }
    %c0 = arith.constant 0 : index
    %c0_1 = arith.constant 0 : index
    %3 = vector.load %arg8[%c0, %c0_1] : memref<8x32xf32, #tpu.memory_space<vmem>>, vector<8x32xf32>
    %c0_2 = arith.constant 0 : index
    %c0_3 = arith.constant 0 : index
    %c0_4 = arith.constant 0 : index
    %4 = vector.load %arg4[%c0_2, %c0_3, %c0_4] : memref<1x8x32xf32, #tpu.memory_space<vmem>>, vector<1x8x32xf32>
    %5 = vector.shape_cast %4 : vector<1x8x32xf32> to vector<8x32xf32>
    %6 = arith.truncf %5 : vector<8x32xf32> to vector<8x32xbf16>
    %c0_5 = arith.constant 0 : index
    %c0_6 = arith.constant 0 : index
    %7 = vector.load %arg5[%c0_5, %c0_6] : memref<32x32xbf16, #tpu.memory_space<vmem>>, vector<32x32xbf16>
    %cst = arith.constant dense<0.000000e+00> : vector<8x32xf32>
    %8 = tpu.matmul %6, %7, %cst {dimension_numbers = #tpu.dot_dimension_numbers<[1], [0], [0], [1], [0, 0, 1, 1], [], []>} : vector<8x32xbf16>, vector<32x32xbf16>, vector<8x32xf32> -> vector<8x32xf32>
    %9 = arith.addf %3, %8 : vector<8x32xf32>
    %c0_7 = arith.constant 0 : index
    %c0_8 = arith.constant 0 : index
    %10 = vector.load %arg8[%c0_7, %c0_8] : memref<8x32xf32, #tpu.memory_space<vmem>>, vector<8x32xf32>
    tpu.vector_store %arg8[%c0_7, %c0_8], %9 {strides = array<i32>} : memref<8x32xf32, #tpu.memory_space<vmem>>, vector<8x32xf32>,
    %c0_i32_9 = arith.constant 0 : i32
    %11 = arith.cmpi eq, %arg3, %c0_i32_9 : i32
    %12 = arith.extui %11 : i1 to i32
    %c0_i32_10 = arith.constant 0 : i32
    %13 = arith.cmpi ne, %12, %c0_i32_10 : i32
    scf.if %13 {
      %c0_11 = arith.constant 0 : index
      %c0_12 = arith.constant 0 : index
      %14 = vector.load %arg8[%c0_11, %c0_12] : memref<8x32xf32, #tpu.memory_space<vmem>>, vector<8x32xf32>
      %c0_13 = arith.constant 0 : index
      %c0_14 = arith.constant 0 : index
      %15 = vector.load %arg6[%c0_13, %c0_14] : memref<1x32xf32, #tpu.memory_space<vmem>>, vector<1x32xf32>
      %16 = vector.broadcast %15 : vector<1x32xf32> to vector<8x32xf32>
      %17 = arith.addf %14, %16 : vector<8x32xf32>
      %18 = arith.truncf %17 : vector<8x32xf32> to vector<8x32xbf16>
      %c0_15 = arith.constant 0 : index
      %c0_16 = arith.constant 0 : index
      %c0_17 = arith.constant 0 : index
      %19 = vector.load %arg7[%c0_15, %c0_16, %c0_17] : memref<1x8x32xbf16, #tpu.memory_space<vmem>>, vector<1x8x32xbf16>
      %20 = vector.shape_cast %19 : vector<1x8x32xbf16> to vector<8x32xbf16>
      %21 = vector.shape_cast %18 : vector<8x32xbf16> to vector<1x8x32xbf16>
      tpu.vector_store %arg7[%c0_15, %c0_16, %c0_17], %21 {strides = array<i32>} : memref<1x8x32xbf16, #tpu.memory_space<vmem>>, vector<1x8x32xbf16>,
    } else {
    }
    return
  }
  func.func @transform_0(%arg0: i32, %arg1: i32, %arg2: i32, %arg3: i32) -> (i32, i32, i32) {
    %c0_i32 = arith.constant 0 : i32
    return %arg0, %arg1, %arg3 : i32, i32, i32
  }
  func.func @transform_1(%arg0: i32, %arg1: i32, %arg2: i32, %arg3: i32) -> (i32, i32) {
    %c0_i32 = arith.constant 0 : i32
    return %arg3, %arg2 : i32, i32
  }
  func.func @transform_2(%arg0: i32, %arg1: i32, %arg2: i32, %arg3: i32) -> (i32, i32) {
    %c0_i32 = arith.constant 0 : i32
    %c0_i32_0 = arith.constant 0 : i32
    return %c0_i32, %arg2 : i32, i32
  }
  func.func @transform_3(%arg0: i32, %arg1: i32, %arg2: i32, %arg3: i32) -> (i32, i32, i32) {
    %c0_i32 = arith.constant 0 : i32
    return %arg0, %arg1, %arg2 : i32, i32, i32
  }
}

module attributes {stable_mosaic.version = 11 : i64} {
  func.func @_linear_kernel(%arg0: i32, %arg1: i32, %arg2: i32, %arg3: i32, %arg4: memref<1x8x32xbf16, #tpu.memory_space<vmem>>, %arg5: memref<32x32xbf16, #tpu.memory_space<vmem>>, %arg6: memref<1x32xf32, #tpu.memory_space<vmem>>, %arg7: memref<1x8x32xf32, #tpu.memory_space<vmem>>, %arg8: memref<8x32xf32, #tpu.memory_space<vmem>>) attributes {dimension_semantics = [#tpu.dimension_semantics<parallel>, #tpu.dimension_semantics<parallel>, #tpu.dimension_semantics<parallel>, #tpu.dimension_semantics<arbitrary>], iteration_bounds = array<i64: 2, 1, 1, 1>, scalar_prefetch = 0 : i64, scratch_operands = 1 : i64, tpu.core_type = #tpu.core_type<tc>, window_params = [{transform_indices = @transform_0, window_bounds = array<i64: 1, 8, 32>}, {transform_indices = @transform_1, window_bounds = array<i64: 32, 32>}, {transform_indices = @transform_2, window_bounds = array<i64: 1, 32>}, {transform_indices = @transform_3, window_bounds = array<i64: 1, 8, 32>}]} {
    %c0_i32 = arith.constant 0 : i32
    %0 = arith.cmpi eq, %arg3, %c0_i32 : i32
    %1 = arith.extui %0 : i1 to i32
    %c0_i32_0 = arith.constant 0 : i32
    %2 = arith.cmpi ne, %1, %c0_i32_0 : i32
    scf.if %2 {
      %cst_11 = arith.constant 0.000000e+00 : f32
      %13 = vector.broadcast %cst_11 : f32 to vector<8x32xf32>
      %c0_12 = arith.constant 0 : index
      %c0_13 = arith.constant 0 : index
      %14 = vector.load %arg8[%c0_12, %c0_13] : memref<8x32xf32, #tpu.memory_space<vmem>>, vector<8x32xf32>
      tpu.vector_store %arg8[%c0_12, %c0_13], %13 {strides = array<i32>} : memref<8x32xf32, #tpu.memory_space<vmem>>, vector<8x32xf32>,
    } else {
    }
    %c0 = arith.constant 0 : index
    %c0_1 = arith.constant 0 : index
    %3 = vector.load %arg8[%c0, %c0_1] : memref<8x32xf32, #tpu.memory_space<vmem>>, vector<8x32xf32>
    %c0_2 = arith.constant 0 : index
    %c0_3 = arith.constant 0 : index
    %c0_4 = arith.constant 0 : index
    %4 = vector.load %arg4[%c0_2, %c0_3, %c0_4] : memref<1x8x32xbf16, #tpu.memory_space<vmem>>, vector<1x8x32xbf16>
    %5 = vector.shape_cast %4 : vector<1x8x32xbf16> to vector<8x32xbf16>
    %c0_5 = arith.constant 0 : index
    %c0_6 = arith.constant 0 : index
    %6 = vector.load %arg5[%c0_5, %c0_6] : memref<32x32xbf16, #tpu.memory_space<vmem>>, vector<32x32xbf16>
    %cst = arith.constant dense<0.000000e+00> : vector<8x32xf32>
    %7 = tpu.matmul %5, %6, %cst {dimension_numbers = #tpu.dot_dimension_numbers<[1], [0], [0], [1], [0, 0, 1, 1], [], []>} : vector<8x32xbf16>, vector<32x32xbf16>, vector<8x32xf32> -> vector<8x32xf32>
    %8 = arith.addf %3, %7 : vector<8x32xf32>
    %c0_7 = arith.constant 0 : index
    %c0_8 = arith.constant 0 : index
    %9 = vector.load %arg8[%c0_7, %c0_8] : memref<8x32xf32, #tpu.memory_space<vmem>>, vector<8x32xf32>
    tpu.vector_store %arg8[%c0_7, %c0_8], %8 {strides = array<i32>} : memref<8x32xf32, #tpu.memory_space<vmem>>, vector<8x32xf32>,
    %c0_i32_9 = arith.constant 0 : i32
    %10 = arith.cmpi eq, %arg3, %c0_i32_9 : i32
    %11 = arith.extui %10 : i1 to i32
    %c0_i32_10 = arith.constant 0 : i32
    %12 = arith.cmpi ne, %11, %c0_i32_10 : i32
    scf.if %12 {
      %c0_11 = arith.constant 0 : index
      %c0_12 = arith.constant 0 : index
      %13 = vector.load %arg8[%c0_11, %c0_12] : memref<8x32xf32, #tpu.memory_space<vmem>>, vector<8x32xf32>
      %c0_13 = arith.constant 0 : index
      %c0_14 = arith.constant 0 : index
      %14 = vector.load %arg6[%c0_13, %c0_14] : memref<1x32xf32, #tpu.memory_space<vmem>>, vector<1x32xf32>
      %15 = vector.broadcast %14 : vector<1x32xf32> to vector<8x32xf32>
      %16 = arith.addf %13, %15 : vector<8x32xf32>
      %c0_15 = arith.constant 0 : index
      %c0_16 = arith.constant 0 : index
      %c0_17 = arith.constant 0 : index
      %17 = vector.load %arg7[%c0_15, %c0_16, %c0_17] : memref<1x8x32xf32, #tpu.memory_space<vmem>>, vector<1x8x32xf32>
      %18 = vector.shape_cast %17 : vector<1x8x32xf32> to vector<8x32xf32>
      %19 = vector.shape_cast %16 : vector<8x32xf32> to vector<1x8x32xf32>
      tpu.vector_store %arg7[%c0_15, %c0_16, %c0_17], %19 {strides = array<i32>} : memref<1x8x32xf32, #tpu.memory_space<vmem>>, vector<1x8x32xf32>,
    } else {
    }
    return
  }
  func.func @transform_0(%arg0: i32, %arg1: i32, %arg2: i32, %arg3: i32) -> (i32, i32, i32) {
    %c0_i32 = arith.constant 0 : i32
    return %arg0, %arg1, %arg3 : i32, i32, i32
  }
  func.func @transform_1(%arg0: i32, %arg1: i32, %arg2: i32, %arg3: i32) -> (i32, i32) {
    %c0_i32 = arith.constant 0 : i32
    return %arg3, %arg2 : i32, i32
  }
  func.func @transform_2(%arg0: i32, %arg1: i32, %arg2: i32, %arg3: i32) -> (i32, i32) {
    %c0_i32 = arith.constant 0 : i32
    %c0_i32_0 = arith.constant 0 : i32
    return %c0_i32, %arg2 : i32, i32
  }
  func.func @transform_3(%arg0: i32, %arg1: i32, %arg2: i32, %arg3: i32) -> (i32, i32, i32) {
    %c0_i32 = arith.constant 0 : i32
    return %arg0, %arg1, %arg2 : i32, i32, i32
  }
}

module attributes {stable_mosaic.version = 11 : i64} {
  func.func @_flash_attn_kernel(%arg0: i32, %arg1: i32, %arg2: i32, %arg3: memref<1x8x32xbf16, #tpu.memory_space<vmem>>, %arg4: memref<1x8x32xbf16, #tpu.memory_space<vmem>>, %arg5: memref<1x8x32xbf16, #tpu.memory_space<vmem>>, %arg6: memref<1x8x32xbf16, #tpu.memory_space<vmem>>, %arg7: memref<1x8x4xf32, #tpu.memory_space<vmem>>, %arg8: memref<8x4xf32, #tpu.memory_space<vmem>>, %arg9: memref<8x4xf32, #tpu.memory_space<vmem>>, %arg10: memref<8x32xf32, #tpu.memory_space<vmem>>) attributes {dimension_semantics = [#tpu.dimension_semantics<parallel>, #tpu.dimension_semantics<parallel>, #tpu.dimension_semantics<arbitrary>], iteration_bounds = array<i64: 2, 1, 1>, scalar_prefetch = 0 : i64, scratch_operands = 3 : i64, tpu.core_type = #tpu.core_type<tc>, window_params = [{transform_indices = @transform_0, window_bounds = array<i64: 1, 8, 32>}, {transform_indices = @transform_1, window_bounds = array<i64: 1, 8, 32>}, {transform_indices = @transform_2, window_bounds = array<i64: 1, 8, 32>}, {transform_indices = @transform_3, window_bounds = array<i64: 1, 8, 32>}, {transform_indices = @transform_4, window_bounds = array<i64: 1, 8, 4>}]} {
    %c0_i32 = arith.constant 0 : i32
    %0 = arith.cmpi eq, %arg2, %c0_i32 : i32
    %1 = arith.extui %0 : i1 to i32
    %c0_i32_0 = arith.constant 0 : i32
    %2 = arith.cmpi ne, %1, %c0_i32_0 : i32
    scf.if %2 {
      %cst_38 = arith.constant 0xFF800000 : f32
      %116 = vector.broadcast %cst_38 : f32 to vector<8x4xf32>
      %c0_39 = arith.constant 0 : index
      %c0_40 = arith.constant 0 : index
      %117 = vector.load %arg8[%c0_39, %c0_40] : memref<8x4xf32, #tpu.memory_space<vmem>>, vector<8x4xf32>
      tpu.vector_store %arg8[%c0_39, %c0_40], %116 {strides = array<i32>} : memref<8x4xf32, #tpu.memory_space<vmem>>, vector<8x4xf32>,
      %cst_41 = arith.constant 0.000000e+00 : f32
      %118 = vector.broadcast %cst_41 : f32 to vector<8x4xf32>
      %c0_42 = arith.constant 0 : index
      %c0_43 = arith.constant 0 : index
      %119 = vector.load %arg9[%c0_42, %c0_43] : memref<8x4xf32, #tpu.memory_space<vmem>>, vector<8x4xf32>
      tpu.vector_store %arg9[%c0_42, %c0_43], %118 {strides = array<i32>} : memref<8x4xf32, #tpu.memory_space<vmem>>, vector<8x4xf32>,
      %cst_44 = arith.constant 0.000000e+00 : f32
      %120 = vector.broadcast %cst_44 : f32 to vector<8x32xf32>
      %c0_45 = arith.constant 0 : index
      %c0_46 = arith.constant 0 : index
      %121 = vector.load %arg10[%c0_45, %c0_46] : memref<8x32xf32, #tpu.memory_space<vmem>>, vector<8x32xf32>
      tpu.vector_store %arg10[%c0_45, %c0_46], %120 {strides = array<i32>} : memref<8x32xf32, #tpu.memory_space<vmem>>, vector<8x32xf32>,
    } else {
    }
    %c0 = arith.constant 0 : index
    %c0_1 = arith.constant 0 : index
    %c0_2 = arith.constant 0 : index
    %3 = vector.load %arg3[%c0, %c0_1, %c0_2] : memref<1x8x32xbf16, #tpu.memory_space<vmem>>, vector<1x8x32xbf16>
    %4 = vector.shape_cast %3 : vector<1x8x32xbf16> to vector<8x32xbf16>
    %c0_3 = arith.constant 0 : index
    %c0_4 = arith.constant 0 : index
    %c0_5 = arith.constant 0 : index
    %5 = vector.load %arg4[%c0_3, %c0_4, %c0_5] : memref<1x8x32xbf16, #tpu.memory_space<vmem>>, vector<1x8x32xbf16>
    %6 = vector.shape_cast %5 : vector<1x8x32xbf16> to vector<8x32xbf16>
    %c0_6 = arith.constant 0 : index
    %c0_7 = arith.constant 0 : index
    %c0_8 = arith.constant 0 : index
    %7 = vector.load %arg5[%c0_6, %c0_7, %c0_8] : memref<1x8x32xbf16, #tpu.memory_space<vmem>>, vector<1x8x32xbf16>
    %8 = vector.shape_cast %7 : vector<1x8x32xbf16> to vector<8x32xbf16>
    %c0_9 = arith.constant 0 : index
    %c0_10 = arith.constant 0 : index
    %9 = vector.load %arg8[%c0_9, %c0_10] : memref<8x4xf32, #tpu.memory_space<vmem>>, vector<8x4xf32>
    %c0_11 = arith.constant 0 : index
    %c0_12 = arith.constant 0 : index
    %10 = vector.load %arg9[%c0_11, %c0_12] : memref<8x4xf32, #tpu.memory_space<vmem>>, vector<8x4xf32>
    %11 = vector.extract_strided_slice %4 {offsets = [0, 0], sizes = [8, 8], strides = [1, 1]} : vector<8x32xbf16> to vector<8x8xbf16>
    %12 = vector.extract_strided_slice %6 {offsets = [0, 0], sizes = [8, 8], strides = [1, 1]} : vector<8x32xbf16> to vector<8x8xbf16>
    %cst = arith.constant dense<0.000000e+00> : vector<8x8xf32>
    %13 = tpu.matmul %11, %12, %cst {dimension_numbers = #tpu.dot_dimension_numbers<[1], [1], [0], [0], [0, 0, 1, 0], [], []>} : vector<8x8xbf16>, vector<8x8xbf16>, vector<8x8xf32> -> vector<8x8xf32>
    %14 = vector.extract_strided_slice %9 {offsets = [0, 0], sizes = [8, 1], strides = [1, 1]} : vector<8x4xf32> to vector<8x1xf32>
    %cst_13 = arith.constant dense<0xFF800000> : vector<8xf32>
    %15 = vector.multi_reduction <maximumf>, %13, %cst_13 [1] : vector<8x8xf32> to vector<8xf32>
    %16 = vector.shape_cast %15 : vector<8xf32> to vector<8x1xf32>
    %17 = arith.maximumf %14, %16 : vector<8x1xf32>
    %18 = arith.subf %14, %17 : vector<8x1xf32>
    %19 = math.exp %18 : vector<8x1xf32>
    %20 = vector.broadcast %17 : vector<8x1xf32> to vector<8x8xf32>
    %21 = arith.subf %13, %20 : vector<8x8xf32>
    %22 = arith.truncf %21 : vector<8x8xf32> to vector<8x8xbf16>
    %23 = math.exp %22 : vector<8x8xbf16>
    %24 = vector.extract_strided_slice %10 {offsets = [0, 0], sizes = [8, 1], strides = [1, 1]} : vector<8x4xf32> to vector<8x1xf32>
    %25 = arith.mulf %19, %24 : vector<8x1xf32>
    %26 = arith.extf %23 : vector<8x8xbf16> to vector<8x8xf32>
    %cst_14 = arith.constant dense<0.000000e+00> : vector<8xf32>
    %27 = vector.multi_reduction <add>, %26, %cst_14 [1] : vector<8x8xf32> to vector<8xf32>
    %28 = vector.shape_cast %27 : vector<8xf32> to vector<8x1xf32>
    %29 = arith.addf %25, %28 : vector<8x1xf32>
    %30 = vector.extract_strided_slice %8 {offsets = [0, 0], sizes = [8, 8], strides = [1, 1]} : vector<8x32xbf16> to vector<8x8xbf16>
    %cst_15 = arith.constant dense<0.000000e+00> : vector<8x8xf32>
    %31 = tpu.matmul %23, %30, %cst_15 {dimension_numbers = #tpu.dot_dimension_numbers<[1], [0], [0], [1], [0, 0, 1, 1], [], []>} : vector<8x8xbf16>, vector<8x8xbf16>, vector<8x8xf32> -> vector<8x8xf32>
    %32 = vector.shape_cast %19 : vector<8x1xf32> to vector<8x1xf32>
    %33 = vector.broadcast %32 : vector<8x1xf32> to vector<8x8xf32>
    %34 = vector.extract_strided_slice %4 {offsets = [0, 8], sizes = [8, 8], strides = [1, 1]} : vector<8x32xbf16> to vector<8x8xbf16>
    %35 = vector.extract_strided_slice %6 {offsets = [0, 8], sizes = [8, 8], strides = [1, 1]} : vector<8x32xbf16> to vector<8x8xbf16>
    %cst_16 = arith.constant dense<0.000000e+00> : vector<8x8xf32>
    %36 = tpu.matmul %34, %35, %cst_16 {dimension_numbers = #tpu.dot_dimension_numbers<[1], [1], [0], [0], [0, 0, 1, 0], [], []>} : vector<8x8xbf16>, vector<8x8xbf16>, vector<8x8xf32> -> vector<8x8xf32>
    %37 = vector.extract_strided_slice %9 {offsets = [0, 1], sizes = [8, 1], strides = [1, 1]} : vector<8x4xf32> to vector<8x1xf32>
    %cst_17 = arith.constant dense<0xFF800000> : vector<8xf32>
    %38 = vector.multi_reduction <maximumf>, %36, %cst_17 [1] : vector<8x8xf32> to vector<8xf32>
    %39 = vector.shape_cast %38 : vector<8xf32> to vector<8x1xf32>
    %40 = arith.maximumf %37, %39 : vector<8x1xf32>
    %41 = arith.subf %37, %40 : vector<8x1xf32>
    %42 = math.exp %41 : vector<8x1xf32>
    %43 = vector.broadcast %40 : vector<8x1xf32> to vector<8x8xf32>
    %44 = arith.subf %36, %43 : vector<8x8xf32>
    %45 = arith.truncf %44 : vector<8x8xf32> to vector<8x8xbf16>
    %46 = math.exp %45 : vector<8x8xbf16>
    %47 = vector.extract_strided_slice %10 {offsets = [0, 1], sizes = [8, 1], strides = [1, 1]} : vector<8x4xf32> to vector<8x1xf32>
    %48 = arith.mulf %42, %47 : vector<8x1xf32>
    %49 = arith.extf %46 : vector<8x8xbf16> to vector<8x8xf32>
    %cst_18 = arith.constant dense<0.000000e+00> : vector<8xf32>
    %50 = vector.multi_reduction <add>, %49, %cst_18 [1] : vector<8x8xf32> to vector<8xf32>
    %51 = vector.shape_cast %50 : vector<8xf32> to vector<8x1xf32>
    %52 = arith.addf %48, %51 : vector<8x1xf32>
    %53 = vector.extract_strided_slice %8 {offsets = [0, 8], sizes = [8, 8], strides = [1, 1]} : vector<8x32xbf16> to vector<8x8xbf16>
    %cst_19 = arith.constant dense<0.000000e+00> : vector<8x8xf32>
    %54 = tpu.matmul %46, %53, %cst_19 {dimension_numbers = #tpu.dot_dimension_numbers<[1], [0], [0], [1], [0, 0, 1, 1], [], []>} : vector<8x8xbf16>, vector<8x8xbf16>, vector<8x8xf32> -> vector<8x8xf32>
    %55 = vector.shape_cast %42 : vector<8x1xf32> to vector<8x1xf32>
    %56 = vector.broadcast %55 : vector<8x1xf32> to vector<8x8xf32>
    %57 = vector.extract_strided_slice %4 {offsets = [0, 16], sizes = [8, 8], strides = [1, 1]} : vector<8x32xbf16> to vector<8x8xbf16>
    %58 = vector.extract_strided_slice %6 {offsets = [0, 16], sizes = [8, 8], strides = [1, 1]} : vector<8x32xbf16> to vector<8x8xbf16>
    %cst_20 = arith.constant dense<0.000000e+00> : vector<8x8xf32>
    %59 = tpu.matmul %57, %58, %cst_20 {dimension_numbers = #tpu.dot_dimension_numbers<[1], [1], [0], [0], [0, 0, 1, 0], [], []>} : vector<8x8xbf16>, vector<8x8xbf16>, vector<8x8xf32> -> vector<8x8xf32>
    %60 = vector.extract_strided_slice %9 {offsets = [0, 2], sizes = [8, 1], strides = [1, 1]} : vector<8x4xf32> to vector<8x1xf32>
    %cst_21 = arith.constant dense<0xFF800000> : vector<8xf32>
    %61 = vector.multi_reduction <maximumf>, %59, %cst_21 [1] : vector<8x8xf32> to vector<8xf32>
    %62 = vector.shape_cast %61 : vector<8xf32> to vector<8x1xf32>
    %63 = arith.maximumf %60, %62 : vector<8x1xf32>
    %64 = arith.subf %60, %63 : vector<8x1xf32>
    %65 = math.exp %64 : vector<8x1xf32>
    %66 = vector.broadcast %63 : vector<8x1xf32> to vector<8x8xf32>
    %67 = arith.subf %59, %66 : vector<8x8xf32>
    %68 = arith.truncf %67 : vector<8x8xf32> to vector<8x8xbf16>
    %69 = math.exp %68 : vector<8x8xbf16>
    %70 = vector.extract_strided_slice %10 {offsets = [0, 2], sizes = [8, 1], strides = [1, 1]} : vector<8x4xf32> to vector<8x1xf32>
    %71 = arith.mulf %65, %70 : vector<8x1xf32>
    %72 = arith.extf %69 : vector<8x8xbf16> to vector<8x8xf32>
    %cst_22 = arith.constant dense<0.000000e+00> : vector<8xf32>
    %73 = vector.multi_reduction <add>, %72, %cst_22 [1] : vector<8x8xf32> to vector<8xf32>
    %74 = vector.shape_cast %73 : vector<8xf32> to vector<8x1xf32>
    %75 = arith.addf %71, %74 : vector<8x1xf32>
    %76 = vector.extract_strided_slice %8 {offsets = [0, 16], sizes = [8, 8], strides = [1, 1]} : vector<8x32xbf16> to vector<8x8xbf16>
    %cst_23 = arith.constant dense<0.000000e+00> : vector<8x8xf32>
    %77 = tpu.matmul %69, %76, %cst_23 {dimension_numbers = #tpu.dot_dimension_numbers<[1], [0], [0], [1], [0, 0, 1, 1], [], []>} : vector<8x8xbf16>, vector<8x8xbf16>, vector<8x8xf32> -> vector<8x8xf32>
    %78 = vector.shape_cast %65 : vector<8x1xf32> to vector<8x1xf32>
    %79 = vector.broadcast %78 : vector<8x1xf32> to vector<8x8xf32>
    %80 = vector.extract_strided_slice %4 {offsets = [0, 24], sizes = [8, 8], strides = [1, 1]} : vector<8x32xbf16> to vector<8x8xbf16>
    %81 = vector.extract_strided_slice %6 {offsets = [0, 24], sizes = [8, 8], strides = [1, 1]} : vector<8x32xbf16> to vector<8x8xbf16>
    %cst_24 = arith.constant dense<0.000000e+00> : vector<8x8xf32>
    %82 = tpu.matmul %80, %81, %cst_24 {dimension_numbers = #tpu.dot_dimension_numbers<[1], [1], [0], [0], [0, 0, 1, 0], [], []>} : vector<8x8xbf16>, vector<8x8xbf16>, vector<8x8xf32> -> vector<8x8xf32>
    %83 = vector.extract_strided_slice %9 {offsets = [0, 3], sizes = [8, 1], strides = [1, 1]} : vector<8x4xf32> to vector<8x1xf32>
    %cst_25 = arith.constant dense<0xFF800000> : vector<8xf32>
    %84 = vector.multi_reduction <maximumf>, %82, %cst_25 [1] : vector<8x8xf32> to vector<8xf32>
    %85 = vector.shape_cast %84 : vector<8xf32> to vector<8x1xf32>
    %86 = arith.maximumf %83, %85 : vector<8x1xf32>
    %87 = arith.subf %83, %86 : vector<8x1xf32>
    %88 = math.exp %87 : vector<8x1xf32>
    %89 = vector.broadcast %86 : vector<8x1xf32> to vector<8x8xf32>
    %90 = arith.subf %82, %89 : vector<8x8xf32>
    %91 = arith.truncf %90 : vector<8x8xf32> to vector<8x8xbf16>
    %92 = math.exp %91 : vector<8x8xbf16>
    %93 = vector.extract_strided_slice %10 {offsets = [0, 3], sizes = [8, 1], strides = [1, 1]} : vector<8x4xf32> to vector<8x1xf32>
    %94 = arith.mulf %88, %93 : vector<8x1xf32>
    %95 = arith.extf %92 : vector<8x8xbf16> to vector<8x8xf32>
    %cst_26 = arith.constant dense<0.000000e+00> : vector<8xf32>
    %96 = vector.multi_reduction <add>, %95, %cst_26 [1] : vector<8x8xf32> to vector<8xf32>
    %97 = vector.shape_cast %96 : vector<8xf32> to vector<8x1xf32>
    %98 = arith.addf %94, %97 : vector<8x1xf32>
    %99 = vector.extract_strided_slice %8 {offsets = [0, 24], sizes = [8, 8], strides = [1, 1]} : vector<8x32xbf16> to vector<8x8xbf16>
    %cst_27 = arith.constant dense<0.000000e+00> : vector<8x8xf32>
    %100 = tpu.matmul %92, %99, %cst_27 {dimension_numbers = #tpu.dot_dimension_numbers<[1], [0], [0], [1], [0, 0, 1, 1], [], []>} : vector<8x8xbf16>, vector<8x8xbf16>, vector<8x8xf32> -> vector<8x8xf32>
    %101 = vector.shape_cast %88 : vector<8x1xf32> to vector<8x1xf32>
    %102 = vector.broadcast %101 : vector<8x1xf32> to vector<8x8xf32>
    %103 = tpu.concatenate %17, %40, %63, %86 in 1 : vector<8x1xf32>, vector<8x1xf32>, vector<8x1xf32>, vector<8x1xf32> -> vector<8x4xf32>
    %c0_28 = arith.constant 0 : index
    %c0_29 = arith.constant 0 : index
    %104 = vector.load %arg8[%c0_28, %c0_29] : memref<8x4xf32, #tpu.memory_space<vmem>>, vector<8x4xf32>
    tpu.vector_store %arg8[%c0_28, %c0_29], %103 {strides = array<i32>} : memref<8x4xf32, #tpu.memory_space<vmem>>, vector<8x4xf32>,
    %105 = tpu.concatenate %29, %52, %75, %98 in 1 : vector<8x1xf32>, vector<8x1xf32>, vector<8x1xf32>, vector<8x1xf32> -> vector<8x4xf32>
    %c0_30 = arith.constant 0 : index
    %c0_31 = arith.constant 0 : index
    %106 = vector.load %arg9[%c0_30, %c0_31] : memref<8x4xf32, #tpu.memory_space<vmem>>, vector<8x4xf32>
    tpu.vector_store %arg9[%c0_30, %c0_31], %105 {strides = array<i32>} : memref<8x4xf32, #tpu.memory_space<vmem>>, vector<8x4xf32>,
    %107 = tpu.concatenate %33, %56, %79, %102 in 1 : vector<8x8xf32>, vector<8x8xf32>, vector<8x8xf32>, vector<8x8xf32> -> vector<8x32xf32>
    %c0_32 = arith.constant 0 : index
    %c0_33 = arith.constant 0 : index
    %108 = vector.load %arg10[%c0_32, %c0_33] : memref<8x32xf32, #tpu.memory_space<vmem>>, vector<8x32xf32>
    %109 = arith.mulf %107, %108 : vector<8x32xf32>
    %110 = tpu.concatenate %31, %54, %77, %100 in 1 : vector<8x8xf32>, vector<8x8xf32>, vector<8x8xf32>, vector<8x8xf32> -> vector<8x32xf32>
    %111 = arith.addf %109, %110 : vector<8x32xf32>
    %c0_34 = arith.constant 0 : index
    %c0_35 = arith.constant 0 : index
    %112 = vector.load %arg10[%c0_34, %c0_35] : memref<8x32xf32, #tpu.memory_space<vmem>>, vector<8x32xf32>
    tpu.vector_store %arg10[%c0_34, %c0_35], %111 {strides = array<i32>} : memref<8x32xf32, #tpu.memory_space<vmem>>, vector<8x32xf32>,
    %c0_i32_36 = arith.constant 0 : i32
    %113 = arith.cmpi eq, %arg2, %c0_i32_36 : i32
    %114 = arith.extui %113 : i1 to i32
    %c0_i32_37 = arith.constant 0 : i32
    %115 = arith.cmpi ne, %114, %c0_i32_37 : i32
    scf.if %115 {
      %c0_38 = arith.constant 0 : index
      %c0_39 = arith.constant 0 : index
      %116 = vector.load %arg9[%c0_38, %c0_39] : memref<8x4xf32, #tpu.memory_space<vmem>>, vector<8x4xf32>
      %117 = tpu.reciprocal %116 {approx = true} : vector<8x4xf32> -> vector<8x4xf32>
      %118 = vector.extract_strided_slice %117 {offsets = [0, 0], sizes = [8, 1], strides = [1, 1]} : vector<8x4xf32> to vector<8x1xf32>
      %119 = vector.shape_cast %118 : vector<8x1xf32> to vector<8x1xf32>
      %120 = vector.broadcast %119 : vector<8x1xf32> to vector<8x8xf32>
      %121 = vector.extract_strided_slice %117 {offsets = [0, 1], sizes = [8, 1], strides = [1, 1]} : vector<8x4xf32> to vector<8x1xf32>
      %122 = vector.shape_cast %121 : vector<8x1xf32> to vector<8x1xf32>
      %123 = vector.broadcast %122 : vector<8x1xf32> to vector<8x8xf32>
      %124 = vector.extract_strided_slice %117 {offsets = [0, 2], sizes = [8, 1], strides = [1, 1]} : vector<8x4xf32> to vector<8x1xf32>
      %125 = vector.shape_cast %124 : vector<8x1xf32> to vector<8x1xf32>
      %126 = vector.broadcast %125 : vector<8x1xf32> to vector<8x8xf32>
      %127 = vector.extract_strided_slice %117 {offsets = [0, 3], sizes = [8, 1], strides = [1, 1]} : vector<8x4xf32> to vector<8x1xf32>
      %128 = vector.shape_cast %127 : vector<8x1xf32> to vector<8x1xf32>
      %129 = vector.broadcast %128 : vector<8x1xf32> to vector<8x8xf32>
      %130 = tpu.concatenate %120, %123, %126, %129 in 1 : vector<8x8xf32>, vector<8x8xf32>, vector<8x8xf32>, vector<8x8xf32> -> vector<8x32xf32>
      %c0_40 = arith.constant 0 : index
      %c0_41 = arith.constant 0 : index
      %131 = vector.load %arg10[%c0_40, %c0_41] : memref<8x32xf32, #tpu.memory_space<vmem>>, vector<8x32xf32>
      %132 = arith.mulf %131, %130 : vector<8x32xf32>
      %133 = arith.truncf %132 : vector<8x32xf32> to vector<8x32xbf16>
      %c0_42 = arith.constant 0 : index
      %c0_43 = arith.constant 0 : index
      %c0_44 = arith.constant 0 : index
      %134 = vector.load %arg6[%c0_42, %c0_43, %c0_44] : memref<1x8x32xbf16, #tpu.memory_space<vmem>>, vector<1x8x32xbf16>
      %135 = vector.shape_cast %134 : vector<1x8x32xbf16> to vector<8x32xbf16>
      %136 = vector.shape_cast %133 : vector<8x32xbf16> to vector<1x8x32xbf16>
      tpu.vector_store %arg6[%c0_42, %c0_43, %c0_44], %136 {strides = array<i32>} : memref<1x8x32xbf16, #tpu.memory_space<vmem>>, vector<1x8x32xbf16>,
      %c0_45 = arith.constant 0 : index
      %c0_46 = arith.constant 0 : index
      %137 = vector.load %arg8[%c0_45, %c0_46] : memref<8x4xf32, #tpu.memory_space<vmem>>, vector<8x4xf32>
      %138 = math.log %116 : vector<8x4xf32>
      %139 = arith.addf %137, %138 : vector<8x4xf32>
      %c0_47 = arith.constant 0 : index
      %c0_48 = arith.constant 0 : index
      %c0_49 = arith.constant 0 : index
      %140 = vector.load %arg7[%c0_47, %c0_48, %c0_49] : memref<1x8x4xf32, #tpu.memory_space<vmem>>, vector<1x8x4xf32>
      %141 = vector.shape_cast %140 : vector<1x8x4xf32> to vector<8x4xf32>
      %142 = vector.shape_cast %139 : vector<8x4xf32> to vector<1x8x4xf32>
      tpu.vector_store %arg7[%c0_47, %c0_48, %c0_49], %142 {strides = array<i32>} : memref<1x8x4xf32, #tpu.memory_space<vmem>>, vector<1x8x4xf32>,
    } else {
    }
    return
  }
  func.func @transform_0(%arg0: i32, %arg1: i32, %arg2: i32) -> (i32, i32, i32) {
    %c0_i32 = arith.constant 0 : i32
    %c0_i32_0 = arith.constant 0 : i32
    return %arg0, %arg1, %c0_i32 : i32, i32, i32
  }
  func.func @transform_1(%arg0: i32, %arg1: i32, %arg2: i32) -> (i32, i32, i32) {
    %c0_i32 = arith.constant 0 : i32
    %c0_i32_0 = arith.constant 0 : i32
    return %arg0, %arg2, %c0_i32 : i32, i32, i32
  }
  func.func @transform_2(%arg0: i32, %arg1: i32, %arg2: i32) -> (i32, i32, i32) {
    %c0_i32 = arith.constant 0 : i32
    %c0_i32_0 = arith.constant 0 : i32
    return %arg0, %arg2, %c0_i32 : i32, i32, i32
  }
  func.func @transform_3(%arg0: i32, %arg1: i32, %arg2: i32) -> (i32, i32, i32) {
    %c0_i32 = arith.constant 0 : i32
    %c0_i32_0 = arith.constant 0 : i32
    return %arg0, %arg1, %c0_i32 : i32, i32, i32
  }
  func.func @transform_4(%arg0: i32, %arg1: i32, %arg2: i32) -> (i32, i32, i32) {
    %c0_i32 = arith.constant 0 : i32
    %c0_i32_0 = arith.constant 0 : i32
    return %arg0, %arg1, %c0_i32 : i32, i32, i32
  }
}

module attributes {stable_mosaic.version = 11 : i64} {
  func.func @_attn_weights_kernel(%arg0: i32, %arg1: i32, %arg2: i32, %arg3: memref<1x8x32xbf16, #tpu.memory_space<vmem>>, %arg4: memref<1x8x32xbf16, #tpu.memory_space<vmem>>, %arg5: memref<1x8x4xf32, #tpu.memory_space<vmem>>, %arg6: memref<1x4x8x8xbf16, #tpu.memory_space<vmem>>) attributes {dimension_semantics = [#tpu.dimension_semantics<parallel>, #tpu.dimension_semantics<parallel>, #tpu.dimension_semantics<parallel>], iteration_bounds = array<i64: 2, 1, 1>, scalar_prefetch = 0 : i64, scratch_operands = 0 : i64, tpu.core_type = #tpu.core_type<tc>, window_params = [{transform_indices = @transform_0, window_bounds = array<i64: 1, 8, 32>}, {transform_indices = @transform_1, window_bounds = array<i64: 1, 8, 32>}, {transform_indices = @transform_2, window_bounds = array<i64: 1, 8, 4>}, {transform_indices = @transform_3, window_bounds = array<i64: 1, 4, 8, 8>}]} {
    %c0 = arith.constant 0 : index
    %c0_0 = arith.constant 0 : index
    %c0_1 = arith.constant 0 : index
    %0 = vector.load %arg3[%c0, %c0_0, %c0_1] : memref<1x8x32xbf16, #tpu.memory_space<vmem>>, vector<1x8x32xbf16>
    %1 = vector.shape_cast %0 : vector<1x8x32xbf16> to vector<8x32xbf16>
    %c0_2 = arith.constant 0 : index
    %c0_3 = arith.constant 0 : index
    %c0_4 = arith.constant 0 : index
    %2 = vector.load %arg4[%c0_2, %c0_3, %c0_4] : memref<1x8x32xbf16, #tpu.memory_space<vmem>>, vector<1x8x32xbf16>
    %3 = vector.shape_cast %2 : vector<1x8x32xbf16> to vector<8x32xbf16>
    %c0_5 = arith.constant 0 : index
    %c0_6 = arith.constant 0 : index
    %c0_7 = arith.constant 0 : index
    %4 = vector.load %arg5[%c0_5, %c0_6, %c0_7] : memref<1x8x4xf32, #tpu.memory_space<vmem>>, vector<1x8x4xf32>
    %5 = vector.shape_cast %4 : vector<1x8x4xf32> to vector<8x4xf32>
    %6 = vector.extract_strided_slice %1 {offsets = [0, 0], sizes = [8, 8], strides = [1, 1]} : vector<8x32xbf16> to vector<8x8xbf16>
    %7 = vector.extract_strided_slice %3 {offsets = [0, 0], sizes = [8, 8], strides = [1, 1]} : vector<8x32xbf16> to vector<8x8xbf16>
    %cst = arith.constant dense<0.000000e+00> : vector<8x8xf32>
    %8 = tpu.matmul %6, %7, %cst {dimension_numbers = #tpu.dot_dimension_numbers<[1], [1], [0], [0], [0, 0, 1, 0], [], []>} : vector<8x8xbf16>, vector<8x8xbf16>, vector<8x8xf32> -> vector<8x8xf32>
    %9 = vector.extract_strided_slice %5 {offsets = [0, 0], sizes = [8, 1], strides = [1, 1]} : vector<8x4xf32> to vector<8x1xf32>
    %10 = vector.broadcast %9 : vector<8x1xf32> to vector<8x8xf32>
    %11 = arith.subf %8, %10 : vector<8x8xf32>
    %12 = math.exp %11 : vector<8x8xf32>
    %13 = arith.truncf %12 : vector<8x8xf32> to vector<8x8xbf16>
    %c0_8 = arith.constant 0 : index
    %c0_9 = arith.constant 0 : index
    %c0_10 = arith.constant 0 : index
    %c0_11 = arith.constant 0 : index
    %14 = vector.load %arg6[%c0_8, %c0_9, %c0_10, %c0_11] : memref<1x4x8x8xbf16, #tpu.memory_space<vmem>>, vector<1x1x8x8xbf16>
    %15 = vector.shape_cast %14 : vector<1x1x8x8xbf16> to vector<8x8xbf16>
    %16 = vector.shape_cast %13 : vector<8x8xbf16> to vector<1x1x8x8xbf16>
    tpu.vector_store %arg6[%c0_8, %c0_9, %c0_10, %c0_11], %16 {strides = array<i32>} : memref<1x4x8x8xbf16, #tpu.memory_space<vmem>>, vector<1x1x8x8xbf16>,
    %17 = vector.extract_strided_slice %1 {offsets = [0, 8], sizes = [8, 8], strides = [1, 1]} : vector<8x32xbf16> to vector<8x8xbf16>
    %18 = vector.extract_strided_slice %3 {offsets = [0, 8], sizes = [8, 8], strides = [1, 1]} : vector<8x32xbf16> to vector<8x8xbf16>
    %cst_12 = arith.constant dense<0.000000e+00> : vector<8x8xf32>
    %19 = tpu.matmul %17, %18, %cst_12 {dimension_numbers = #tpu.dot_dimension_numbers<[1], [1], [0], [0], [0, 0, 1, 0], [], []>} : vector<8x8xbf16>, vector<8x8xbf16>, vector<8x8xf32> -> vector<8x8xf32>
    %20 = vector.extract_strided_slice %5 {offsets = [0, 1], sizes = [8, 1], strides = [1, 1]} : vector<8x4xf32> to vector<8x1xf32>
    %21 = vector.broadcast %20 : vector<8x1xf32> to vector<8x8xf32>
    %22 = arith.subf %19, %21 : vector<8x8xf32>
    %23 = math.exp %22 : vector<8x8xf32>
    %24 = arith.truncf %23 : vector<8x8xf32> to vector<8x8xbf16>
    %c0_13 = arith.constant 0 : index
    %c1 = arith.constant 1 : index
    %c0_14 = arith.constant 0 : index
    %c0_15 = arith.constant 0 : index
    %25 = vector.load %arg6[%c0_13, %c1, %c0_14, %c0_15] : memref<1x4x8x8xbf16, #tpu.memory_space<vmem>>, vector<1x1x8x8xbf16>
    %26 = vector.shape_cast %25 : vector<1x1x8x8xbf16> to vector<8x8xbf16>
    %27 = vector.shape_cast %24 : vector<8x8xbf16> to vector<1x1x8x8xbf16>
    tpu.vector_store %arg6[%c0_13, %c1, %c0_14, %c0_15], %27 {strides = array<i32>} : memref<1x4x8x8xbf16, #tpu.memory_space<vmem>>, vector<1x1x8x8xbf16>,
    %28 = vector.extract_strided_slice %1 {offsets = [0, 16], sizes = [8, 8], strides = [1, 1]} : vector<8x32xbf16> to vector<8x8xbf16>
    %29 = vector.extract_strided_slice %3 {offsets = [0, 16], sizes = [8, 8], strides = [1, 1]} : vector<8x32xbf16> to vector<8x8xbf16>
    %cst_16 = arith.constant dense<0.000000e+00> : vector<8x8xf32>
    %30 = tpu.matmul %28, %29, %cst_16 {dimension_numbers = #tpu.dot_dimension_numbers<[1], [1], [0], [0], [0, 0, 1, 0], [], []>} : vector<8x8xbf16>, vector<8x8xbf16>, vector<8x8xf32> -> vector<8x8xf32>
    %31 = vector.extract_strided_slice %5 {offsets = [0, 2], sizes = [8, 1], strides = [1, 1]} : vector<8x4xf32> to vector<8x1xf32>
    %32 = vector.broadcast %31 : vector<8x1xf32> to vector<8x8xf32>
    %33 = arith.subf %30, %32 : vector<8x8xf32>
    %34 = math.exp %33 : vector<8x8xf32>
    %35 = arith.truncf %34 : vector<8x8xf32> to vector<8x8xbf16>
    %c0_17 = arith.constant 0 : index
    %c2 = arith.constant 2 : index
    %c0_18 = arith.constant 0 : index
    %c0_19 = arith.constant 0 : index
    %36 = vector.load %arg6[%c0_17, %c2, %c0_18, %c0_19] : memref<1x4x8x8xbf16, #tpu.memory_space<vmem>>, vector<1x1x8x8xbf16>
    %37 = vector.shape_cast %36 : vector<1x1x8x8xbf16> to vector<8x8xbf16>
    %38 = vector.shape_cast %35 : vector<8x8xbf16> to vector<1x1x8x8xbf16>
    tpu.vector_store %arg6[%c0_17, %c2, %c0_18, %c0_19], %38 {strides = array<i32>} : memref<1x4x8x8xbf16, #tpu.memory_space<vmem>>, vector<1x1x8x8xbf16>,
    %39 = vector.extract_strided_slice %1 {offsets = [0, 24], sizes = [8, 8], strides = [1, 1]} : vector<8x32xbf16> to vector<8x8xbf16>
    %40 = vector.extract_strided_slice %3 {offsets = [0, 24], sizes = [8, 8], strides = [1, 1]} : vector<8x32xbf16> to vector<8x8xbf16>
    %cst_20 = arith.constant dense<0.000000e+00> : vector<8x8xf32>
    %41 = tpu.matmul %39, %40, %cst_20 {dimension_numbers = #tpu.dot_dimension_numbers<[1], [1], [0], [0], [0, 0, 1, 0], [], []>} : vector<8x8xbf16>, vector<8x8xbf16>, vector<8x8xf32> -> vector<8x8xf32>
    %42 = vector.extract_strided_slice %5 {offsets = [0, 3], sizes = [8, 1], strides = [1, 1]} : vector<8x4xf32> to vector<8x1xf32>
    %43 = vector.broadcast %42 : vector<8x1xf32> to vector<8x8xf32>
    %44 = arith.subf %41, %43 : vector<8x8xf32>
    %45 = math.exp %44 : vector<8x8xf32>
    %46 = arith.truncf %45 : vector<8x8xf32> to vector<8x8xbf16>
    %c0_21 = arith.constant 0 : index
    %c3 = arith.constant 3 : index
    %c0_22 = arith.constant 0 : index
    %c0_23 = arith.constant 0 : index
    %47 = vector.load %arg6[%c0_21, %c3, %c0_22, %c0_23] : memref<1x4x8x8xbf16, #tpu.memory_space<vmem>>, vector<1x1x8x8xbf16>
    %48 = vector.shape_cast %47 : vector<1x1x8x8xbf16> to vector<8x8xbf16>
    %49 = vector.shape_cast %46 : vector<8x8xbf16> to vector<1x1x8x8xbf16>
    tpu.vector_store %arg6[%c0_21, %c3, %c0_22, %c0_23], %49 {strides = array<i32>} : memref<1x4x8x8xbf16, #tpu.memory_space<vmem>>, vector<1x1x8x8xbf16>,
    return
  }
  func.func @transform_0(%arg0: i32, %arg1: i32, %arg2: i32) -> (i32, i32, i32) {
    %c0_i32 = arith.constant 0 : i32
    %c0_i32_0 = arith.constant 0 : i32
    return %arg0, %arg1, %c0_i32 : i32, i32, i32
  }
  func.func @transform_1(%arg0: i32, %arg1: i32, %arg2: i32) -> (i32, i32, i32) {
    %c0_i32 = arith.constant 0 : i32
    %c0_i32_0 = arith.constant 0 : i32
    return %arg0, %arg2, %c0_i32 : i32, i32, i32
  }
  func.func @transform_2(%arg0: i32, %arg1: i32, %arg2: i32) -> (i32, i32, i32) {
    %c0_i32 = arith.constant 0 : i32
    %c0_i32_0 = arith.constant 0 : i32
    return %arg0, %arg1, %c0_i32 : i32, i32, i32
  }
  func.func @transform_3(%arg0: i32, %arg1: i32, %arg2: i32) -> (i32, i32, i32, i32) {
    %c0_i32 = arith.constant 0 : i32
    %c0_i32_0 = arith.constant 0 : i32
    return %arg0, %c0_i32, %arg1, %arg2 : i32, i32, i32, i32
  }
}

</mosaic_0001>

<llo_original>
// kernel: self_attention_forward.10
$region0: #{self_attention_forward.10}
  #allocation0 [shape = 'u32[]', space=smem, size = 0x4, offset = 0x4, fixed_abs, tag = 'smem constant byte address 0x4 - core index']
  #allocation1 [shape = 'u32[144,128]{1,0:T(1,128)}', space=vmem, size = 0x12000, scoped, tag = 'internal scratch']
  #allocation2 [shape = 'f32[8,32]{1,0:T(8,128)}', space=vmem, size = 0x1000, scoped, tag = 'scratch operand']
  %s0 = inlined_call_operand.vmem [shape: bf16[2,8,32], index: 0, kind: input, shape index: {}]
  %s1 = inlined_call_operand.vmem [shape: bf16[32,32], index: 1, kind: input, shape index: {}]
  %s2 = inlined_call_operand.vmem [shape: f32[1,32], index: 2, kind: input, shape index: {}]
  %s3 = inlined_call_operand.hbm [shape: f32[2,8,32], index: 3, kind: output, shape index: {}]
  %s4 = sld [smem:[#allocation0]]
  $region53: #{self_attention_forward.10} parent=0
    _
  %s6 = ssub.s32 1, %s4
  %s7 = scalar_select 0, %s6, %s4
  $region1: #{self_attention_forward.10} parent=0
    #allocation3 [shape = 'u8[8192]{0}', space=vmem, size = 0x2000, scoped, tag = 'output window, operand 0']
    #allocation4 [shape = 's32[2]{0}', space=sflag, size = 0x8, scoped, tag = 'scoped memory for self_attention_forward.10']
    %8 = vsyncpa [#allocation4], 0
    %s9 = scalar_lea.sflag [#allocation4], 1
    %10 = vsyncpa %s9, 0
    loop: start=0, step=1, limit=4
    $region2: #{self_attention_forward.10} parent=1 // loop_pre_header
      _
    $region3: #{self_attention_forward.10} parent=1 // loop_header
      %s12 = sphi 0, %s16
      %p13 = scmp.ge.s32.totalorder %s12, 4
      %s19 = sphi 0, %s45
      %s20 = sphi 0, %s41
      %s21 = sphi 0, %s37
      %s22 = sphi 0, %s33
      %s23 = sphi 0, %s19
      %s24 = sphi 0, %s20
      %s25 = sphi 0, %s21
      %s26 = sphi 0, %s22
      %s27 = sphi 0, %s23
      %s28 = sphi 0, %s24
      %s29 = sphi 0, %s25
      %s30 = sphi 0, %s26
      %s52 = sphi 0, %s54
      %s55 = sphi 0, %s52
      %s56 = sphi 0, %s55
      %s72 = sphi 0, %s56
      %s80 = sphi 0, %s82
      %s83 = sphi 0, %s80
      %s84 = sphi 0, %s83
      %s100 = sphi 0, %s84
      %s106 = sphi 0, %s108
      %s109 = sphi 0, %s106
      %s110 = sphi 0, %s109
      %s126 = sphi 0, %s110
      %s136 = sphi 0, %s138
      %s139 = sphi 0, %s136
      %s140 = sphi 0, %s139
      %s156 = sphi 0, %s140
    $region4: #{self_attention_forward.10} parent=1 // loop_header_branch
      %15 = sbr.rel (%p13) target = $region8
    $region5: #{self_attention_forward.10} parent=1 // loop_body
      %s17 = ssub.s32 %s12, 1
      %s18 = ssub.s32 %s12, 2
      %s31 = sadd.s32 1, %s22
      %p32 = scmp.ge.s32.totalorder %s31, 1
      %s33 = scalar_select %p32, 0, %s31
      %s34 = sadd.s32 1, %s21
      %s35 = scalar_select %p32, %s34, %s21
      %p36 = scmp.ge.s32.totalorder %s35, 1
      %s37 = scalar_select %p36, 0, %s35
      %s38 = sadd.s32 1, %s20
      %s39 = scalar_select %p36, %s38, %s20
      %p40 = scmp.ge.s32.totalorder %s39, 1
      %s41 = scalar_select %p40, 0, %s39
      %s42 = sadd.s32 1, %s19
      %s43 = scalar_select %p40, %s42, %s19
      %p44 = scmp.ge.s32.totalorder %s43, 2
      %s45 = scalar_select %p44, 0, %s43
      %s46 = ssub.s32 %s19, %s45
      %s47 = ssub.s32 %s20, %s41
      %s48 = sor.u32 %s46, %s47
      %s49 = ssub.s32 %s22, %s33
      %s50 = sor.u32 %s48, %s49
      %p51 = scmp.eq.s32.totalorder %s50, 0
      %s53 = sadd.s32 %s52, 1
      %s54 = scalar_select %p51, %s52, %s53
      %p57 = pneg %p51
      %p58 = scmp.eq.s32.totalorder %s12, 1
      %p59 = por %p57, %p58
      %p60 = scmp.ne.s32.totalorder %s52, %s55
      %p61 = scmp.eq.s32.totalorder %s12, 0
      %p62 = por %p60, %p61
      %p63 = scmp.ne.s32.totalorder %s52, %s55
      %p64 = scmp.eq.s32.totalorder %s17, 1
      %p65 = por %p63, %p64
      %p66 = scmp.ne.s32.totalorder %s55, %s56
      %p67 = scmp.eq.s32.totalorder %s17, 0
      %p68 = por %p66, %p67
      %p69 = scmp.ne.s32.totalorder %s55, %s56
      %p70 = scmp.eq.s32.totalorder %s18, 1
      %p71 = por %p69, %p70
      %p73 = scmp.ne.s32.totalorder %s56, %s72
      %p74 = scmp.eq.s32.totalorder %s18, 0
      %p75 = por %p73, %p74
      %s76 = ssub.s32 %s22, %s33
      %s77 = ssub.s32 %s21, %s37
      %s78 = sor.u32 %s76, %s77
      %p79 = scmp.eq.s32.totalorder %s78, 0
      %s81 = sadd.s32 %s80, 1
      %s82 = scalar_select %p79, %s80, %s81
      %p85 = pneg %p79
      %p86 = scmp.eq.s32.totalorder %s12, 1
      %p87 = por %p85, %p86
      %p88 = scmp.ne.s32.totalorder %s80, %s83
      %p89 = scmp.eq.s32.totalorder %s12, 0
      %p90 = por %p88, %p89
      %p91 = scmp.ne.s32.totalorder %s80, %s83
      %p92 = scmp.eq.s32.totalorder %s17, 1
      %p93 = por %p91, %p92
      %p94 = scmp.ne.s32.totalorder %s83, %s84
      %p95 = scmp.eq.s32.totalorder %s17, 0
      %p96 = por %p94, %p95
      %p97 = scmp.ne.s32.totalorder %s83, %s84
      %p98 = scmp.eq.s32.totalorder %s18, 1
      %p99 = por %p97, %p98
      %p101 = scmp.ne.s32.totalorder %s84, %s100
      %p102 = scmp.eq.s32.totalorder %s18, 0
      %p103 = por %p101, %p102
      %s104 = ssub.s32 %s21, %s37
      %p105 = scmp.eq.s32.totalorder %s104, 0
      %s107 = sadd.s32 %s106, 1
      %s108 = scalar_select %p105, %s106, %s107
      %p111 = pneg %p105
      %p112 = scmp.eq.s32.totalorder %s12, 1
      %p113 = por %p111, %p112
      %p114 = scmp.ne.s32.totalorder %s106, %s109
      %p115 = scmp.eq.s32.totalorder %s12, 0
      %p116 = por %p114, %p115
      %p117 = scmp.ne.s32.totalorder %s106, %s109
      %p118 = scmp.eq.s32.totalorder %s17, 1
      %p119 = por %p117, %p118
      %p120 = scmp.ne.s32.totalorder %s109, %s110
      %p121 = scmp.eq.s32.totalorder %s17, 0
      %p122 = por %p120, %p121
      %p123 = scmp.ne.s32.totalorder %s109, %s110
      %p124 = scmp.eq.s32.totalorder %s18, 1
      %p125 = por %p123, %p124
      %p127 = scmp.ne.s32.totalorder %s110, %s126
      %p128 = scmp.eq.s32.totalorder %s18, 0
      %p129 = por %p127, %p128
      %s130 = ssub.s32 %s19, %s45
      %s131 = ssub.s32 %s20, %s41
      %s132 = sor.u32 %s130, %s131
      %s133 = ssub.s32 %s21, %s37
      %s134 = sor.u32 %s132, %s133
      %p135 = scmp.eq.s32.totalorder %s134, 0
      %s137 = sadd.s32 %s136, 1
      %s138 = scalar_select %p135, %s136, %s137
      %p141 = pneg %p135
      %p142 = scmp.eq.s32.totalorder %s12, 1
      %p143 = por %p141, %p142
      %p144 = scmp.ne.s32.totalorder %s136, %s139
      %p145 = scmp.eq.s32.totalorder %s12, 0
      %p146 = por %p144, %p145
      %p147 = scmp.ne.s32.totalorder %s136, %s139
      %p148 = scmp.eq.s32.totalorder %s17, 1
      %p149 = por %p147, %p148
      %p150 = scmp.ne.s32.totalorder %s139, %s140
      %p151 = scmp.eq.s32.totalorder %s17, 0
      %p152 = por %p150, %p151
      %p153 = scmp.ne.s32.totalorder %s139, %s140
      %p154 = scmp.eq.s32.totalorder %s18, 1
      %p155 = por %p153, %p154
      %p157 = scmp.ne.s32.totalorder %s140, %s156
      %p158 = scmp.eq.s32.totalorder %s18, 0
      %p159 = por %p157, %p158
      %p160 = scmp.le.s32.totalorder 1, %s12
      %p161 = scmp.lt.s32.totalorder %s12, 3
      %p162 = pnand %p160, %p161
      %p163 = pneg %p162
      // Predicated region
      $region9: #{self_attention_forward.10} parent=5 // pred_check
        _
      $region10: #{self_attention_forward.10} parent=5 // pred_check_branch
        %165 = sbr.rel (%p162) target = $region12
      $region11: #{self_attention_forward.10} parent=5 // pred_region
        %s166 = ssub.s32 %s12, 1
        // Predicated region
        $region13: #{self_attention_forward.10} parent=11 // pred_check
          %p167 = pneg %p96
        $region14: #{self_attention_forward.10} parent=11 // pred_check_branch
          %169 = sbr.rel (%p167) target = $region16
        $region15: #{self_attention_forward.10} parent=11 // pred_region
          %s170 = smul.u32 4, %s26
          %p171 = scmp.lt.s32.totalorder %s170, 3
          %s172 = scalar_select %p171, %s170, 3
          %p173 = scmp.lt.s32.totalorder %s25, 0
          %s174 = scalar_select %p173, %s25, 0
          %s175 = sadd.s32 %s174, %s172
          %s176 = smul.addr %s175, 4
          %s177 = scalar_lea.vmem %s1, %s176
          %s178 = smul.u32 4, %s26
        $region16: #{self_attention_forward.10} parent=11 // pred_fallthru
          _
        // Predicated region
        $region17: #{self_attention_forward.10} parent=11 // pred_check
          %p179 = pneg %p122
        $region18: #{self_attention_forward.10} parent=11 // pred_check_branch
          %181 = sbr.rel (%p179) target = $region20
        $region19: #{self_attention_forward.10} parent=11 // pred_region
          %p182 = scmp.lt.s32.totalorder %s25, 0
          %s183 = scalar_select %p182, %s25, 0
          %s184 = scalar_lea.vmem %s2, %s183
        $region20: #{self_attention_forward.10} parent=11 // pred_fallthru
          _
      $region12: #{self_attention_forward.10} parent=5 // pred_fallthru
        _
      %p185 = scmp.lt.s32.totalorder %s12, 2
      // Predicated region
      $region21: #{self_attention_forward.10} parent=5 // pred_check
        %p186 = pneg %p185
      $region22: #{self_attention_forward.10} parent=5 // pred_check_branch
        %188 = sbr.rel (%p186) target = $region24
      $region23: #{self_attention_forward.10} parent=5 // pred_region
        // Predicated region
        $region25: #{self_attention_forward.10} parent=23 // pred_check
          %p189 = pneg %p62
        $region26: #{self_attention_forward.10} parent=23 // pred_check_branch
          %191 = sbr.rel (%p189) target = $region28
        $region27: #{self_attention_forward.10} parent=23 // pred_region
          %p192 = scmp.lt.s32.totalorder %s19, 1
          %s193 = scalar_select %p192, %s19, 1
          %p194 = scmp.lt.s32.totalorder %s20, 0
          %s195 = scalar_select %p194, %s20, 0
          %p196 = scmp.lt.s32.totalorder %s22, 0
          %s197 = scalar_select %p196, %s22, 0
          %s198 = sadd.s32 %s197, %s195
          %s199 = sadd.s32 %s198, %s193
          %s200 = smul.addr %s199, 4
          %s201 = scalar_lea.vmem %s0, %s200
        $region28: #{self_attention_forward.10} parent=23 // pred_fallthru
          _
      $region24: #{self_attention_forward.10} parent=5 // pred_fallthru
        _
      %p202 = scmp.le.s32.totalorder 1, %s12
      %p203 = scmp.lt.s32.totalorder %s12, 3
      %p204 = pnand %p202, %p203
      %p205 = pneg %p204
      // Predicated region
      $region29: #{self_attention_forward.10} parent=5 // pred_check
        _
      $region30: #{self_attention_forward.10} parent=5 // pred_check_branch
        %207 = sbr.rel (%p204) target = $region32
      $region31: #{self_attention_forward.10} parent=5 // pred_region
        %s208 = ssub.s32 %s12, 1
        %p209 = scmp.lt.s32.totalorder %s23, 1
        %s210 = scalar_select %p209, %s23, 1
        %p211 = scmp.lt.s32.totalorder %s24, 0
        %s212 = scalar_select %p211, %s24, 0
        %p213 = scmp.lt.s32.totalorder %s26, 0
        %s214 = scalar_select %p213, %s26, 0
        %s215 = sadd.s32 %s214, %s212
        %s216 = sadd.s32 %s215, %s210
        %s217 = smul.addr %s216, 4
        %s218 = scalar_lea.vmem %s0, %s217
        %p219 = pneg %p68
        %p220 = pneg %p65
        %s221 = smul.u32 4, %s26
        %p222 = scmp.lt.s32.totalorder %s221, 3
        %s223 = scalar_select %p222, %s221, 3
        %p224 = scmp.lt.s32.totalorder %s25, 0
        %s225 = scalar_select %p224, %s25, 0
        %s226 = sadd.s32 %s225, %s223
        %s227 = smul.addr %s226, 4
        %s228 = scalar_lea.vmem %s1, %s227
        %p229 = pneg %p96
        %p230 = pneg %p93
        %p231 = scmp.lt.s32.totalorder %s25, 0
        %s232 = scalar_select %p231, %s25, 0
        %s233 = scalar_lea.vmem %s2, %s232
        %p234 = pneg %p122
        %p235 = pneg %p119
        %p236 = pneg %p152
        %p237 = pneg %p149
        %s238 = sand.u32 %s139, 1
        %s239 = scalar_lea.sflag [#allocation4], %s238
        %s240 = sand.u32 %s139, 1
        %s241 = smul.addr %s240, 8
        %s242 = scalar_lea.vmem [#allocation3], %s241
        %p243 = scmp.lt.s32.totalorder %s23, 1
        %s244 = scalar_select %p243, %s23, 1
        %p245 = scmp.lt.s32.totalorder %s24, 0
        %s246 = scalar_select %p245, %s24, 0
        %p247 = scmp.lt.s32.totalorder %s26, 0
        %s248 = scalar_select %p247, %s26, 0
        %s249 = sadd.s32 %s248, %s246
        %s250 = sadd.s32 %s249, %s244
        %s251 = smul.addr %s250, 4
        %s252 = scalar_lea.vmem %s0, %s251
        %s253 = smul.u32 4, %s26
        %p254 = scmp.lt.s32.totalorder %s253, 3
        %s255 = scalar_select %p254, %s253, 3
        %p256 = scmp.lt.s32.totalorder %s25, 0
        %s257 = scalar_select %p256, %s25, 0
        %s258 = sadd.s32 %s257, %s255
        %s259 = smul.addr %s258, 4
        %s260 = scalar_lea.vmem %s1, %s259
        %s261 = smul.u32 4, %s26
        %p262 = scmp.lt.s32.totalorder %s25, 0
        %s263 = scalar_select %p262, %s25, 0
        %s264 = scalar_lea.vmem %s2, %s263
        %p266 = scmp.eq.s32.totalorder %s26, 0
        // Predicated region
        $region33: #{self_attention_forward.10} parent=31 // pred_check
          %p267 = pneg %p266
        $region34: #{self_attention_forward.10} parent=31 // pred_check_branch
          %269 = sbr.rel (%p267) target = $region36
        $region35: #{self_attention_forward.10} parent=31 // pred_region
          %vm270 = vcmask 261120
          %271 = vst.msk [vmem:[#allocation2] sm:$0xff] %vm270, 0.0
        $region36: #{self_attention_forward.10} parent=31 // pred_fallthru
          _
        %v272 = vld [vmem:[#allocation2] sm:$0xff]
        %v273 = vld [vmem:[%s252] sm:$0xf]
        %v274 = vld [vmem:[%s260] sm:$0xf]
        %v275 = vld [vmem:[%s260 + $0x4] sm:$0xf]
        %v276 = vld [vmem:[%s260 + $0x8] sm:$0xf]
        %v277 = vld [vmem:[%s260 + $0xc] sm:$0xf]
        %v282 = vunpack.c.l.b16 %v274
        %v283 = vunpack.c.l.b16 %v275
        %v284 = vunpack.c.l.b16 %v276
        %v285 = vunpack.c.l.b16 %v277
        %v286 = vpack.c.b16 %v283, %v282
        %v287 = vpack.c.b16 %v285, %v284
        %vm290 = vcmask 261120
        %v292 = vsel %vm290, %v273, 0
        %294 = vmatprep.subr.bf16.mxu0 0
        %295 = vmatpush1.bf16.msra.mxu0 %v286
        %296 = vmatprep.subr.bf16.mxu0 0
        %297 = vmatpush1.bf16.msra.mxu0 %v287
        %298 = vmatprep.subr.bf16.mxu0 0
        %299 = vmatpush1.bf16.msra.mxu0 0
        %300 = vmatprep.subr.bf16.mxu0 0
        %301 = vmatpush1.bf16.msra.mxu0 0
        %302 = vmatprep.subr.bf16.mxu0 0
        %303 = vmatpush1.bf16.msra.mxu0 0
        %304 = vmatprep.subr.bf16.mxu0 0
        %305 = vmatpush1.bf16.msra.mxu0 0
        %306 = vmatprep.subr.bf16.mxu0 0
        %307 = vmatpush1.bf16.msra.mxu0 0
        %308 = vmatprep.subr.bf16.mxu0 0
        %309 = vmatpush1.bf16.msra.mxu0 0
        %310 = vmatprep.subr.bf16.mxu0 0
        %311 = vmatpush1.bf16.msra.mxu0 0
        %312 = vmatprep.subr.bf16.mxu0 0
        %313 = vmatpush1.bf16.msra.mxu0 0
        %314 = vmatprep.subr.bf16.mxu0 0
        %315 = vmatpush1.bf16.msra.mxu0 0
        %316 = vmatprep.subr.bf16.mxu0 0
        %317 = vmatpush1.bf16.msra.mxu0 0
        %318 = vmatprep.subr.bf16.mxu0 0
        %319 = vmatpush1.bf16.msra.mxu0 0
        %320 = vmatprep.subr.bf16.mxu0 0
        %321 = vmatpush1.bf16.msra.mxu0 0
        %322 = vmatprep.subr.bf16.mxu0 0
        %323 = vmatpush1.bf16.msra.mxu0 0
        %324 = vmatprep.subr.bf16.mxu0 0
        %325 = vmatpush1.bf16.msra.mxu0 0
        %326 = vmatprep.mubr.bf16.mxu0 0
        %327 = vmatmul.mubr.bf16.gmra.mrb[0].mxu0 %v292
        %v328 = vpop.f32.mrb[0].mxu0
        %v329 = vadd.f32 0.0, %v328
        %v330 = vpop.f32.mrb[0].mxu0
        %v331 = vpop.f32.mrb[0].mxu0
        %v332 = vpop.f32.mrb[0].mxu0
        %333 = vdwg.mxu0
        %v334 = vadd.f32 %v272, %v329
        %335 = vst.msk [vmem:[#allocation2] sm:$0xff] %vm290, %v334
        // Predicated region
        $region37: #{self_attention_forward.10} parent=31 // pred_check
          %p336 = pneg %p266
        $region38: #{self_attention_forward.10} parent=31 // pred_check_branch
          %338 = sbr.rel (%p336) target = $region40
        $region39: #{self_attention_forward.10} parent=31 // pred_region
          %v339 = vld [vmem:[#allocation2] sm:$0xff]
          %v340 = vld [vmem:[%s264] sm:$0x1]
          %v342 = vlaneseq
          %v343 = vshrl.u32 %v342, 7
          %v344 = vsub.s32 0, %v343
          %v345 = vrot.slane %v340, %v344
          %v347 = vadd.f32 %v339, %v345
          %348 = vst.msk [vmem:[%s242] sm:$0xff] %vm290, %v347
        $region40: #{self_attention_forward.10} parent=31 // pred_fallthru
          _
        %s349 = sand.u32 %s139, 1
        %s350 = scalar_lea.sflag [#allocation4], %s349
        %s351 = sand.u32 %s139, 1
        %s352 = smul.addr %s351, 8
        %s353 = scalar_lea.vmem [#allocation3], %s352
        // Predicated region
        $region41: #{self_attention_forward.10} parent=31 // pred_check
          %p354 = pneg %p149
        $region42: #{self_attention_forward.10} parent=31 // pred_check_branch
          %356 = sbr.rel (%p354) target = $region44
        $region43: #{self_attention_forward.10} parent=31 // pred_region
          %s358 = ssub.s32 128, 128
          %359 = vsyncadd %s350, %s358
          %s360 = sadd.s32 %s25, %s24
          %s361 = sadd.s32 %s360, %s23
          %s362 = smul.addr %s361, 128
          %s363 = scalar_lea.hbm %s3, %s362
          %s365 = sshll.u32 %s353, 4
          %s366 = int_to_ptr.vmem [resolvable:$true] %s365
          %368 = dma.vmem_to_hbm [thread:$0]  %s366, 128, %s363, %s350
        $region44: #{self_attention_forward.10} parent=31 // pred_fallthru
          _
      $region32: #{self_attention_forward.10} parent=5 // pred_fallthru
        _
      %p369 = scmp.le.s32.totalorder 2, %s12
      // Predicated region
      $region45: #{self_attention_forward.10} parent=5 // pred_check
        %p370 = pneg %p369
      $region46: #{self_attention_forward.10} parent=5 // pred_check_branch
        %372 = sbr.rel (%p370) target = $region48
      $region47: #{self_attention_forward.10} parent=5 // pred_region
        %s373 = ssub.s32 %s12, 2
        // Predicated region
        $region49: #{self_attention_forward.10} parent=47 // pred_check
          %p374 = pneg %p155
        $region50: #{self_attention_forward.10} parent=47 // pred_check_branch
          %376 = sbr.rel (%p374) target = $region52
        $region51: #{self_attention_forward.10} parent=47 // pred_region
          %s377 = sand.u32 %s140, 1
          %s378 = scalar_lea.sflag [#allocation4], %s377
          %s379 = sand.u32 %s140, 1
          %s380 = smul.addr %s379, 8
          %s381 = scalar_lea.vmem [#allocation3], %s380
          %382 = dma.done %s378, 128
        $region52: #{self_attention_forward.10} parent=47 // pred_fallthru
          _
      $region48: #{self_attention_forward.10} parent=5 // pred_fallthru
        _
    $region6: #{self_attention_forward.10} parent=1 // loop_footer
      %s16 = sadd.s32 1, %s12
    $region7: #{self_attention_forward.10} parent=1 // loop_footer_branch
      %11 = sbr.rel target = $region3
    $region8: #{self_attention_forward.10} parent=1 // loop_exit
      _
    %383 = vsyncpa [#allocation4], 1
    %s384 = scalar_lea.sflag [#allocation4], 1
    %385 = vsyncpa %s384, 1

// kernel: self_attention_forward.6
$region0: #{self_attention_forward.6}
  #allocation0 [shape = 'u32[]', space=smem, size = 0x4, offset = 0x4, fixed_abs, tag = 'smem constant byte address 0x4 - core index']
  #allocation1 [shape = 'u32[144,128]{1,0:T(1,128)}', space=vmem, size = 0x12000, scoped, tag = 'internal scratch']
  #allocation2 [shape = 'f32[8,32]{1,0:T(8,128)}', space=vmem, size = 0x1000, scoped, tag = 'scratch operand']
  %s0 = inlined_call_operand.vmem [shape: f32[2,8,32], index: 0, kind: input, shape index: {}]
  %s1 = inlined_call_operand.vmem [shape: bf16[32,32], index: 1, kind: input, shape index: {}]
  %s2 = inlined_call_operand.vmem [shape: f32[1,32], index: 2, kind: input, shape index: {}]
  %s3 = inlined_call_operand.vmem [shape: bf16[2,8,32], index: 3, kind: output, shape index: {}]
  %s4 = sld [smem:[#allocation0]]
  $region53: #{self_attention_forward.6} parent=0
    _
  %s6 = ssub.s32 1, %s4
  %s7 = scalar_select 0, %s6, %s4
  loop: start=0, step=1, limit=4
  $region2: #{self_attention_forward.6} parent=0 // loop_pre_header
    _
  $region3: #{self_attention_forward.6} parent=0 // loop_header
    %s9 = sphi 0, %s13
    %p10 = scmp.ge.s32.totalorder %s9, 4
    %s16 = sphi 0, %s42
    %s17 = sphi 0, %s38
    %s18 = sphi 0, %s34
    %s19 = sphi 0, %s30
    %s20 = sphi 0, %s16
    %s21 = sphi 0, %s17
    %s22 = sphi 0, %s18
    %s23 = sphi 0, %s19
    %s24 = sphi 0, %s20
    %s25 = sphi 0, %s21
    %s26 = sphi 0, %s22
    %s27 = sphi 0, %s23
    %s49 = sphi 0, %s51
    %s52 = sphi 0, %s49
    %s53 = sphi 0, %s52
    %s69 = sphi 0, %s53
    %s77 = sphi 0, %s79
    %s80 = sphi 0, %s77
    %s81 = sphi 0, %s80
    %s97 = sphi 0, %s81
    %s103 = sphi 0, %s105
    %s106 = sphi 0, %s103
    %s107 = sphi 0, %s106
    %s123 = sphi 0, %s107
    %s133 = sphi 0, %s135
    %s136 = sphi 0, %s133
    %s137 = sphi 0, %s136
    %s153 = sphi 0, %s137
  $region4: #{self_attention_forward.6} parent=0 // loop_header_branch
    %12 = sbr.rel (%p10) target = $region8
  $region5: #{self_attention_forward.6} parent=0 // loop_body
    %s14 = ssub.s32 %s9, 1
    %s15 = ssub.s32 %s9, 2
    %s28 = sadd.s32 1, %s19
    %p29 = scmp.ge.s32.totalorder %s28, 1
    %s30 = scalar_select %p29, 0, %s28
    %s31 = sadd.s32 1, %s18
    %s32 = scalar_select %p29, %s31, %s18
    %p33 = scmp.ge.s32.totalorder %s32, 1
    %s34 = scalar_select %p33, 0, %s32
    %s35 = sadd.s32 1, %s17
    %s36 = scalar_select %p33, %s35, %s17
    %p37 = scmp.ge.s32.totalorder %s36, 1
    %s38 = scalar_select %p37, 0, %s36
    %s39 = sadd.s32 1, %s16
    %s40 = scalar_select %p37, %s39, %s16
    %p41 = scmp.ge.s32.totalorder %s40, 2
    %s42 = scalar_select %p41, 0, %s40
    %s43 = ssub.s32 %s16, %s42
    %s44 = ssub.s32 %s17, %s38
    %s45 = sor.u32 %s43, %s44
    %s46 = ssub.s32 %s19, %s30
    %s47 = sor.u32 %s45, %s46
    %p48 = scmp.eq.s32.totalorder %s47, 0
    %s50 = sadd.s32 %s49, 1
    %s51 = scalar_select %p48, %s49, %s50
    %p54 = pneg %p48
    %p55 = scmp.eq.s32.totalorder %s9, 1
    %p56 = por %p54, %p55
    %p57 = scmp.ne.s32.totalorder %s49, %s52
    %p58 = scmp.eq.s32.totalorder %s9, 0
    %p59 = por %p57, %p58
    %p60 = scmp.ne.s32.totalorder %s49, %s52
    %p61 = scmp.eq.s32.totalorder %s14, 1
    %p62 = por %p60, %p61
    %p63 = scmp.ne.s32.totalorder %s52, %s53
    %p64 = scmp.eq.s32.totalorder %s14, 0
    %p65 = por %p63, %p64
    %p66 = scmp.ne.s32.totalorder %s52, %s53
    %p67 = scmp.eq.s32.totalorder %s15, 1
    %p68 = por %p66, %p67
    %p70 = scmp.ne.s32.totalorder %s53, %s69
    %p71 = scmp.eq.s32.totalorder %s15, 0
    %p72 = por %p70, %p71
    %s73 = ssub.s32 %s19, %s30
    %s74 = ssub.s32 %s18, %s34
    %s75 = sor.u32 %s73, %s74
    %p76 = scmp.eq.s32.totalorder %s75, 0
    %s78 = sadd.s32 %s77, 1
    %s79 = scalar_select %p76, %s77, %s78
    %p82 = pneg %p76
    %p83 = scmp.eq.s32.totalorder %s9, 1
    %p84 = por %p82, %p83
    %p85 = scmp.ne.s32.totalorder %s77, %s80
    %p86 = scmp.eq.s32.totalorder %s9, 0
    %p87 = por %p85, %p86
    %p88 = scmp.ne.s32.totalorder %s77, %s80
    %p89 = scmp.eq.s32.totalorder %s14, 1
    %p90 = por %p88, %p89
    %p91 = scmp.ne.s32.totalorder %s80, %s81
    %p92 = scmp.eq.s32.totalorder %s14, 0
    %p93 = por %p91, %p92
    %p94 = scmp.ne.s32.totalorder %s80, %s81
    %p95 = scmp.eq.s32.totalorder %s15, 1
    %p96 = por %p94, %p95
    %p98 = scmp.ne.s32.totalorder %s81, %s97
    %p99 = scmp.eq.s32.totalorder %s15, 0
    %p100 = por %p98, %p99
    %s101 = ssub.s32 %s18, %s34
    %p102 = scmp.eq.s32.totalorder %s101, 0
    %s104 = sadd.s32 %s103, 1
    %s105 = scalar_select %p102, %s103, %s104
    %p108 = pneg %p102
    %p109 = scmp.eq.s32.totalorder %s9, 1
    %p110 = por %p108, %p109
    %p111 = scmp.ne.s32.totalorder %s103, %s106
    %p112 = scmp.eq.s32.totalorder %s9, 0
    %p113 = por %p111, %p112
    %p114 = scmp.ne.s32.totalorder %s103, %s106
    %p115 = scmp.eq.s32.totalorder %s14, 1
    %p116 = por %p114, %p115
    %p117 = scmp.ne.s32.totalorder %s106, %s107
    %p118 = scmp.eq.s32.totalorder %s14, 0
    %p119 = por %p117, %p118
    %p120 = scmp.ne.s32.totalorder %s106, %s107
    %p121 = scmp.eq.s32.totalorder %s15, 1
    %p122 = por %p120, %p121
    %p124 = scmp.ne.s32.totalorder %s107, %s123
    %p125 = scmp.eq.s32.totalorder %s15, 0
    %p126 = por %p124, %p125
    %s127 = ssub.s32 %s16, %s42
    %s128 = ssub.s32 %s17, %s38
    %s129 = sor.u32 %s127, %s128
    %s130 = ssub.s32 %s18, %s34
    %s131 = sor.u32 %s129, %s130
    %p132 = scmp.eq.s32.totalorder %s131, 0
    %s134 = sadd.s32 %s133, 1
    %s135 = scalar_select %p132, %s133, %s134
    %p138 = pneg %p132
    %p139 = scmp.eq.s32.totalorder %s9, 1
    %p140 = por %p138, %p139
    %p141 = scmp.ne.s32.totalorder %s133, %s136
    %p142 = scmp.eq.s32.totalorder %s9, 0
    %p143 = por %p141, %p142
    %p144 = scmp.ne.s32.totalorder %s133, %s136
    %p145 = scmp.eq.s32.totalorder %s14, 1
    %p146 = por %p144, %p145
    %p147 = scmp.ne.s32.totalorder %s136, %s137
    %p148 = scmp.eq.s32.totalorder %s14, 0
    %p149 = por %p147, %p148
    %p150 = scmp.ne.s32.totalorder %s136, %s137
    %p151 = scmp.eq.s32.totalorder %s15, 1
    %p152 = por %p150, %p151
    %p154 = scmp.ne.s32.totalorder %s137, %s153
    %p155 = scmp.eq.s32.totalorder %s15, 0
    %p156 = por %p154, %p155
    %p157 = scmp.le.s32.totalorder 1, %s9
    %p158 = scmp.lt.s32.totalorder %s9, 3
    %p159 = pnand %p157, %p158
    %p160 = pneg %p159
    // Predicated region
    $region9: #{self_attention_forward.6} parent=5 // pred_check
      _
    $region10: #{self_attention_forward.6} parent=5 // pred_check_branch
      %162 = sbr.rel (%p159) target = $region12
    $region11: #{self_attention_forward.6} parent=5 // pred_region
      %s163 = ssub.s32 %s9, 1
      // Predicated region
      $region13: #{self_attention_forward.6} parent=11 // pred_check
        %p164 = pneg %p93
      $region14: #{self_attention_forward.6} parent=11 // pred_check_branch
        %166 = sbr.rel (%p164) target = $region16
      $region15: #{self_attention_forward.6} parent=11 // pred_region
        %s167 = smul.u32 4, %s23
        %p168 = scmp.lt.s32.totalorder %s167, 3
        %s169 = scalar_select %p168, %s167, 3
        %p170 = scmp.lt.s32.totalorder %s22, 0
        %s171 = scalar_select %p170, %s22, 0
        %s172 = sadd.s32 %s171, %s169
        %s173 = smul.addr %s172, 4
        %s174 = scalar_lea.vmem %s1, %s173
        %s175 = smul.u32 4, %s23
      $region16: #{self_attention_forward.6} parent=11 // pred_fallthru
        _
      // Predicated region
      $region17: #{self_attention_forward.6} parent=11 // pred_check
        %p176 = pneg %p119
      $region18: #{self_attention_forward.6} parent=11 // pred_check_branch
        %178 = sbr.rel (%p176) target = $region20
      $region19: #{self_attention_forward.6} parent=11 // pred_region
        %p179 = scmp.lt.s32.totalorder %s22, 0
        %s180 = scalar_select %p179, %s22, 0
        %s181 = scalar_lea.vmem %s2, %s180
      $region20: #{self_attention_forward.6} parent=11 // pred_fallthru
        _
    $region12: #{self_attention_forward.6} parent=5 // pred_fallthru
      _
    %p182 = scmp.lt.s32.totalorder %s9, 2
    // Predicated region
    $region21: #{self_attention_forward.6} parent=5 // pred_check
      %p183 = pneg %p182
    $region22: #{self_attention_forward.6} parent=5 // pred_check_branch
      %185 = sbr.rel (%p183) target = $region24
    $region23: #{self_attention_forward.6} parent=5 // pred_region
      // Predicated region
      $region25: #{self_attention_forward.6} parent=23 // pred_check
        %p186 = pneg %p59
      $region26: #{self_attention_forward.6} parent=23 // pred_check_branch
        %188 = sbr.rel (%p186) target = $region28
      $region27: #{self_attention_forward.6} parent=23 // pred_region
        %p189 = scmp.lt.s32.totalorder %s16, 1
        %s190 = scalar_select %p189, %s16, 1
        %p191 = scmp.lt.s32.totalorder %s17, 0
        %s192 = scalar_select %p191, %s17, 0
        %p193 = scmp.lt.s32.totalorder %s19, 0
        %s194 = scalar_select %p193, %s19, 0
        %s195 = sadd.s32 %s194, %s192
        %s196 = sadd.s32 %s195, %s190
        %s197 = smul.addr %s196, 8
        %s198 = scalar_lea.vmem %s0, %s197
      $region28: #{self_attention_forward.6} parent=23 // pred_fallthru
        _
    $region24: #{self_attention_forward.6} parent=5 // pred_fallthru
      _
    %p199 = scmp.le.s32.totalorder 1, %s9
    %p200 = scmp.lt.s32.totalorder %s9, 3
    %p201 = pnand %p199, %p200
    %p202 = pneg %p201
    // Predicated region
    $region29: #{self_attention_forward.6} parent=5 // pred_check
      _
    $region30: #{self_attention_forward.6} parent=5 // pred_check_branch
      %204 = sbr.rel (%p201) target = $region32
    $region31: #{self_attention_forward.6} parent=5 // pred_region
      %s205 = ssub.s32 %s9, 1
      %p206 = scmp.lt.s32.totalorder %s20, 1
      %s207 = scalar_select %p206, %s20, 1
      %p208 = scmp.lt.s32.totalorder %s21, 0
      %s209 = scalar_select %p208, %s21, 0
      %p210 = scmp.lt.s32.totalorder %s23, 0
      %s211 = scalar_select %p210, %s23, 0
      %s212 = sadd.s32 %s211, %s209
      %s213 = sadd.s32 %s212, %s207
      %s214 = smul.addr %s213, 8
      %s215 = scalar_lea.vmem %s0, %s214
      %p216 = pneg %p65
      %p217 = pneg %p62
      %s218 = smul.u32 4, %s23
      %p219 = scmp.lt.s32.totalorder %s218, 3
      %s220 = scalar_select %p219, %s218, 3
      %p221 = scmp.lt.s32.totalorder %s22, 0
      %s222 = scalar_select %p221, %s22, 0
      %s223 = sadd.s32 %s222, %s220
      %s224 = smul.addr %s223, 4
      %s225 = scalar_lea.vmem %s1, %s224
      %p226 = pneg %p93
      %p227 = pneg %p90
      %p228 = scmp.lt.s32.totalorder %s22, 0
      %s229 = scalar_select %p228, %s22, 0
      %s230 = scalar_lea.vmem %s2, %s229
      %p231 = pneg %p119
      %p232 = pneg %p116
      %p233 = pneg %p149
      %p234 = pneg %p146
      %p235 = scmp.lt.s32.totalorder %s20, 1
      %s236 = scalar_select %p235, %s20, 1
      %p237 = scmp.lt.s32.totalorder %s21, 0
      %s238 = scalar_select %p237, %s21, 0
      %p239 = scmp.lt.s32.totalorder %s22, 0
      %s240 = scalar_select %p239, %s22, 0
      %s241 = sadd.s32 %s240, %s238
      %s242 = sadd.s32 %s241, %s236
      %s243 = smul.addr %s242, 4
      %s244 = scalar_lea.vmem %s3, %s243
      %p245 = scmp.lt.s32.totalorder %s20, 1
      %s246 = scalar_select %p245, %s20, 1
      %p247 = scmp.lt.s32.totalorder %s21, 0
      %s248 = scalar_select %p247, %s21, 0
      %p249 = scmp.lt.s32.totalorder %s23, 0
      %s250 = scalar_select %p249, %s23, 0
      %s251 = sadd.s32 %s250, %s248
      %s252 = sadd.s32 %s251, %s246
      %s253 = smul.addr %s252, 8
      %s254 = scalar_lea.vmem %s0, %s253
      %s255 = smul.u32 4, %s23
      %p256 = scmp.lt.s32.totalorder %s255, 3
      %s257 = scalar_select %p256, %s255, 3
      %p258 = scmp.lt.s32.totalorder %s22, 0
      %s259 = scalar_select %p258, %s22, 0
      %s260 = sadd.s32 %s259, %s257
      %s261 = smul.addr %s260, 4
      %s262 = scalar_lea.vmem %s1, %s261
      %s263 = smul.u32 4, %s23
      %p264 = scmp.lt.s32.totalorder %s22, 0
      %s265 = scalar_select %p264, %s22, 0
      %s266 = scalar_lea.vmem %s2, %s265
      %p267 = scmp.lt.s32.totalorder %s20, 1
      %s268 = scalar_select %p267, %s20, 1
      %p269 = scmp.lt.s32.totalorder %s21, 0
      %s270 = scalar_select %p269, %s21, 0
      %p271 = scmp.lt.s32.totalorder %s22, 0
      %s272 = scalar_select %p271, %s22, 0
      %s273 = sadd.s32 %s272, %s270
      %s274 = sadd.s32 %s273, %s268
      %s275 = smul.addr %s274, 4
      %s276 = scalar_lea.vmem %s3, %s275
      %p278 = scmp.eq.s32.totalorder %s23, 0
      // Predicated region
      $region33: #{self_attention_forward.6} parent=31 // pred_check
        %p279 = pneg %p278
      $region34: #{self_attention_forward.6} parent=31 // pred_check_branch
        %281 = sbr.rel (%p279) target = $region36
      $region35: #{self_attention_forward.6} parent=31 // pred_region
        %vm282 = vcmask 261120
        %283 = vst.msk [vmem:[#allocation2] sm:$0xff] %vm282, 0.0
      $region36: #{self_attention_forward.6} parent=31 // pred_fallthru
        _
      %v284 = vld [vmem:[#allocation2] sm:$0xff]
      %v285 = vld [vmem:[%s254] sm:$0xff]
      %v286 = vpack.c.bf16 %v285, %v285
      %v287 = vld [vmem:[%s262] sm:$0xf]
      %v288 = vld [vmem:[%s262 + $0x4] sm:$0xf]
      %v289 = vld [vmem:[%s262 + $0x8] sm:$0xf]
      %v290 = vld [vmem:[%s262 + $0xc] sm:$0xf]
      %v295 = vunpack.c.l.b16 %v287
      %v296 = vunpack.c.l.b16 %v288
      %v297 = vunpack.c.l.b16 %v289
      %v298 = vunpack.c.l.b16 %v290
      %v299 = vpack.c.b16 %v296, %v295
      %v300 = vpack.c.b16 %v298, %v297
      %vm303 = vcmask 261120
      %v305 = vsel %vm303, %v286, 0
      %307 = vmatprep.subr.bf16.mxu0 0
      %308 = vmatpush1.bf16.msra.mxu0 %v299
      %309 = vmatprep.subr.bf16.mxu0 0
      %310 = vmatpush1.bf16.msra.mxu0 %v300
      %311 = vmatprep.subr.bf16.mxu0 0
      %312 = vmatpush1.bf16.msra.mxu0 0
      %313 = vmatprep.subr.bf16.mxu0 0
      %314 = vmatpush1.bf16.msra.mxu0 0
      %315 = vmatprep.subr.bf16.mxu0 0
      %316 = vmatpush1.bf16.msra.mxu0 0
      %317 = vmatprep.subr.bf16.mxu0 0
      %318 = vmatpush1.bf16.msra.mxu0 0
      %319 = vmatprep.subr.bf16.mxu0 0
      %320 = vmatpush1.bf16.msra.mxu0 0
      %321 = vmatprep.subr.bf16.mxu0 0
      %322 = vmatpush1.bf16.msra.mxu0 0
      %323 = vmatprep.subr.bf16.mxu0 0
      %324 = vmatpush1.bf16.msra.mxu0 0
      %325 = vmatprep.subr.bf16.mxu0 0
      %326 = vmatpush1.bf16.msra.mxu0 0
      %327 = vmatprep.subr.bf16.mxu0 0
      %328 = vmatpush1.bf16.msra.mxu0 0
      %329 = vmatprep.subr.bf16.mxu0 0
      %330 = vmatpush1.bf16.msra.mxu0 0
      %331 = vmatprep.subr.bf16.mxu0 0
      %332 = vmatpush1.bf16.msra.mxu0 0
      %333 = vmatprep.subr.bf16.mxu0 0
      %334 = vmatpush1.bf16.msra.mxu0 0
      %335 = vmatprep.subr.bf16.mxu0 0
      %336 = vmatpush1.bf16.msra.mxu0 0
      %337 = vmatprep.subr.bf16.mxu0 0
      %338 = vmatpush1.bf16.msra.mxu0 0
      %339 = vmatprep.mubr.bf16.mxu0 0
      %340 = vmatmul.mubr.bf16.gmra.mrb[0].mxu0 %v305
      %v341 = vpop.f32.mrb[0].mxu0
      %v342 = vadd.f32 0.0, %v341
      %v343 = vpop.f32.mrb[0].mxu0
      %v344 = vpop.f32.mrb[0].mxu0
      %v345 = vpop.f32.mrb[0].mxu0
      %346 = vdwg.mxu0
      %v347 = vadd.f32 %v284, %v342
      %348 = vst.msk [vmem:[#allocation2] sm:$0xff] %vm303, %v347
      // Predicated region
      $region37: #{self_attention_forward.6} parent=31 // pred_check
        %p349 = pneg %p278
      $region38: #{self_attention_forward.6} parent=31 // pred_check_branch
        %351 = sbr.rel (%p349) target = $region40
      $region39: #{self_attention_forward.6} parent=31 // pred_region
        %v352 = vld [vmem:[#allocation2] sm:$0xff]
        %v353 = vld [vmem:[%s266] sm:$0x1]
        %v355 = vlaneseq
        %v356 = vshrl.u32 %v355, 7
        %v357 = vsub.s32 0, %v356
        %v358 = vrot.slane %v353, %v357
        %v360 = vadd.f32 %v352, %v358
        %v361 = vpack.c.bf16 %v360, %v360
        %vm362 = vcmask 257024
        %363 = vst.msk [vmem:[%s276] sm:$0xf] %vm362, %v361
      $region40: #{self_attention_forward.6} parent=31 // pred_fallthru
        _
      %p364 = scmp.lt.s32.totalorder %s20, 1
      %s365 = scalar_select %p364, %s20, 1
      %p366 = scmp.lt.s32.totalorder %s21, 0
      %s367 = scalar_select %p366, %s21, 0
      %p368 = scmp.lt.s32.totalorder %s22, 0
      %s369 = scalar_select %p368, %s22, 0
      %s370 = sadd.s32 %s369, %s367
      %s371 = sadd.s32 %s370, %s365
      %s372 = smul.addr %s371, 4
      %s373 = scalar_lea.vmem %s3, %s372
      // Predicated region
      $region41: #{self_attention_forward.6} parent=31 // pred_check
        %p374 = pneg %p146
      $region42: #{self_attention_forward.6} parent=31 // pred_check_branch
        %376 = sbr.rel (%p374) target = $region44
      $region43: #{self_attention_forward.6} parent=31 // pred_region
        _
      $region44: #{self_attention_forward.6} parent=31 // pred_fallthru
        _
    $region32: #{self_attention_forward.6} parent=5 // pred_fallthru
      _
    %p377 = scmp.le.s32.totalorder 2, %s9
    // Predicated region
    $region45: #{self_attention_forward.6} parent=5 // pred_check
      %p378 = pneg %p377
    $region46: #{self_attention_forward.6} parent=5 // pred_check_branch
      %380 = sbr.rel (%p378) target = $region48
    $region47: #{self_attention_forward.6} parent=5 // pred_region
      %s381 = ssub.s32 %s9, 2
      // Predicated region
      $region49: #{self_attention_forward.6} parent=47 // pred_check
        %p382 = pneg %p152
      $region50: #{self_attention_forward.6} parent=47 // pred_check_branch
        %384 = sbr.rel (%p382) target = $region52
      $region51: #{self_attention_forward.6} parent=47 // pred_region
        %p385 = scmp.lt.s32.totalorder %s24, 1
        %s386 = scalar_select %p385, %s24, 1
        %p387 = scmp.lt.s32.totalorder %s25, 0
        %s388 = scalar_select %p387, %s25, 0
        %p389 = scmp.lt.s32.totalorder %s26, 0
        %s390 = scalar_select %p389, %s26, 0
        %s391 = sadd.s32 %s390, %s388
        %s392 = sadd.s32 %s391, %s386
        %s393 = smul.addr %s392, 4
        %s394 = scalar_lea.vmem %s3, %s393
      $region52: #{self_attention_forward.6} parent=47 // pred_fallthru
        _
    $region48: #{self_attention_forward.6} parent=5 // pred_fallthru
      _
  $region6: #{self_attention_forward.6} parent=0 // loop_footer
    %s13 = sadd.s32 1, %s9
  $region7: #{self_attention_forward.6} parent=0 // loop_footer_branch
    %8 = sbr.rel target = $region3
  $region8: #{self_attention_forward.6} parent=0 // loop_exit
    _

// kernel: self_attention_forward.11
$region0: #{self_attention_forward.11}
  #allocation0 [shape = 'u32[]', space=smem, size = 0x4, offset = 0x4, fixed_abs, tag = 'smem constant byte address 0x4 - core index']
  #allocation1 [shape = 'u32[144,128]{1,0:T(1,128)}', space=vmem, size = 0x12000, scoped, tag = 'internal scratch']
  %s0 = inlined_call_operand.vmem [shape: bf16[2,8,32], index: 0, kind: input, shape index: {}]
  %s1 = inlined_call_operand.vmem [shape: bf16[2,8,32], index: 1, kind: input, shape index: {}]
  %s2 = inlined_call_operand.vmem [shape: f32[2,8,4], index: 2, kind: input, shape index: {}]
  %s3 = inlined_call_operand.hbm [shape: bf16[2,4,8,8], index: 3, kind: output, shape index: {}]
  %s4 = sld [smem:[#allocation0]]
  $region45: #{self_attention_forward.11} parent=0
    _
  %s6 = ssub.s32 1, %s4
  %s7 = scalar_select 0, %s6, %s4
  $region1: #{self_attention_forward.11} parent=0
    #allocation2 [shape = 'u8[16384]{0}', space=vmem, size = 0x4000, scoped, tag = 'output window, operand 0']
    #allocation3 [shape = 's32[2]{0}', space=sflag, size = 0x8, scoped, tag = 'scoped memory for self_attention_forward.11']
    %8 = vsyncpa [#allocation3], 0
    %s9 = scalar_lea.sflag [#allocation3], 1
    %10 = vsyncpa %s9, 0
    loop: start=0, step=1, limit=4
    $region2: #{self_attention_forward.11} parent=1 // loop_pre_header
      _
    $region3: #{self_attention_forward.11} parent=1 // loop_header
      %s12 = sphi 0, %s16
      %p13 = scmp.ge.s32.totalorder %s12, 4
      %s19 = sphi 0, %s38
      %s20 = sphi 0, %s34
      %s21 = sphi 0, %s30
      %s22 = sphi 0, %s19
      %s23 = sphi 0, %s20
      %s24 = sphi 0, %s21
      %s25 = sphi 0, %s22
      %s26 = sphi 0, %s23
      %s27 = sphi 0, %s24
      %s43 = sphi 0, %s45
      %s46 = sphi 0, %s43
      %s47 = sphi 0, %s46
      %s63 = sphi 0, %s47
      %s71 = sphi 0, %s73
      %s74 = sphi 0, %s71
      %s75 = sphi 0, %s74
      %s91 = sphi 0, %s75
      %s99 = sphi 0, %s101
      %s102 = sphi 0, %s99
      %s103 = sphi 0, %s102
      %s119 = sphi 0, %s103
      %s129 = sphi 0, %s131
      %s132 = sphi 0, %s129
      %s133 = sphi 0, %s132
      %s149 = sphi 0, %s133
    $region4: #{self_attention_forward.11} parent=1 // loop_header_branch
      %15 = sbr.rel (%p13) target = $region8
    $region5: #{self_attention_forward.11} parent=1 // loop_body
      %s17 = ssub.s32 %s12, 1
      %s18 = ssub.s32 %s12, 2
      %s28 = sadd.s32 1, %s21
      %p29 = scmp.ge.s32.totalorder %s28, 1
      %s30 = scalar_select %p29, 0, %s28
      %s31 = sadd.s32 1, %s20
      %s32 = scalar_select %p29, %s31, %s20
      %p33 = scmp.ge.s32.totalorder %s32, 1
      %s34 = scalar_select %p33, 0, %s32
      %s35 = sadd.s32 1, %s19
      %s36 = scalar_select %p33, %s35, %s19
      %p37 = scmp.ge.s32.totalorder %s36, 2
      %s38 = scalar_select %p37, 0, %s36
      %s39 = ssub.s32 %s19, %s38
      %s40 = ssub.s32 %s20, %s34
      %s41 = sor.u32 %s39, %s40
      %p42 = scmp.eq.s32.totalorder %s41, 0
      %s44 = sadd.s32 %s43, 1
      %s45 = scalar_select %p42, %s43, %s44
      %p48 = pneg %p42
      %p49 = scmp.eq.s32.totalorder %s12, 1
      %p50 = por %p48, %p49
      %p51 = scmp.ne.s32.totalorder %s43, %s46
      %p52 = scmp.eq.s32.totalorder %s12, 0
      %p53 = por %p51, %p52
      %p54 = scmp.ne.s32.totalorder %s43, %s46
      %p55 = scmp.eq.s32.totalorder %s17, 1
      %p56 = por %p54, %p55
      %p57 = scmp.ne.s32.totalorder %s46, %s47
      %p58 = scmp.eq.s32.totalorder %s17, 0
      %p59 = por %p57, %p58
      %p60 = scmp.ne.s32.totalorder %s46, %s47
      %p61 = scmp.eq.s32.totalorder %s18, 1
      %p62 = por %p60, %p61
      %p64 = scmp.ne.s32.totalorder %s47, %s63
      %p65 = scmp.eq.s32.totalorder %s18, 0
      %p66 = por %p64, %p65
      %s67 = ssub.s32 %s19, %s38
      %s68 = ssub.s32 %s21, %s30
      %s69 = sor.u32 %s67, %s68
      %p70 = scmp.eq.s32.totalorder %s69, 0
      %s72 = sadd.s32 %s71, 1
      %s73 = scalar_select %p70, %s71, %s72
      %p76 = pneg %p70
      %p77 = scmp.eq.s32.totalorder %s12, 1
      %p78 = por %p76, %p77
      %p79 = scmp.ne.s32.totalorder %s71, %s74
      %p80 = scmp.eq.s32.totalorder %s12, 0
      %p81 = por %p79, %p80
      %p82 = scmp.ne.s32.totalorder %s71, %s74
      %p83 = scmp.eq.s32.totalorder %s17, 1
      %p84 = por %p82, %p83
      %p85 = scmp.ne.s32.totalorder %s74, %s75
      %p86 = scmp.eq.s32.totalorder %s17, 0
      %p87 = por %p85, %p86
      %p88 = scmp.ne.s32.totalorder %s74, %s75
      %p89 = scmp.eq.s32.totalorder %s18, 1
      %p90 = por %p88, %p89
      %p92 = scmp.ne.s32.totalorder %s75, %s91
      %p93 = scmp.eq.s32.totalorder %s18, 0
      %p94 = por %p92, %p93
      %s95 = ssub.s32 %s19, %s38
      %s96 = ssub.s32 %s20, %s34
      %s97 = sor.u32 %s95, %s96
      %p98 = scmp.eq.s32.totalorder %s97, 0
      %s100 = sadd.s32 %s99, 1
      %s101 = scalar_select %p98, %s99, %s100
      %p104 = pneg %p98
      %p105 = scmp.eq.s32.totalorder %s12, 1
      %p106 = por %p104, %p105
      %p107 = scmp.ne.s32.totalorder %s99, %s102
      %p108 = scmp.eq.s32.totalorder %s12, 0
      %p109 = por %p107, %p108
      %p110 = scmp.ne.s32.totalorder %s99, %s102
      %p111 = scmp.eq.s32.totalorder %s17, 1
      %p112 = por %p110, %p111
      %p113 = scmp.ne.s32.totalorder %s102, %s103
      %p114 = scmp.eq.s32.totalorder %s17, 0
      %p115 = por %p113, %p114
      %p116 = scmp.ne.s32.totalorder %s102, %s103
      %p117 = scmp.eq.s32.totalorder %s18, 1
      %p118 = por %p116, %p117
      %p120 = scmp.ne.s32.totalorder %s103, %s119
      %p121 = scmp.eq.s32.totalorder %s18, 0
      %p122 = por %p120, %p121
      %s123 = ssub.s32 %s19, %s38
      %s124 = ssub.s32 %s20, %s34
      %s125 = sor.u32 %s123, %s124
      %s126 = ssub.s32 %s21, %s30
      %s127 = sor.u32 %s125, %s126
      %p128 = scmp.eq.s32.totalorder %s127, 0
      %s130 = sadd.s32 %s129, 1
      %s131 = scalar_select %p128, %s129, %s130
      %p134 = pneg %p128
      %p135 = scmp.eq.s32.totalorder %s12, 1
      %p136 = por %p134, %p135
      %p137 = scmp.ne.s32.totalorder %s129, %s132
      %p138 = scmp.eq.s32.totalorder %s12, 0
      %p139 = por %p137, %p138
      %p140 = scmp.ne.s32.totalorder %s129, %s132
      %p141 = scmp.eq.s32.totalorder %s17, 1
      %p142 = por %p140, %p141
      %p143 = scmp.ne.s32.totalorder %s132, %s133
      %p144 = scmp.eq.s32.totalorder %s17, 0
      %p145 = por %p143, %p144
      %p146 = scmp.ne.s32.totalorder %s132, %s133
      %p147 = scmp.eq.s32.totalorder %s18, 1
      %p148 = por %p146, %p147
      %p150 = scmp.ne.s32.totalorder %s133, %s149
      %p151 = scmp.eq.s32.totalorder %s18, 0
      %p152 = por %p150, %p151
      %p153 = scmp.le.s32.totalorder 1, %s12
      %p154 = scmp.lt.s32.totalorder %s12, 3
      %p155 = pnand %p153, %p154
      %p156 = pneg %p155
      // Predicated region
      $region9: #{self_attention_forward.11} parent=5 // pred_check
        _
      $region10: #{self_attention_forward.11} parent=5 // pred_check_branch
        %158 = sbr.rel (%p155) target = $region12
      $region11: #{self_attention_forward.11} parent=5 // pred_region
        %s159 = ssub.s32 %s12, 1
      $region12: #{self_attention_forward.11} parent=5 // pred_fallthru
        _
      %p160 = scmp.lt.s32.totalorder %s12, 2
      // Predicated region
      $region13: #{self_attention_forward.11} parent=5 // pred_check
        %p161 = pneg %p160
      $region14: #{self_attention_forward.11} parent=5 // pred_check_branch
        %163 = sbr.rel (%p161) target = $region16
      $region15: #{self_attention_forward.11} parent=5 // pred_region
        // Predicated region
        $region17: #{self_attention_forward.11} parent=15 // pred_check
          %p164 = pneg %p53
        $region18: #{self_attention_forward.11} parent=15 // pred_check_branch
          %166 = sbr.rel (%p164) target = $region20
        $region19: #{self_attention_forward.11} parent=15 // pred_region
          %p167 = scmp.lt.s32.totalorder %s19, 1
          %s168 = scalar_select %p167, %s19, 1
          %p169 = scmp.lt.s32.totalorder %s20, 0
          %s170 = scalar_select %p169, %s20, 0
          %s171 = sadd.s32 %s170, %s168
          %s172 = smul.addr %s171, 4
          %s173 = scalar_lea.vmem %s0, %s172
        $region20: #{self_attention_forward.11} parent=15 // pred_fallthru
          _
        // Predicated region
        $region21: #{self_attention_forward.11} parent=15 // pred_check
          %p174 = pneg %p81
        $region22: #{self_attention_forward.11} parent=15 // pred_check_branch
          %176 = sbr.rel (%p174) target = $region24
        $region23: #{self_attention_forward.11} parent=15 // pred_region
          %p177 = scmp.lt.s32.totalorder %s19, 1
          %s178 = scalar_select %p177, %s19, 1
          %p179 = scmp.lt.s32.totalorder %s21, 0
          %s180 = scalar_select %p179, %s21, 0
          %s181 = sadd.s32 %s180, %s178
          %s182 = smul.addr %s181, 4
          %s183 = scalar_lea.vmem %s1, %s182
        $region24: #{self_attention_forward.11} parent=15 // pred_fallthru
          _
        // Predicated region
        $region25: #{self_attention_forward.11} parent=15 // pred_check
          %p184 = pneg %p109
        $region26: #{self_attention_forward.11} parent=15 // pred_check_branch
          %186 = sbr.rel (%p184) target = $region28
        $region27: #{self_attention_forward.11} parent=15 // pred_region
          %p187 = scmp.lt.s32.totalorder %s19, 1
          %s188 = scalar_select %p187, %s19, 1
          %p189 = scmp.lt.s32.totalorder %s20, 0
          %s190 = scalar_select %p189, %s20, 0
          %s191 = sadd.s32 %s190, %s188
          %s192 = smul.addr %s191, 8
          %s193 = scalar_lea.vmem %s2, %s192
        $region28: #{self_attention_forward.11} parent=15 // pred_fallthru
          _
      $region16: #{self_attention_forward.11} parent=5 // pred_fallthru
        _
      %p194 = scmp.le.s32.totalorder 1, %s12
      %p195 = scmp.lt.s32.totalorder %s12, 3
      %p196 = pnand %p194, %p195
      %p197 = pneg %p196
      // Predicated region
      $region29: #{self_attention_forward.11} parent=5 // pred_check
        _
      $region30: #{self_attention_forward.11} parent=5 // pred_check_branch
        %199 = sbr.rel (%p196) target = $region32
      $region31: #{self_attention_forward.11} parent=5 // pred_region
        %s200 = ssub.s32 %s12, 1
        %p201 = scmp.lt.s32.totalorder %s22, 1
        %s202 = scalar_select %p201, %s22, 1
        %p203 = scmp.lt.s32.totalorder %s23, 0
        %s204 = scalar_select %p203, %s23, 0
        %s205 = sadd.s32 %s204, %s202
        %s206 = smul.addr %s205, 4
        %s207 = scalar_lea.vmem %s0, %s206
        %p208 = pneg %p59
        %p209 = pneg %p56
        %p210 = scmp.lt.s32.totalorder %s22, 1
        %s211 = scalar_select %p210, %s22, 1
        %p212 = scmp.lt.s32.totalorder %s24, 0
        %s213 = scalar_select %p212, %s24, 0
        %s214 = sadd.s32 %s213, %s211
        %s215 = smul.addr %s214, 4
        %s216 = scalar_lea.vmem %s1, %s215
        %p217 = pneg %p87
        %p218 = pneg %p84
        %p219 = scmp.lt.s32.totalorder %s22, 1
        %s220 = scalar_select %p219, %s22, 1
        %p221 = scmp.lt.s32.totalorder %s23, 0
        %s222 = scalar_select %p221, %s23, 0
        %s223 = sadd.s32 %s222, %s220
        %s224 = smul.addr %s223, 8
        %s225 = scalar_lea.vmem %s2, %s224
        %p226 = pneg %p115
        %p227 = pneg %p112
        %p228 = pneg %p145
        %p229 = pneg %p142
        %s230 = sand.u32 %s132, 1
        %s231 = scalar_lea.sflag [#allocation3], %s230
        %s232 = sand.u32 %s132, 1
        %s233 = smul.addr %s232, 16
        %s234 = scalar_lea.vmem [#allocation2], %s233
        %p235 = scmp.lt.s32.totalorder %s22, 1
        %s236 = scalar_select %p235, %s22, 1
        %p237 = scmp.lt.s32.totalorder %s23, 0
        %s238 = scalar_select %p237, %s23, 0
        %s239 = sadd.s32 %s238, %s236
        %s240 = smul.addr %s239, 4
        %s241 = scalar_lea.vmem %s0, %s240
        %p242 = scmp.lt.s32.totalorder %s22, 1
        %s243 = scalar_select %p242, %s22, 1
        %p244 = scmp.lt.s32.totalorder %s24, 0
        %s245 = scalar_select %p244, %s24, 0
        %s246 = sadd.s32 %s245, %s243
        %s247 = smul.addr %s246, 4
        %s248 = scalar_lea.vmem %s1, %s247
        %p249 = scmp.lt.s32.totalorder %s22, 1
        %s250 = scalar_select %p249, %s22, 1
        %p251 = scmp.lt.s32.totalorder %s23, 0
        %s252 = scalar_select %p251, %s23, 0
        %s253 = sadd.s32 %s252, %s250
        %s254 = smul.addr %s253, 8
        %s255 = scalar_lea.vmem %s2, %s254
        %v257 = vld [vmem:[%s241] sm:$0xf]
        %v258 = vld [vmem:[%s248] sm:$0xf]
        %v259 = vld [vmem:[%s255] sm:$0xff]
        %vm260 = vcmask 64512
        %v262 = vsel %vm260, %v257, 0
        %v265 = vsel %vm260, %v258, 0
        %267 = vmatprep.subr.bf16.mxu0 0
        %268 = vmatpush1.bf16.xpose.msra.mxu0 %v265
        %269 = vmatprep.subr.bf16.mxu0 0
        %270 = vmatpush1.bf16.xpose.msra.mxu0 0
        %271 = vmatprep.subr.bf16.mxu0 0
        %272 = vmatpush1.bf16.xpose.msra.mxu0 0
        %273 = vmatprep.subr.bf16.mxu0 0
        %274 = vmatpush1.bf16.xpose.msra.mxu0 0
        %275 = vmatprep.subr.bf16.mxu0 0
        %276 = vmatpush1.bf16.xpose.msra.mxu0 0
        %277 = vmatprep.subr.bf16.mxu0 0
        %278 = vmatpush1.bf16.xpose.msra.mxu0 0
        %279 = vmatprep.subr.bf16.mxu0 0
        %280 = vmatpush1.bf16.xpose.msra.mxu0 0
        %281 = vmatprep.subr.bf16.mxu0 0
        %282 = vmatpush1.bf16.xpose.msra.mxu0 0
        %283 = vmatprep.subr.bf16.mxu0 0
        %284 = vmatpush1.bf16.xpose.msra.mxu0 0
        %285 = vmatprep.subr.bf16.mxu0 0
        %286 = vmatpush1.bf16.xpose.msra.mxu0 0
        %287 = vmatprep.subr.bf16.mxu0 0
        %288 = vmatpush1.bf16.xpose.msra.mxu0 0
        %289 = vmatprep.subr.bf16.mxu0 0
        %290 = vmatpush1.bf16.xpose.msra.mxu0 0
        %291 = vmatprep.subr.bf16.mxu0 0
        %292 = vmatpush1.bf16.xpose.msra.mxu0 0
        %293 = vmatprep.subr.bf16.mxu0 0
        %294 = vmatpush1.bf16.xpose.msra.mxu0 0
        %295 = vmatprep.subr.bf16.mxu0 0
        %296 = vmatpush1.bf16.xpose.msra.mxu0 0
        %297 = vmatprep.subr.bf16.mxu0 0
        %298 = vmatpush1.bf16.xpose.msra.mxu0 0
        %299 = vmatprep.mubr.bf16.mxu0 0
        %300 = vmatmul.mubr.bf16.gmra.mrb[0].mxu0 %v262
        %v301 = vpop.f32.mrb[0].mxu0
        %v302 = vadd.f32 0.0, %v301
        %v303 = vpop.f32.mrb[0].mxu0
        %v304 = vpop.f32.mrb[0].mxu0
        %v305 = vpop.f32.mrb[0].mxu0
        %306 = vdwg.mxu0
        %308 = vset.pattern.permute.xlu0 0
        %309 = vperm.xlu0 %308, %v259
        %v310 = vpop.permute.xlu0 %309
        %v312 = vsub.f32 %v302, %v310
        %v313 = vmul.f32 %v312, 1.442695
        %v314 = vpow.pop %v313
        %v315 = vpack.c.bf16 %v314, %v314
        %vm316 = vcmask 60416
        %317 = vst.msk [vmem:[%s234] sm:$0xf] %vm316, %v315
        %v319 = vunpack.c.l.b16 %v257
        %v320 = vpack.c.b16 %v319, %v319
        %321 = vrot.lane.b32.xlu0 %v320, 120
        %v322 = vpop.permute.xlu0 %321
        %v324 = vunpack.c.l.b16 %v258
        %v325 = vpack.c.b16 %v324, %v324
        %326 = vrot.lane.b32.xlu0 %v325, 120
        %v327 = vpop.permute.xlu0 %326
        %v329 = vsel %vm260, %v322, 0
        %v332 = vsel %vm260, %v327, 0
        %334 = vmatprep.subr.bf16.mxu0 0
        %335 = vmatpush1.bf16.xpose.msra.mxu0 %v332
        %336 = vmatprep.subr.bf16.mxu0 0
        %337 = vmatpush1.bf16.xpose.msra.mxu0 0
        %338 = vmatprep.subr.bf16.mxu0 0
        %339 = vmatpush1.bf16.xpose.msra.mxu0 0
        %340 = vmatprep.subr.bf16.mxu0 0
        %341 = vmatpush1.bf16.xpose.msra.mxu0 0
        %342 = vmatprep.subr.bf16.mxu0 0
        %343 = vmatpush1.bf16.xpose.msra.mxu0 0
        %344 = vmatprep.subr.bf16.mxu0 0
        %345 = vmatpush1.bf16.xpose.msra.mxu0 0
        %346 = vmatprep.subr.bf16.mxu0 0
        %347 = vmatpush1.bf16.xpose.msra.mxu0 0
        %348 = vmatprep.subr.bf16.mxu0 0
        %349 = vmatpush1.bf16.xpose.msra.mxu0 0
        %350 = vmatprep.subr.bf16.mxu0 0
        %351 = vmatpush1.bf16.xpose.msra.mxu0 0
        %352 = vmatprep.subr.bf16.mxu0 0
        %353 = vmatpush1.bf16.xpose.msra.mxu0 0
        %354 = vmatprep.subr.bf16.mxu0 0
        %355 = vmatpush1.bf16.xpose.msra.mxu0 0
        %356 = vmatprep.subr.bf16.mxu0 0
        %357 = vmatpush1.bf16.xpose.msra.mxu0 0
        %358 = vmatprep.subr.bf16.mxu0 0
        %359 = vmatpush1.bf16.xpose.msra.mxu0 0
        %360 = vmatprep.subr.bf16.mxu0 0
        %361 = vmatpush1.bf16.xpose.msra.mxu0 0
        %362 = vmatprep.subr.bf16.mxu0 0
        %363 = vmatpush1.bf16.xpose.msra.mxu0 0
        %364 = vmatprep.subr.bf16.mxu0 0
        %365 = vmatpush1.bf16.xpose.msra.mxu0 0
        %366 = vmatprep.mubr.bf16.mxu0 0
        %367 = vmatmul.mubr.bf16.gmra.mrb[0].mxu0 %v329
        %v368 = vpop.f32.mrb[0].mxu0
        %v369 = vadd.f32 0.0, %v368
        %v370 = vpop.f32.mrb[0].mxu0
        %v371 = vpop.f32.mrb[0].mxu0
        %v372 = vpop.f32.mrb[0].mxu0
        %373 = vdwg.mxu0
        %374 = vset.pattern.permute.xlu0 1
        %375 = vperm.xlu0 %374, %v259
        %v376 = vpop.permute.xlu0 %375
        %v378 = vsub.f32 %v369, %v376
        %v379 = vmul.f32 %v378, 1.442695
        %v380 = vpow.pop %v379
        %v381 = vpack.c.bf16 %v380, %v380
        %s382 = scalar_lea.vmem %s234, 4 [#allocation2]
        %383 = vst.msk [vmem:[%s382] sm:$0xf] %vm316, %v381
        %384 = vrot.lane.b32.xlu0 %v320, 112
        %v385 = vpop.permute.xlu0 %384
        %386 = vrot.lane.b32.xlu0 %v325, 112
        %v387 = vpop.permute.xlu0 %386
        %v389 = vsel %vm260, %v385, 0
        %v392 = vsel %vm260, %v387, 0
        %394 = vmatprep.subr.bf16.mxu0 0
        %395 = vmatpush1.bf16.xpose.msra.mxu0 %v392
        %396 = vmatprep.subr.bf16.mxu0 0
        %397 = vmatpush1.bf16.xpose.msra.mxu0 0
        %398 = vmatprep.subr.bf16.mxu0 0
        %399 = vmatpush1.bf16.xpose.msra.mxu0 0
        %400 = vmatprep.subr.bf16.mxu0 0
        %401 = vmatpush1.bf16.xpose.msra.mxu0 0
        %402 = vmatprep.subr.bf16.mxu0 0
        %403 = vmatpush1.bf16.xpose.msra.mxu0 0
        %404 = vmatprep.subr.bf16.mxu0 0
        %405 = vmatpush1.bf16.xpose.msra.mxu0 0
        %406 = vmatprep.subr.bf16.mxu0 0
        %407 = vmatpush1.bf16.xpose.msra.mxu0 0
        %408 = vmatprep.subr.bf16.mxu0 0
        %409 = vmatpush1.bf16.xpose.msra.mxu0 0
        %410 = vmatprep.subr.bf16.mxu0 0
        %411 = vmatpush1.bf16.xpose.msra.mxu0 0
        %412 = vmatprep.subr.bf16.mxu0 0
        %413 = vmatpush1.bf16.xpose.msra.mxu0 0
        %414 = vmatprep.subr.bf16.mxu0 0
        %415 = vmatpush1.bf16.xpose.msra.mxu0 0
        %416 = vmatprep.subr.bf16.mxu0 0
        %417 = vmatpush1.bf16.xpose.msra.mxu0 0
        %418 = vmatprep.subr.bf16.mxu0 0
        %419 = vmatpush1.bf16.xpose.msra.mxu0 0
        %420 = vmatprep.subr.bf16.mxu0 0
        %421 = vmatpush1.bf16.xpose.msra.mxu0 0
        %422 = vmatprep.subr.bf16.mxu0 0
        %423 = vmatpush1.bf16.xpose.msra.mxu0 0
        %424 = vmatprep.subr.bf16.mxu0 0
        %425 = vmatpush1.bf16.xpose.msra.mxu0 0
        %426 = vmatprep.mubr.bf16.mxu0 0
        %427 = vmatmul.mubr.bf16.gmra.mrb[0].mxu0 %v389
        %v428 = vpop.f32.mrb[0].mxu0
        %v429 = vadd.f32 0.0, %v428
        %v430 = vpop.f32.mrb[0].mxu0
        %v431 = vpop.f32.mrb[0].mxu0
        %v432 = vpop.f32.mrb[0].mxu0
        %433 = vdwg.mxu0
        %434 = vset.pattern.permute.xlu0 2
        %435 = vperm.xlu0 %434, %v259
        %v436 = vpop.permute.xlu0 %435
        %v438 = vsub.f32 %v429, %v436
        %v439 = vmul.f32 %v438, 1.442695
        %v440 = vpow.pop %v439
        %v441 = vpack.c.bf16 %v440, %v440
        %s442 = scalar_lea.vmem %s234, 8 [#allocation2]
        %443 = vst.msk [vmem:[%s442] sm:$0xf] %vm316, %v441
        %444 = vrot.lane.b32.xlu0 %v320, 104
        %v445 = vpop.permute.xlu0 %444
        %446 = vrot.lane.b32.xlu0 %v325, 104
        %v447 = vpop.permute.xlu0 %446
        %v449 = vsel %vm260, %v445, 0
        %v452 = vsel %vm260, %v447, 0
        %454 = vmatprep.subr.bf16.mxu0 0
        %455 = vmatpush1.bf16.xpose.msra.mxu0 %v452
        %456 = vmatprep.subr.bf16.mxu0 0
        %457 = vmatpush1.bf16.xpose.msra.mxu0 0
        %458 = vmatprep.subr.bf16.mxu0 0
        %459 = vmatpush1.bf16.xpose.msra.mxu0 0
        %460 = vmatprep.subr.bf16.mxu0 0
        %461 = vmatpush1.bf16.xpose.msra.mxu0 0
        %462 = vmatprep.subr.bf16.mxu0 0
        %463 = vmatpush1.bf16.xpose.msra.mxu0 0
        %464 = vmatprep.subr.bf16.mxu0 0
        %465 = vmatpush1.bf16.xpose.msra.mxu0 0
        %466 = vmatprep.subr.bf16.mxu0 0
        %467 = vmatpush1.bf16.xpose.msra.mxu0 0
        %468 = vmatprep.subr.bf16.mxu0 0
        %469 = vmatpush1.bf16.xpose.msra.mxu0 0
        %470 = vmatprep.subr.bf16.mxu0 0
        %471 = vmatpush1.bf16.xpose.msra.mxu0 0
        %472 = vmatprep.subr.bf16.mxu0 0
        %473 = vmatpush1.bf16.xpose.msra.mxu0 0
        %474 = vmatprep.subr.bf16.mxu0 0
        %475 = vmatpush1.bf16.xpose.msra.mxu0 0
        %476 = vmatprep.subr.bf16.mxu0 0
        %477 = vmatpush1.bf16.xpose.msra.mxu0 0
        %478 = vmatprep.subr.bf16.mxu0 0
        %479 = vmatpush1.bf16.xpose.msra.mxu0 0
        %480 = vmatprep.subr.bf16.mxu0 0
        %481 = vmatpush1.bf16.xpose.msra.mxu0 0
        %482 = vmatprep.subr.bf16.mxu0 0
        %483 = vmatpush1.bf16.xpose.msra.mxu0 0
        %484 = vmatprep.subr.bf16.mxu0 0
        %485 = vmatpush1.bf16.xpose.msra.mxu0 0
        %486 = vmatprep.mubr.bf16.mxu0 0
        %487 = vmatmul.mubr.bf16.gmra.mrb[0].mxu0 %v449
        %v488 = vpop.f32.mrb[0].mxu0
        %v489 = vadd.f32 0.0, %v488
        %v490 = vpop.f32.mrb[0].mxu0
        %v491 = vpop.f32.mrb[0].mxu0
        %v492 = vpop.f32.mrb[0].mxu0
        %493 = vdwg.mxu0
        %494 = vset.pattern.permute.xlu0 3
        %495 = vperm.xlu0 %494, %v259
        %v496 = vpop.permute.xlu0 %495
        %v498 = vsub.f32 %v489, %v496
        %v499 = vmul.f32 %v498, 1.442695
        %v500 = vpow.pop %v499
        %v501 = vpack.c.bf16 %v500, %v500
        %s502 = scalar_lea.vmem %s234, 12 [#allocation2]
        %503 = vst.msk [vmem:[%s502] sm:$0xf] %vm316, %v501
        %s504 = sand.u32 %s132, 1
        %s505 = scalar_lea.sflag [#allocation3], %s504
        %s506 = sand.u32 %s132, 1
        %s507 = smul.addr %s506, 16
        %s508 = scalar_lea.vmem [#allocation2], %s507
        // Predicated region
        $region33: #{self_attention_forward.11} parent=31 // pred_check
          %p509 = pneg %p142
        $region34: #{self_attention_forward.11} parent=31 // pred_check_branch
          %511 = sbr.rel (%p509) target = $region36
        $region35: #{self_attention_forward.11} parent=31 // pred_region
          %s513 = ssub.s32 256, 256
          %514 = vsyncadd %s505, %s513
          %s515 = sadd.s32 %s24, %s23
          %s516 = smul.addr %s22, 4
          %s517 = sadd.s32 %s515, %s516
          %s518 = smul.addr %s517, 64
          %s519 = scalar_lea.hbm %s3, %s518
          %s520 = sshll.u32 %s508, 4
          %s521 = int_to_ptr.vmem [resolvable:$true] %s520
          %526 = dma.vmem_to_hbm [thread:$0]  %s521, 256, %s519, %s505, 64, 64, 4
        $region36: #{self_attention_forward.11} parent=31 // pred_fallthru
          _
      $region32: #{self_attention_forward.11} parent=5 // pred_fallthru
        _
      %p527 = scmp.le.s32.totalorder 2, %s12
      // Predicated region
      $region37: #{self_attention_forward.11} parent=5 // pred_check
        %p528 = pneg %p527
      $region38: #{self_attention_forward.11} parent=5 // pred_check_branch
        %530 = sbr.rel (%p528) target = $region40
      $region39: #{self_attention_forward.11} parent=5 // pred_region
        %s531 = ssub.s32 %s12, 2
        // Predicated region
        $region41: #{self_attention_forward.11} parent=39 // pred_check
          %p532 = pneg %p148
        $region42: #{self_attention_forward.11} parent=39 // pred_check_branch
          %534 = sbr.rel (%p532) target = $region44
        $region43: #{self_attention_forward.11} parent=39 // pred_region
          %s535 = sand.u32 %s133, 1
          %s536 = scalar_lea.sflag [#allocation3], %s535
          %s537 = sand.u32 %s133, 1
          %s538 = smul.addr %s537, 16
          %s539 = scalar_lea.vmem [#allocation2], %s538
          %540 = dma.done %s536, 256
        $region44: #{self_attention_forward.11} parent=39 // pred_fallthru
          _
      $region40: #{self_attention_forward.11} parent=5 // pred_fallthru
        _
    $region6: #{self_attention_forward.11} parent=1 // loop_footer
      %s16 = sadd.s32 1, %s12
    $region7: #{self_attention_forward.11} parent=1 // loop_footer_branch
      %11 = sbr.rel target = $region3
    $region8: #{self_attention_forward.11} parent=1 // loop_exit
      _
    %541 = vsyncpa [#allocation3], 1
    %s542 = scalar_lea.sflag [#allocation3], 1
    %543 = vsyncpa %s542, 1

// kernel: self_attention_forward.9
$region0: #{self_attention_forward.9}
  #allocation0 [shape = 'u32[]', space=smem, size = 0x4, offset = 0x4, fixed_abs, tag = 'smem constant byte address 0x4 - core index']
  #allocation1 [shape = 'u32[144,128]{1,0:T(1,128)}', space=vmem, size = 0x12000, scoped, tag = 'internal scratch']
  #allocation2 [shape = 'f32[8,4]{1,0:T(8,128)}', space=vmem, size = 0x1000, scoped, tag = 'scratch operand']
  #allocation3 [shape = 'f32[8,4]{1,0:T(8,128)}', space=vmem, size = 0x1000, scoped, tag = 'scratch operand']
  #allocation4 [shape = 'f32[8,32]{1,0:T(8,128)}', space=vmem, size = 0x1000, scoped, tag = 'scratch operand']
  %s0 = inlined_call_operand.vmem [shape: bf16[2,8,32], index: 0, kind: input, shape index: {}]
  %s1 = inlined_call_operand.vmem [shape: bf16[2,8,32], index: 1, kind: input, shape index: {}]
  %s2 = inlined_call_operand.vmem [shape: bf16[2,8,32], index: 2, kind: input, shape index: {}]
  %s3 = inlined_call_operand.vmem [shape: bf16[2,8,32], index: 3, kind: output, shape index: {0}]
  %s4 = inlined_call_operand.vmem [shape: f32[2,8,4], index: 4, kind: output, shape index: {1}]
  %5 = xla_tuple %s3, %s4
  %s6 = sld [smem:[#allocation0]]
  $region61: #{self_attention_forward.9} parent=0
    _
  %s8 = ssub.s32 1, %s6
  %s9 = scalar_select 0, %s8, %s6
  loop: start=0, step=1, limit=4
  $region2: #{self_attention_forward.9} parent=0 // loop_pre_header
    _
  $region3: #{self_attention_forward.9} parent=0 // loop_header
    %s11 = sphi 0, %s15
    %p12 = scmp.ge.s32.totalorder %s11, 4
    %s18 = sphi 0, %s37
    %s19 = sphi 0, %s33
    %s20 = sphi 0, %s29
    %s21 = sphi 0, %s18
    %s22 = sphi 0, %s19
    %s23 = sphi 0, %s20
    %s24 = sphi 0, %s21
    %s25 = sphi 0, %s22
    %s26 = sphi 0, %s23
    %s42 = sphi 0, %s44
    %s45 = sphi 0, %s42
    %s46 = sphi 0, %s45
    %s62 = sphi 0, %s46
    %s70 = sphi 0, %s72
    %s73 = sphi 0, %s70
    %s74 = sphi 0, %s73
    %s90 = sphi 0, %s74
    %s98 = sphi 0, %s100
    %s101 = sphi 0, %s98
    %s102 = sphi 0, %s101
    %s118 = sphi 0, %s102
    %s126 = sphi 0, %s128
    %s129 = sphi 0, %s126
    %s130 = sphi 0, %s129
    %s146 = sphi 0, %s130
    %s154 = sphi 0, %s156
    %s157 = sphi 0, %s154
    %s158 = sphi 0, %s157
    %s174 = sphi 0, %s158
  $region4: #{self_attention_forward.9} parent=0 // loop_header_branch
    %14 = sbr.rel (%p12) target = $region8
  $region5: #{self_attention_forward.9} parent=0 // loop_body
    %s16 = ssub.s32 %s11, 1
    %s17 = ssub.s32 %s11, 2
    %s27 = sadd.s32 1, %s20
    %p28 = scmp.ge.s32.totalorder %s27, 1
    %s29 = scalar_select %p28, 0, %s27
    %s30 = sadd.s32 1, %s19
    %s31 = scalar_select %p28, %s30, %s19
    %p32 = scmp.ge.s32.totalorder %s31, 1
    %s33 = scalar_select %p32, 0, %s31
    %s34 = sadd.s32 1, %s18
    %s35 = scalar_select %p32, %s34, %s18
    %p36 = scmp.ge.s32.totalorder %s35, 2
    %s37 = scalar_select %p36, 0, %s35
    %s38 = ssub.s32 %s18, %s37
    %s39 = ssub.s32 %s19, %s33
    %s40 = sor.u32 %s38, %s39
    %p41 = scmp.eq.s32.totalorder %s40, 0
    %s43 = sadd.s32 %s42, 1
    %s44 = scalar_select %p41, %s42, %s43
    %p47 = pneg %p41
    %p48 = scmp.eq.s32.totalorder %s11, 1
    %p49 = por %p47, %p48
    %p50 = scmp.ne.s32.totalorder %s42, %s45
    %p51 = scmp.eq.s32.totalorder %s11, 0
    %p52 = por %p50, %p51
    %p53 = scmp.ne.s32.totalorder %s42, %s45
    %p54 = scmp.eq.s32.totalorder %s16, 1
    %p55 = por %p53, %p54
    %p56 = scmp.ne.s32.totalorder %s45, %s46
    %p57 = scmp.eq.s32.totalorder %s16, 0
    %p58 = por %p56, %p57
    %p59 = scmp.ne.s32.totalorder %s45, %s46
    %p60 = scmp.eq.s32.totalorder %s17, 1
    %p61 = por %p59, %p60
    %p63 = scmp.ne.s32.totalorder %s46, %s62
    %p64 = scmp.eq.s32.totalorder %s17, 0
    %p65 = por %p63, %p64
    %s66 = ssub.s32 %s18, %s37
    %s67 = ssub.s32 %s20, %s29
    %s68 = sor.u32 %s66, %s67
    %p69 = scmp.eq.s32.totalorder %s68, 0
    %s71 = sadd.s32 %s70, 1
    %s72 = scalar_select %p69, %s70, %s71
    %p75 = pneg %p69
    %p76 = scmp.eq.s32.totalorder %s11, 1
    %p77 = por %p75, %p76
    %p78 = scmp.ne.s32.totalorder %s70, %s73
    %p79 = scmp.eq.s32.totalorder %s11, 0
    %p80 = por %p78, %p79
    %p81 = scmp.ne.s32.totalorder %s70, %s73
    %p82 = scmp.eq.s32.totalorder %s16, 1
    %p83 = por %p81, %p82
    %p84 = scmp.ne.s32.totalorder %s73, %s74
    %p85 = scmp.eq.s32.totalorder %s16, 0
    %p86 = por %p84, %p85
    %p87 = scmp.ne.s32.totalorder %s73, %s74
    %p88 = scmp.eq.s32.totalorder %s17, 1
    %p89 = por %p87, %p88
    %p91 = scmp.ne.s32.totalorder %s74, %s90
    %p92 = scmp.eq.s32.totalorder %s17, 0
    %p93 = por %p91, %p92
    %s94 = ssub.s32 %s18, %s37
    %s95 = ssub.s32 %s20, %s29
    %s96 = sor.u32 %s94, %s95
    %p97 = scmp.eq.s32.totalorder %s96, 0
    %s99 = sadd.s32 %s98, 1
    %s100 = scalar_select %p97, %s98, %s99
    %p103 = pneg %p97
    %p104 = scmp.eq.s32.totalorder %s11, 1
    %p105 = por %p103, %p104
    %p106 = scmp.ne.s32.totalorder %s98, %s101
    %p107 = scmp.eq.s32.totalorder %s11, 0
    %p108 = por %p106, %p107
    %p109 = scmp.ne.s32.totalorder %s98, %s101
    %p110 = scmp.eq.s32.totalorder %s16, 1
    %p111 = por %p109, %p110
    %p112 = scmp.ne.s32.totalorder %s101, %s102
    %p113 = scmp.eq.s32.totalorder %s16, 0
    %p114 = por %p112, %p113
    %p115 = scmp.ne.s32.totalorder %s101, %s102
    %p116 = scmp.eq.s32.totalorder %s17, 1
    %p117 = por %p115, %p116
    %p119 = scmp.ne.s32.totalorder %s102, %s118
    %p120 = scmp.eq.s32.totalorder %s17, 0
    %p121 = por %p119, %p120
    %s122 = ssub.s32 %s18, %s37
    %s123 = ssub.s32 %s19, %s33
    %s124 = sor.u32 %s122, %s123
    %p125 = scmp.eq.s32.totalorder %s124, 0
    %s127 = sadd.s32 %s126, 1
    %s128 = scalar_select %p125, %s126, %s127
    %p131 = pneg %p125
    %p132 = scmp.eq.s32.totalorder %s11, 1
    %p133 = por %p131, %p132
    %p134 = scmp.ne.s32.totalorder %s126, %s129
    %p135 = scmp.eq.s32.totalorder %s11, 0
    %p136 = por %p134, %p135
    %p137 = scmp.ne.s32.totalorder %s126, %s129
    %p138 = scmp.eq.s32.totalorder %s16, 1
    %p139 = por %p137, %p138
    %p140 = scmp.ne.s32.totalorder %s129, %s130
    %p141 = scmp.eq.s32.totalorder %s16, 0
    %p142 = por %p140, %p141
    %p143 = scmp.ne.s32.totalorder %s129, %s130
    %p144 = scmp.eq.s32.totalorder %s17, 1
    %p145 = por %p143, %p144
    %p147 = scmp.ne.s32.totalorder %s130, %s146
    %p148 = scmp.eq.s32.totalorder %s17, 0
    %p149 = por %p147, %p148
    %s150 = ssub.s32 %s18, %s37
    %s151 = ssub.s32 %s19, %s33
    %s152 = sor.u32 %s150, %s151
    %p153 = scmp.eq.s32.totalorder %s152, 0
    %s155 = sadd.s32 %s154, 1
    %s156 = scalar_select %p153, %s154, %s155
    %p159 = pneg %p153
    %p160 = scmp.eq.s32.totalorder %s11, 1
    %p161 = por %p159, %p160
    %p162 = scmp.ne.s32.totalorder %s154, %s157
    %p163 = scmp.eq.s32.totalorder %s11, 0
    %p164 = por %p162, %p163
    %p165 = scmp.ne.s32.totalorder %s154, %s157
    %p166 = scmp.eq.s32.totalorder %s16, 1
    %p167 = por %p165, %p166
    %p168 = scmp.ne.s32.totalorder %s157, %s158
    %p169 = scmp.eq.s32.totalorder %s16, 0
    %p170 = por %p168, %p169
    %p171 = scmp.ne.s32.totalorder %s157, %s158
    %p172 = scmp.eq.s32.totalorder %s17, 1
    %p173 = por %p171, %p172
    %p175 = scmp.ne.s32.totalorder %s158, %s174
    %p176 = scmp.eq.s32.totalorder %s17, 0
    %p177 = por %p175, %p176
    %p178 = scmp.le.s32.totalorder 1, %s11
    %p179 = scmp.lt.s32.totalorder %s11, 3
    %p180 = pnand %p178, %p179
    %p181 = pneg %p180
    // Predicated region
    $region9: #{self_attention_forward.9} parent=5 // pred_check
      _
    $region10: #{self_attention_forward.9} parent=5 // pred_check_branch
      %183 = sbr.rel (%p180) target = $region12
    $region11: #{self_attention_forward.9} parent=5 // pred_region
      %s184 = ssub.s32 %s11, 1
    $region12: #{self_attention_forward.9} parent=5 // pred_fallthru
      _
    %p185 = scmp.lt.s32.totalorder %s11, 2
    // Predicated region
    $region13: #{self_attention_forward.9} parent=5 // pred_check
      %p186 = pneg %p185
    $region14: #{self_attention_forward.9} parent=5 // pred_check_branch
      %188 = sbr.rel (%p186) target = $region16
    $region15: #{self_attention_forward.9} parent=5 // pred_region
      // Predicated region
      $region17: #{self_attention_forward.9} parent=15 // pred_check
        %p189 = pneg %p52
      $region18: #{self_attention_forward.9} parent=15 // pred_check_branch
        %191 = sbr.rel (%p189) target = $region20
      $region19: #{self_attention_forward.9} parent=15 // pred_region
        %p192 = scmp.lt.s32.totalorder %s18, 1
        %s193 = scalar_select %p192, %s18, 1
        %p194 = scmp.lt.s32.totalorder %s19, 0
        %s195 = scalar_select %p194, %s19, 0
        %s196 = sadd.s32 %s195, %s193
        %s197 = smul.addr %s196, 4
        %s198 = scalar_lea.vmem %s0, %s197
      $region20: #{self_attention_forward.9} parent=15 // pred_fallthru
        _
      // Predicated region
      $region21: #{self_attention_forward.9} parent=15 // pred_check
        %p199 = pneg %p80
      $region22: #{self_attention_forward.9} parent=15 // pred_check_branch
        %201 = sbr.rel (%p199) target = $region24
      $region23: #{self_attention_forward.9} parent=15 // pred_region
        %p202 = scmp.lt.s32.totalorder %s18, 1
        %s203 = scalar_select %p202, %s18, 1
        %p204 = scmp.lt.s32.totalorder %s20, 0
        %s205 = scalar_select %p204, %s20, 0
        %s206 = sadd.s32 %s205, %s203
        %s207 = smul.addr %s206, 4
        %s208 = scalar_lea.vmem %s1, %s207
      $region24: #{self_attention_forward.9} parent=15 // pred_fallthru
        _
      // Predicated region
      $region25: #{self_attention_forward.9} parent=15 // pred_check
        %p209 = pneg %p108
      $region26: #{self_attention_forward.9} parent=15 // pred_check_branch
        %211 = sbr.rel (%p209) target = $region28
      $region27: #{self_attention_forward.9} parent=15 // pred_region
        %p212 = scmp.lt.s32.totalorder %s18, 1
        %s213 = scalar_select %p212, %s18, 1
        %p214 = scmp.lt.s32.totalorder %s20, 0
        %s215 = scalar_select %p214, %s20, 0
        %s216 = sadd.s32 %s215, %s213
        %s217 = smul.addr %s216, 4
        %s218 = scalar_lea.vmem %s2, %s217
      $region28: #{self_attention_forward.9} parent=15 // pred_fallthru
        _
    $region16: #{self_attention_forward.9} parent=5 // pred_fallthru
      _
    %p219 = scmp.le.s32.totalorder 1, %s11
    %p220 = scmp.lt.s32.totalorder %s11, 3
    %p221 = pnand %p219, %p220
    %p222 = pneg %p221
    // Predicated region
    $region29: #{self_attention_forward.9} parent=5 // pred_check
      _
    $region30: #{self_attention_forward.9} parent=5 // pred_check_branch
      %224 = sbr.rel (%p221) target = $region32
    $region31: #{self_attention_forward.9} parent=5 // pred_region
      %s225 = ssub.s32 %s11, 1
      %p226 = scmp.lt.s32.totalorder %s21, 1
      %s227 = scalar_select %p226, %s21, 1
      %p228 = scmp.lt.s32.totalorder %s22, 0
      %s229 = scalar_select %p228, %s22, 0
      %s230 = sadd.s32 %s229, %s227
      %s231 = smul.addr %s230, 4
      %s232 = scalar_lea.vmem %s0, %s231
      %p233 = pneg %p58
      %p234 = pneg %p55
      %p235 = scmp.lt.s32.totalorder %s21, 1
      %s236 = scalar_select %p235, %s21, 1
      %p237 = scmp.lt.s32.totalorder %s23, 0
      %s238 = scalar_select %p237, %s23, 0
      %s239 = sadd.s32 %s238, %s236
      %s240 = smul.addr %s239, 4
      %s241 = scalar_lea.vmem %s1, %s240
      %p242 = pneg %p86
      %p243 = pneg %p83
      %p244 = scmp.lt.s32.totalorder %s21, 1
      %s245 = scalar_select %p244, %s21, 1
      %p246 = scmp.lt.s32.totalorder %s23, 0
      %s247 = scalar_select %p246, %s23, 0
      %s248 = sadd.s32 %s247, %s245
      %s249 = smul.addr %s248, 4
      %s250 = scalar_lea.vmem %s2, %s249
      %p251 = pneg %p114
      %p252 = pneg %p111
      %p253 = pneg %p142
      %p254 = pneg %p139
      %p255 = scmp.lt.s32.totalorder %s21, 1
      %s256 = scalar_select %p255, %s21, 1
      %p257 = scmp.lt.s32.totalorder %s22, 0
      %s258 = scalar_select %p257, %s22, 0
      %s259 = sadd.s32 %s258, %s256
      %s260 = smul.addr %s259, 4
      %s261 = scalar_lea.vmem %s3, %s260
      %p262 = pneg %p170
      %p263 = pneg %p167
      %p264 = scmp.lt.s32.totalorder %s21, 1
      %s265 = scalar_select %p264, %s21, 1
      %p266 = scmp.lt.s32.totalorder %s22, 0
      %s267 = scalar_select %p266, %s22, 0
      %s268 = sadd.s32 %s267, %s265
      %s269 = smul.addr %s268, 8
      %s270 = scalar_lea.vmem %s4, %s269
      %p271 = scmp.lt.s32.totalorder %s21, 1
      %s272 = scalar_select %p271, %s21, 1
      %p273 = scmp.lt.s32.totalorder %s22, 0
      %s274 = scalar_select %p273, %s22, 0
      %s275 = sadd.s32 %s274, %s272
      %s276 = smul.addr %s275, 4
      %s277 = scalar_lea.vmem %s0, %s276
      %p278 = scmp.lt.s32.totalorder %s21, 1
      %s279 = scalar_select %p278, %s21, 1
      %p280 = scmp.lt.s32.totalorder %s23, 0
      %s281 = scalar_select %p280, %s23, 0
      %s282 = sadd.s32 %s281, %s279
      %s283 = smul.addr %s282, 4
      %s284 = scalar_lea.vmem %s1, %s283
      %p285 = scmp.lt.s32.totalorder %s21, 1
      %s286 = scalar_select %p285, %s21, 1
      %p287 = scmp.lt.s32.totalorder %s23, 0
      %s288 = scalar_select %p287, %s23, 0
      %s289 = sadd.s32 %s288, %s286
      %s290 = smul.addr %s289, 4
      %s291 = scalar_lea.vmem %s2, %s290
      %p292 = scmp.lt.s32.totalorder %s21, 1
      %s293 = scalar_select %p292, %s21, 1
      %p294 = scmp.lt.s32.totalorder %s22, 0
      %s295 = scalar_select %p294, %s22, 0
      %s296 = sadd.s32 %s295, %s293
      %s297 = smul.addr %s296, 4
      %s298 = scalar_lea.vmem %s3, %s297
      %p299 = scmp.lt.s32.totalorder %s21, 1
      %s300 = scalar_select %p299, %s21, 1
      %p301 = scmp.lt.s32.totalorder %s22, 0
      %s302 = scalar_select %p301, %s22, 0
      %s303 = sadd.s32 %s302, %s300
      %s304 = smul.addr %s303, 8
      %s305 = scalar_lea.vmem %s4, %s304
      %p307 = scmp.eq.s32.totalorder %s23, 0
      // Predicated region
      $region33: #{self_attention_forward.9} parent=31 // pred_check
        %p308 = pneg %p307
      $region34: #{self_attention_forward.9} parent=31 // pred_check_branch
        %310 = sbr.rel (%p308) target = $region36
      $region35: #{self_attention_forward.9} parent=31 // pred_region
        %vm311 = vcmask 31744
        %312 = vst.msk [vmem:[#allocation2] sm:$0xff] %vm311, -inf
        %313 = vst.msk [vmem:[#allocation3] sm:$0xff] %vm311, 0.0
        %vm314 = vcmask 261120
        %315 = vst.msk [vmem:[#allocation4] sm:$0xff] %vm314, 0.0
      $region36: #{self_attention_forward.9} parent=31 // pred_fallthru
        _
      %v316 = vld [vmem:[%s277] sm:$0xf]
      %v317 = vld [vmem:[%s284] sm:$0xf]
      %v318 = vld [vmem:[%s291] sm:$0xf]
      %v319 = vld [vmem:[#allocation2] sm:$0xff]
      %v320 = vld [vmem:[#allocation3] sm:$0xff]
      %vm321 = vcmask 64512
      %v323 = vsel %vm321, %v316, 0
      %v326 = vsel %vm321, %v317, 0
      %328 = vmatprep.subr.bf16.mxu0 0
      %329 = vmatpush1.bf16.xpose.msra.mxu0 %v326
      %330 = vmatprep.subr.bf16.mxu0 0
      %331 = vmatpush1.bf16.xpose.msra.mxu0 0
      %332 = vmatprep.subr.bf16.mxu0 0
      %333 = vmatpush1.bf16.xpose.msra.mxu0 0
      %334 = vmatprep.subr.bf16.mxu0 0
      %335 = vmatpush1.bf16.xpose.msra.mxu0 0
      %336 = vmatprep.subr.bf16.mxu0 0
      %337 = vmatpush1.bf16.xpose.msra.mxu0 0
      %338 = vmatprep.subr.bf16.mxu0 0
      %339 = vmatpush1.bf16.xpose.msra.mxu0 0
      %340 = vmatprep.subr.bf16.mxu0 0
      %341 = vmatpush1.bf16.xpose.msra.mxu0 0
      %342 = vmatprep.subr.bf16.mxu0 0
      %343 = vmatpush1.bf16.xpose.msra.mxu0 0
      %344 = vmatprep.subr.bf16.mxu0 0
      %345 = vmatpush1.bf16.xpose.msra.mxu0 0
      %346 = vmatprep.subr.bf16.mxu0 0
      %347 = vmatpush1.bf16.xpose.msra.mxu0 0
      %348 = vmatprep.subr.bf16.mxu0 0
      %349 = vmatpush1.bf16.xpose.msra.mxu0 0
      %350 = vmatprep.subr.bf16.mxu0 0
      %351 = vmatpush1.bf16.xpose.msra.mxu0 0
      %352 = vmatprep.subr.bf16.mxu0 0
      %353 = vmatpush1.bf16.xpose.msra.mxu0 0
      %354 = vmatprep.subr.bf16.mxu0 0
      %355 = vmatpush1.bf16.xpose.msra.mxu0 0
      %356 = vmatprep.subr.bf16.mxu0 0
      %357 = vmatpush1.bf16.xpose.msra.mxu0 0
      %358 = vmatprep.subr.bf16.mxu0 0
      %359 = vmatpush1.bf16.xpose.msra.mxu0 0
      %360 = vmatprep.mubr.bf16.mxu0 0
      %361 = vmatmul.mubr.bf16.gmra.mrb[0].mxu0 %v323
      %v362 = vpop.f32.mrb[0].mxu0
      %v363 = vadd.f32 0.0, %v362
      %v364 = vpop.f32.mrb[0].mxu0
      %v365 = vpop.f32.mrb[0].mxu0
      %v366 = vpop.f32.mrb[0].mxu0
      %367 = vdwg.mxu0
      %v368 = vsel %vm321, %v363, -inf
      %369 = vmax.xlane.f32.xlu0 %v368
      %v370 = vpop.xlane.xlu0 %369
      %v371 = vmax.f32 %v319, %v370
      %v372 = vsub.f32 %v319, %v371
      %v373 = vmul.f32 %v372, 1.442695
      %v374 = vpow.pop %v373
      %376 = vset.pattern.permute.xlu0 0
      %377 = vperm.xlu0 %376, %v371
      %v378 = vpop.permute.xlu0 %377
      %v380 = vsub.f32 %v363, %v378
      %v381 = vpack.c.bf16 %v380, %v380
      %v383 = vmul.bf16 %v381, 1069105081
      %v384 = vpow.bf16.pop %v383
      %v385 = vmul.f32 %v374, %v320
      %v386 = vunpack.c.l.bf16 %v384
      %v387 = vsel %vm321, %v386, 0.0
      %388 = vadd.xlane.f32.xlu0 %v387
      %v389 = vpop.xlane.xlu0 %388
      %v390 = vadd.f32 %v385, %v389
      %v392 = vsel %vm321, %v384, 0
      %vm394 = vcmask 1043456
      %v396 = vsel %vm394, %v318, 0
      %398 = vmatprep.subr.bf16.mxu0 0
      %399 = vmatpush1.bf16.msra.mxu0 %v396
      %400 = vmatprep.subr.bf16.mxu0 0
      %401 = vmatpush1.bf16.msra.mxu0 0
      %402 = vmatprep.subr.bf16.mxu0 0
      %403 = vmatpush1.bf16.msra.mxu0 0
      %404 = vmatprep.subr.bf16.mxu0 0
      %405 = vmatpush1.bf16.msra.mxu0 0
      %406 = vmatprep.subr.bf16.mxu0 0
      %407 = vmatpush1.bf16.msra.mxu0 0
      %408 = vmatprep.subr.bf16.mxu0 0
      %409 = vmatpush1.bf16.msra.mxu0 0
      %410 = vmatprep.subr.bf16.mxu0 0
      %411 = vmatpush1.bf16.msra.mxu0 0
      %412 = vmatprep.subr.bf16.mxu0 0
      %413 = vmatpush1.bf16.msra.mxu0 0
      %414 = vmatprep.subr.bf16.mxu0 0
      %415 = vmatpush1.bf16.msra.mxu0 0
      %416 = vmatprep.subr.bf16.mxu0 0
      %417 = vmatpush1.bf16.msra.mxu0 0
      %418 = vmatprep.subr.bf16.mxu0 0
      %419 = vmatpush1.bf16.msra.mxu0 0
      %420 = vmatprep.subr.bf16.mxu0 0
      %421 = vmatpush1.bf16.msra.mxu0 0
      %422 = vmatprep.subr.bf16.mxu0 0
      %423 = vmatpush1.bf16.msra.mxu0 0
      %424 = vmatprep.subr.bf16.mxu0 0
      %425 = vmatpush1.bf16.msra.mxu0 0
      %426 = vmatprep.subr.bf16.mxu0 0
      %427 = vmatpush1.bf16.msra.mxu0 0
      %428 = vmatprep.subr.bf16.mxu0 0
      %429 = vmatpush1.bf16.msra.mxu0 0
      %430 = vmatprep.mubr.bf16.mxu0 0
      %431 = vmatmul.mubr.bf16.gmra.mrb[0].mxu0 %v392
      %v432 = vpop.f32.mrb[0].mxu0
      %v433 = vadd.f32 0.0, %v432
      %v434 = vpop.f32.mrb[0].mxu0
      %v435 = vpop.f32.mrb[0].mxu0
      %v436 = vpop.f32.mrb[0].mxu0
      %437 = vdwg.mxu0
      %439 = vset.pattern.permute.xlu0 0
      %440 = vperm.xlu0 %439, %v374
      %v441 = vpop.permute.xlu0 %440
      %v444 = vunpack.c.l.b16 %v316
      %v445 = vpack.c.b16 %v444, %v444
      %446 = vrot.lane.b32.xlu0 %v445, 120
      %v447 = vpop.permute.xlu0 %446
      %v449 = vunpack.c.l.b16 %v317
      %v450 = vpack.c.b16 %v449, %v449
      %451 = vrot.lane.b32.xlu0 %v450, 120
      %v452 = vpop.permute.xlu0 %451
      %v454 = vsel %vm321, %v447, 0
      %v457 = vsel %vm321, %v452, 0
      %459 = vmatprep.subr.bf16.mxu0 0
      %460 = vmatpush1.bf16.xpose.msra.mxu0 %v457
      %461 = vmatprep.subr.bf16.mxu0 0
      %462 = vmatpush1.bf16.xpose.msra.mxu0 0
      %463 = vmatprep.subr.bf16.mxu0 0
      %464 = vmatpush1.bf16.xpose.msra.mxu0 0
      %465 = vmatprep.subr.bf16.mxu0 0
      %466 = vmatpush1.bf16.xpose.msra.mxu0 0
      %467 = vmatprep.subr.bf16.mxu0 0
      %468 = vmatpush1.bf16.xpose.msra.mxu0 0
      %469 = vmatprep.subr.bf16.mxu0 0
      %470 = vmatpush1.bf16.xpose.msra.mxu0 0
      %471 = vmatprep.subr.bf16.mxu0 0
      %472 = vmatpush1.bf16.xpose.msra.mxu0 0
      %473 = vmatprep.subr.bf16.mxu0 0
      %474 = vmatpush1.bf16.xpose.msra.mxu0 0
      %475 = vmatprep.subr.bf16.mxu0 0
      %476 = vmatpush1.bf16.xpose.msra.mxu0 0
      %477 = vmatprep.subr.bf16.mxu0 0
      %478 = vmatpush1.bf16.xpose.msra.mxu0 0
      %479 = vmatprep.subr.bf16.mxu0 0
      %480 = vmatpush1.bf16.xpose.msra.mxu0 0
      %481 = vmatprep.subr.bf16.mxu0 0
      %482 = vmatpush1.bf16.xpose.msra.mxu0 0
      %483 = vmatprep.subr.bf16.mxu0 0
      %484 = vmatpush1.bf16.xpose.msra.mxu0 0
      %485 = vmatprep.subr.bf16.mxu0 0
      %486 = vmatpush1.bf16.xpose.msra.mxu0 0
      %487 = vmatprep.subr.bf16.mxu0 0
      %488 = vmatpush1.bf16.xpose.msra.mxu0 0
      %489 = vmatprep.subr.bf16.mxu0 0
      %490 = vmatpush1.bf16.xpose.msra.mxu0 0
      %491 = vmatprep.mubr.bf16.mxu0 0
      %492 = vmatmul.mubr.bf16.gmra.mrb[0].mxu0 %v454
      %v493 = vpop.f32.mrb[0].mxu0
      %v494 = vadd.f32 0.0, %v493
      %v495 = vpop.f32.mrb[0].mxu0
      %v496 = vpop.f32.mrb[0].mxu0
      %v497 = vpop.f32.mrb[0].mxu0
      %498 = vdwg.mxu0
      %v499 = vsel %vm321, %v494, -inf
      %500 = vmax.xlane.f32.xlu0 %v499
      %v501 = vpop.xlane.xlu0 %500
      %v502 = vmax.f32 %v319, %v501
      %v503 = vsub.f32 %v319, %v502
      %v504 = vmul.f32 %v503, 1.442695
      %v505 = vpow.pop %v504
      %507 = vset.pattern.permute.xlu0 1
      %508 = vperm.xlu0 %507, %v502
      %v509 = vpop.permute.xlu0 %508
      %v511 = vsub.f32 %v494, %v509
      %v512 = vpack.c.bf16 %v511, %v511
      %v514 = vmul.bf16 %v512, 1069105081
      %v515 = vpow.bf16.pop %v514
      %v516 = vmul.f32 %v505, %v320
      %v517 = vunpack.c.l.bf16 %v515
      %v518 = vsel %vm321, %v517, 0.0
      %519 = vadd.xlane.f32.xlu0 %v518
      %v520 = vpop.xlane.xlu0 %519
      %v521 = vadd.f32 %v516, %v520
      %v523 = vunpack.c.l.b16 %v318
      %v524 = vpack.c.b16 %v523, %v523
      %525 = vrot.lane.b32.xlu0 %v524, 120
      %v526 = vpop.permute.xlu0 %525
      %v528 = vsel %vm321, %v515, 0
      %v531 = vsel %vm394, %v526, 0
      %533 = vmatprep.subr.bf16.mxu0 0
      %534 = vmatpush1.bf16.msra.mxu0 %v531
      %535 = vmatprep.subr.bf16.mxu0 0
      %536 = vmatpush1.bf16.msra.mxu0 0
      %537 = vmatprep.subr.bf16.mxu0 0
      %538 = vmatpush1.bf16.msra.mxu0 0
      %539 = vmatprep.subr.bf16.mxu0 0
      %540 = vmatpush1.bf16.msra.mxu0 0
      %541 = vmatprep.subr.bf16.mxu0 0
      %542 = vmatpush1.bf16.msra.mxu0 0
      %543 = vmatprep.subr.bf16.mxu0 0
      %544 = vmatpush1.bf16.msra.mxu0 0
      %545 = vmatprep.subr.bf16.mxu0 0
      %546 = vmatpush1.bf16.msra.mxu0 0
      %547 = vmatprep.subr.bf16.mxu0 0
      %548 = vmatpush1.bf16.msra.mxu0 0
      %549 = vmatprep.subr.bf16.mxu0 0
      %550 = vmatpush1.bf16.msra.mxu0 0
      %551 = vmatprep.subr.bf16.mxu0 0
      %552 = vmatpush1.bf16.msra.mxu0 0
      %553 = vmatprep.subr.bf16.mxu0 0
      %554 = vmatpush1.bf16.msra.mxu0 0
      %555 = vmatprep.subr.bf16.mxu0 0
      %556 = vmatpush1.bf16.msra.mxu0 0
      %557 = vmatprep.subr.bf16.mxu0 0
      %558 = vmatpush1.bf16.msra.mxu0 0
      %559 = vmatprep.subr.bf16.mxu0 0
      %560 = vmatpush1.bf16.msra.mxu0 0
      %561 = vmatprep.subr.bf16.mxu0 0
      %562 = vmatpush1.bf16.msra.mxu0 0
      %563 = vmatprep.subr.bf16.mxu0 0
      %564 = vmatpush1.bf16.msra.mxu0 0
      %565 = vmatprep.mubr.bf16.mxu0 0
      %566 = vmatmul.mubr.bf16.gmra.mrb[0].mxu0 %v528
      %v567 = vpop.f32.mrb[0].mxu0
      %v568 = vadd.f32 0.0, %v567
      %v569 = vpop.f32.mrb[0].mxu0
      %v570 = vpop.f32.mrb[0].mxu0
      %v571 = vpop.f32.mrb[0].mxu0
      %572 = vdwg.mxu0
      %574 = vset.pattern.permute.xlu0 1
      %575 = vperm.xlu0 %574, %v505
      %v576 = vpop.permute.xlu0 %575
      %578 = vrot.lane.b32.xlu0 %v445, 112
      %v579 = vpop.permute.xlu0 %578
      %580 = vrot.lane.b32.xlu0 %v450, 112
      %v581 = vpop.permute.xlu0 %580
      %v583 = vsel %vm321, %v579, 0
      %v586 = vsel %vm321, %v581, 0
      %588 = vmatprep.subr.bf16.mxu0 0
      %589 = vmatpush1.bf16.xpose.msra.mxu0 %v586
      %590 = vmatprep.subr.bf16.mxu0 0
      %591 = vmatpush1.bf16.xpose.msra.mxu0 0
      %592 = vmatprep.subr.bf16.mxu0 0
      %593 = vmatpush1.bf16.xpose.msra.mxu0 0
      %594 = vmatprep.subr.bf16.mxu0 0
      %595 = vmatpush1.bf16.xpose.msra.mxu0 0
      %596 = vmatprep.subr.bf16.mxu0 0
      %597 = vmatpush1.bf16.xpose.msra.mxu0 0
      %598 = vmatprep.subr.bf16.mxu0 0
      %599 = vmatpush1.bf16.xpose.msra.mxu0 0
      %600 = vmatprep.subr.bf16.mxu0 0
      %601 = vmatpush1.bf16.xpose.msra.mxu0 0
      %602 = vmatprep.subr.bf16.mxu0 0
      %603 = vmatpush1.bf16.xpose.msra.mxu0 0
      %604 = vmatprep.subr.bf16.mxu0 0
      %605 = vmatpush1.bf16.xpose.msra.mxu0 0
      %606 = vmatprep.subr.bf16.mxu0 0
      %607 = vmatpush1.bf16.xpose.msra.mxu0 0
      %608 = vmatprep.subr.bf16.mxu0 0
      %609 = vmatpush1.bf16.xpose.msra.mxu0 0
      %610 = vmatprep.subr.bf16.mxu0 0
      %611 = vmatpush1.bf16.xpose.msra.mxu0 0
      %612 = vmatprep.subr.bf16.mxu0 0
      %613 = vmatpush1.bf16.xpose.msra.mxu0 0
      %614 = vmatprep.subr.bf16.mxu0 0
      %615 = vmatpush1.bf16.xpose.msra.mxu0 0
      %616 = vmatprep.subr.bf16.mxu0 0
      %617 = vmatpush1.bf16.xpose.msra.mxu0 0
      %618 = vmatprep.subr.bf16.mxu0 0
      %619 = vmatpush1.bf16.xpose.msra.mxu0 0
      %620 = vmatprep.mubr.bf16.mxu0 0
      %621 = vmatmul.mubr.bf16.gmra.mrb[0].mxu0 %v583
      %v622 = vpop.f32.mrb[0].mxu0
      %v623 = vadd.f32 0.0, %v622
      %v624 = vpop.f32.mrb[0].mxu0
      %v625 = vpop.f32.mrb[0].mxu0
      %v626 = vpop.f32.mrb[0].mxu0
      %627 = vdwg.mxu0
      %v628 = vsel %vm321, %v623, -inf
      %629 = vmax.xlane.f32.xlu0 %v628
      %v630 = vpop.xlane.xlu0 %629
      %v631 = vmax.f32 %v319, %v630
      %v632 = vsub.f32 %v319, %v631
      %v633 = vmul.f32 %v632, 1.442695
      %v634 = vpow.pop %v633
      %636 = vset.pattern.permute.xlu0 2
      %637 = vperm.xlu0 %636, %v631
      %v638 = vpop.permute.xlu0 %637
      %v640 = vsub.f32 %v623, %v638
      %v641 = vpack.c.bf16 %v640, %v640
      %v643 = vmul.bf16 %v641, 1069105081
      %v644 = vpow.bf16.pop %v643
      %v645 = vmul.f32 %v634, %v320
      %v646 = vunpack.c.l.bf16 %v644
      %v647 = vsel %vm321, %v646, 0.0
      %648 = vadd.xlane.f32.xlu0 %v647
      %v649 = vpop.xlane.xlu0 %648
      %v650 = vadd.f32 %v645, %v649
      %651 = vrot.lane.b32.xlu0 %v524, 112
      %v652 = vpop.permute.xlu0 %651
      %v654 = vsel %vm321, %v644, 0
      %v657 = vsel %vm394, %v652, 0
      %659 = vmatprep.subr.bf16.mxu0 0
      %660 = vmatpush1.bf16.msra.mxu0 %v657
      %661 = vmatprep.subr.bf16.mxu0 0
      %662 = vmatpush1.bf16.msra.mxu0 0
      %663 = vmatprep.subr.bf16.mxu0 0
      %664 = vmatpush1.bf16.msra.mxu0 0
      %665 = vmatprep.subr.bf16.mxu0 0
      %666 = vmatpush1.bf16.msra.mxu0 0
      %667 = vmatprep.subr.bf16.mxu0 0
      %668 = vmatpush1.bf16.msra.mxu0 0
      %669 = vmatprep.subr.bf16.mxu0 0
      %670 = vmatpush1.bf16.msra.mxu0 0
      %671 = vmatprep.subr.bf16.mxu0 0
      %672 = vmatpush1.bf16.msra.mxu0 0
      %673 = vmatprep.subr.bf16.mxu0 0
      %674 = vmatpush1.bf16.msra.mxu0 0
      %675 = vmatprep.subr.bf16.mxu0 0
      %676 = vmatpush1.bf16.msra.mxu0 0
      %677 = vmatprep.subr.bf16.mxu0 0
      %678 = vmatpush1.bf16.msra.mxu0 0
      %679 = vmatprep.subr.bf16.mxu0 0
      %680 = vmatpush1.bf16.msra.mxu0 0
      %681 = vmatprep.subr.bf16.mxu0 0
      %682 = vmatpush1.bf16.msra.mxu0 0
      %683 = vmatprep.subr.bf16.mxu0 0
      %684 = vmatpush1.bf16.msra.mxu0 0
      %685 = vmatprep.subr.bf16.mxu0 0
      %686 = vmatpush1.bf16.msra.mxu0 0
      %687 = vmatprep.subr.bf16.mxu0 0
      %688 = vmatpush1.bf16.msra.mxu0 0
      %689 = vmatprep.subr.bf16.mxu0 0
      %690 = vmatpush1.bf16.msra.mxu0 0
      %691 = vmatprep.mubr.bf16.mxu0 0
      %692 = vmatmul.mubr.bf16.gmra.mrb[0].mxu0 %v654
      %v693 = vpop.f32.mrb[0].mxu0
      %v694 = vadd.f32 0.0, %v693
      %v695 = vpop.f32.mrb[0].mxu0
      %v696 = vpop.f32.mrb[0].mxu0
      %v697 = vpop.f32.mrb[0].mxu0
      %698 = vdwg.mxu0
      %700 = vset.pattern.permute.xlu0 2
      %701 = vperm.xlu0 %700, %v634
      %v702 = vpop.permute.xlu0 %701
      %704 = vrot.lane.b32.xlu0 %v445, 104
      %v705 = vpop.permute.xlu0 %704
      %706 = vrot.lane.b32.xlu0 %v450, 104
      %v707 = vpop.permute.xlu0 %706
      %v709 = vsel %vm321, %v705, 0
      %v712 = vsel %vm321, %v707, 0
      %714 = vmatprep.subr.bf16.mxu0 0
      %715 = vmatpush1.bf16.xpose.msra.mxu0 %v712
      %716 = vmatprep.subr.bf16.mxu0 0
      %717 = vmatpush1.bf16.xpose.msra.mxu0 0
      %718 = vmatprep.subr.bf16.mxu0 0
      %719 = vmatpush1.bf16.xpose.msra.mxu0 0
      %720 = vmatprep.subr.bf16.mxu0 0
      %721 = vmatpush1.bf16.xpose.msra.mxu0 0
      %722 = vmatprep.subr.bf16.mxu0 0
      %723 = vmatpush1.bf16.xpose.msra.mxu0 0
      %724 = vmatprep.subr.bf16.mxu0 0
      %725 = vmatpush1.bf16.xpose.msra.mxu0 0
      %726 = vmatprep.subr.bf16.mxu0 0
      %727 = vmatpush1.bf16.xpose.msra.mxu0 0
      %728 = vmatprep.subr.bf16.mxu0 0
      %729 = vmatpush1.bf16.xpose.msra.mxu0 0
      %730 = vmatprep.subr.bf16.mxu0 0
      %731 = vmatpush1.bf16.xpose.msra.mxu0 0
      %732 = vmatprep.subr.bf16.mxu0 0
      %733 = vmatpush1.bf16.xpose.msra.mxu0 0
      %734 = vmatprep.subr.bf16.mxu0 0
      %735 = vmatpush1.bf16.xpose.msra.mxu0 0
      %736 = vmatprep.subr.bf16.mxu0 0
      %737 = vmatpush1.bf16.xpose.msra.mxu0 0
      %738 = vmatprep.subr.bf16.mxu0 0
      %739 = vmatpush1.bf16.xpose.msra.mxu0 0
      %740 = vmatprep.subr.bf16.mxu0 0
      %741 = vmatpush1.bf16.xpose.msra.mxu0 0
      %742 = vmatprep.subr.bf16.mxu0 0
      %743 = vmatpush1.bf16.xpose.msra.mxu0 0
      %744 = vmatprep.subr.bf16.mxu0 0
      %745 = vmatpush1.bf16.xpose.msra.mxu0 0
      %746 = vmatprep.mubr.bf16.mxu0 0
      %747 = vmatmul.mubr.bf16.gmra.mrb[0].mxu0 %v709
      %v748 = vpop.f32.mrb[0].mxu0
      %v749 = vadd.f32 0.0, %v748
      %v750 = vpop.f32.mrb[0].mxu0
      %v751 = vpop.f32.mrb[0].mxu0
      %v752 = vpop.f32.mrb[0].mxu0
      %753 = vdwg.mxu0
      %v754 = vsel %vm321, %v749, -inf
      %755 = vmax.xlane.f32.xlu0 %v754
      %v756 = vpop.xlane.xlu0 %755
      %v757 = vmax.f32 %v319, %v756
      %v758 = vsub.f32 %v319, %v757
      %v759 = vmul.f32 %v758, 1.442695
      %v760 = vpow.pop %v759
      %762 = vset.pattern.permute.xlu0 3
      %763 = vperm.xlu0 %762, %v757
      %v764 = vpop.permute.xlu0 %763
      %v766 = vsub.f32 %v749, %v764
      %v767 = vpack.c.bf16 %v766, %v766
      %v769 = vmul.bf16 %v767, 1069105081
      %v770 = vpow.bf16.pop %v769
      %v771 = vmul.f32 %v760, %v320
      %v772 = vunpack.c.l.bf16 %v770
      %v773 = vsel %vm321, %v772, 0.0
      %774 = vadd.xlane.f32.xlu0 %v773
      %v775 = vpop.xlane.xlu0 %774
      %v776 = vadd.f32 %v771, %v775
      %777 = vrot.lane.b32.xlu0 %v524, 104
      %v778 = vpop.permute.xlu0 %777
      %v780 = vsel %vm321, %v770, 0
      %v783 = vsel %vm394, %v778, 0
      %785 = vmatprep.subr.bf16.mxu0 0
      %786 = vmatpush1.bf16.msra.mxu0 %v783
      %787 = vmatprep.subr.bf16.mxu0 0
      %788 = vmatpush1.bf16.msra.mxu0 0
      %789 = vmatprep.subr.bf16.mxu0 0
      %790 = vmatpush1.bf16.msra.mxu0 0
      %791 = vmatprep.subr.bf16.mxu0 0
      %792 = vmatpush1.bf16.msra.mxu0 0
      %793 = vmatprep.subr.bf16.mxu0 0
      %794 = vmatpush1.bf16.msra.mxu0 0
      %795 = vmatprep.subr.bf16.mxu0 0
      %796 = vmatpush1.bf16.msra.mxu0 0
      %797 = vmatprep.subr.bf16.mxu0 0
      %798 = vmatpush1.bf16.msra.mxu0 0
      %799 = vmatprep.subr.bf16.mxu0 0
      %800 = vmatpush1.bf16.msra.mxu0 0
      %801 = vmatprep.subr.bf16.mxu0 0
      %802 = vmatpush1.bf16.msra.mxu0 0
      %803 = vmatprep.subr.bf16.mxu0 0
      %804 = vmatpush1.bf16.msra.mxu0 0
      %805 = vmatprep.subr.bf16.mxu0 0
      %806 = vmatpush1.bf16.msra.mxu0 0
      %807 = vmatprep.subr.bf16.mxu0 0
      %808 = vmatpush1.bf16.msra.mxu0 0
      %809 = vmatprep.subr.bf16.mxu0 0
      %810 = vmatpush1.bf16.msra.mxu0 0
      %811 = vmatprep.subr.bf16.mxu0 0
      %812 = vmatpush1.bf16.msra.mxu0 0
      %813 = vmatprep.subr.bf16.mxu0 0
      %814 = vmatpush1.bf16.msra.mxu0 0
      %815 = vmatprep.subr.bf16.mxu0 0
      %816 = vmatpush1.bf16.msra.mxu0 0
      %817 = vmatprep.mubr.bf16.mxu0 0
      %818 = vmatmul.mubr.bf16.gmra.mrb[0].mxu0 %v780
      %v819 = vpop.f32.mrb[0].mxu0
      %v820 = vadd.f32 0.0, %v819
      %v821 = vpop.f32.mrb[0].mxu0
      %v822 = vpop.f32.mrb[0].mxu0
      %v823 = vpop.f32.mrb[0].mxu0
      %824 = vdwg.mxu0
      %826 = vset.pattern.permute.xlu0 3
      %827 = vperm.xlu0 %826, %v760
      %v828 = vpop.permute.xlu0 %827
      %vm830 = vcmask 7168
      %v831 = vsel %vm830, %v371, %v502
      %vm832 = vcmask 15360
      %v833 = vsel %vm832, %v831, %v631
      %vm834 = vcmask 23552
      %v835 = vsel %vm834, %v833, %v757
      %vm836 = vcmask 31744
      %837 = vst.msk [vmem:[#allocation2] sm:$0xff] %vm836, %v835
      %v838 = vsel %vm830, %v390, %v521
      %v839 = vsel %vm832, %v838, %v650
      %v840 = vsel %vm834, %v839, %v776
      %841 = vst.msk [vmem:[#allocation3] sm:$0xff] %vm836, %v840
      %v842 = vsel %vm321, %v441, %v576
      %vm843 = vcmask 130048
      %v844 = vsel %vm843, %v842, %v702
      %vm845 = vcmask 195584
      %v846 = vsel %vm845, %v844, %v828
      %v847 = vld [vmem:[#allocation4] sm:$0xff]
      %v848 = vmul.f32 %v846, %v847
      %850 = vrot.lane.b32.xlu0 %v568, 8
      %v851 = vpop.permute.xlu0 %850
      %854 = vrot.lane.b32.xlu0 %v694, 16
      %v855 = vpop.permute.xlu0 %854
      %858 = vrot.lane.b32.xlu0 %v820, 24
      %v859 = vpop.permute.xlu0 %858
      %v861 = vsel %vm321, %v433, %v851
      %v862 = vsel %vm843, %v861, %v855
      %v863 = vsel %vm845, %v862, %v859
      %v864 = vadd.f32 %v848, %v863
      %vm865 = vcmask 261120
      %866 = vst.msk [vmem:[#allocation4] sm:$0xff] %vm865, %v864
      // Predicated region
      $region37: #{self_attention_forward.9} parent=31 // pred_check
        %p867 = pneg %p307
      $region38: #{self_attention_forward.9} parent=31 // pred_check_branch
        %869 = sbr.rel (%p867) target = $region40
      $region39: #{self_attention_forward.9} parent=31 // pred_region
        %v870 = vld [vmem:[#allocation3] sm:$0xff]
        %v871 = vrcp.pop %v870
        %873 = vset.pattern.permute.xlu0 0
        %874 = vperm.xlu0 %873, %v871
        %v875 = vpop.permute.xlu0 %874
        %877 = vset.pattern.permute.xlu0 1
        %878 = vperm.xlu0 %877, %v871
        %v879 = vpop.permute.xlu0 %878
        %881 = vset.pattern.permute.xlu0 2
        %882 = vperm.xlu0 %881, %v871
        %v883 = vpop.permute.xlu0 %882
        %885 = vset.pattern.permute.xlu0 3
        %886 = vperm.xlu0 %885, %v871
        %v887 = vpop.permute.xlu0 %886
        %v889 = vsel %vm321, %v875, %v879
        %v890 = vsel %vm843, %v889, %v883
        %v891 = vsel %vm845, %v890, %v887
        %v892 = vld [vmem:[#allocation4] sm:$0xff]
        %v893 = vmul.f32 %v892, %v891
        %v894 = vpack.c.bf16 %v893, %v893
        %vm895 = vcmask 257024
        %896 = vst.msk [vmem:[%s298] sm:$0xf] %vm895, %v894
        %v897 = vld [vmem:[#allocation2] sm:$0xff]
        %v898 = vlog2.pop %v870
        %v899 = vmul.f32 %v898, 0.6931472
        %v900 = vadd.f32 %v897, %v899
        %901 = vst.msk [vmem:[%s305] sm:$0xff] %vm836, %v900
      $region40: #{self_attention_forward.9} parent=31 // pred_fallthru
        _
      %p902 = scmp.lt.s32.totalorder %s21, 1
      %s903 = scalar_select %p902, %s21, 1
      %p904 = scmp.lt.s32.totalorder %s22, 0
      %s905 = scalar_select %p904, %s22, 0
      %s906 = sadd.s32 %s905, %s903
      %s907 = smul.addr %s906, 4
      %s908 = scalar_lea.vmem %s3, %s907
      %p909 = scmp.lt.s32.totalorder %s21, 1
      %s910 = scalar_select %p909, %s21, 1
      %p911 = scmp.lt.s32.totalorder %s22, 0
      %s912 = scalar_select %p911, %s22, 0
      %s913 = sadd.s32 %s912, %s910
      %s914 = smul.addr %s913, 8
      %s915 = scalar_lea.vmem %s4, %s914
      // Predicated region
      $region41: #{self_attention_forward.9} parent=31 // pred_check
        %p916 = pneg %p139
      $region42: #{self_attention_forward.9} parent=31 // pred_check_branch
        %918 = sbr.rel (%p916) target = $region44
      $region43: #{self_attention_forward.9} parent=31 // pred_region
        _
      $region44: #{self_attention_forward.9} parent=31 // pred_fallthru
        _
      // Predicated region
      $region45: #{self_attention_forward.9} parent=31 // pred_check
        %p919 = pneg %p167
      $region46: #{self_attention_forward.9} parent=31 // pred_check_branch
        %921 = sbr.rel (%p919) target = $region48
      $region47: #{self_attention_forward.9} parent=31 // pred_region
        _
      $region48: #{self_attention_forward.9} parent=31 // pred_fallthru
        _
    $region32: #{self_attention_forward.9} parent=5 // pred_fallthru
      _
    %p922 = scmp.le.s32.totalorder 2, %s11
    // Predicated region
    $region49: #{self_attention_forward.9} parent=5 // pred_check
      %p923 = pneg %p922
    $region50: #{self_attention_forward.9} parent=5 // pred_check_branch
      %925 = sbr.rel (%p923) target = $region52
    $region51: #{self_attention_forward.9} parent=5 // pred_region
      %s926 = ssub.s32 %s11, 2
      // Predicated region
      $region53: #{self_attention_forward.9} parent=51 // pred_check
        %p927 = pneg %p145
      $region54: #{self_attention_forward.9} parent=51 // pred_check_branch
        %929 = sbr.rel (%p927) target = $region56
      $region55: #{self_attention_forward.9} parent=51 // pred_region
        %p930 = scmp.lt.s32.totalorder %s24, 1
        %s931 = scalar_select %p930, %s24, 1
        %p932 = scmp.lt.s32.totalorder %s25, 0
        %s933 = scalar_select %p932, %s25, 0
        %s934 = sadd.s32 %s933, %s931
        %s935 = smul.addr %s934, 4
        %s936 = scalar_lea.vmem %s3, %s935
      $region56: #{self_attention_forward.9} parent=51 // pred_fallthru
        _
      // Predicated region
      $region57: #{self_attention_forward.9} parent=51 // pred_check
        %p937 = pneg %p173
      $region58: #{self_attention_forward.9} parent=51 // pred_check_branch
        %939 = sbr.rel (%p937) target = $region60
      $region59: #{self_attention_forward.9} parent=51 // pred_region
        %p940 = scmp.lt.s32.totalorder %s24, 1
        %s941 = scalar_select %p940, %s24, 1
        %p942 = scmp.lt.s32.totalorder %s25, 0
        %s943 = scalar_select %p942, %s25, 0
        %s944 = sadd.s32 %s943, %s941
        %s945 = smul.addr %s944, 8
        %s946 = scalar_lea.vmem %s4, %s945
      $region60: #{self_attention_forward.9} parent=51 // pred_fallthru
        _
    $region52: #{self_attention_forward.9} parent=5 // pred_fallthru
      _
  $region6: #{self_attention_forward.9} parent=0 // loop_footer
    %s15 = sadd.s32 1, %s11
  $region7: #{self_attention_forward.9} parent=0 // loop_footer_branch
    %10 = sbr.rel target = $region3
  $region8: #{self_attention_forward.9} parent=0 // loop_exit
    _

</llo_original>
